<compile_context>
chip_gen: v7x
topology: tpu7x:2x2x1
jax: 0.10.0
libtpu: 0.0.40
codegen_flags: <defaults>
</compile_context>

<pallas_src>
import jax
import jax.numpy as jnp
from jax.experimental import pallas as pl
from jax.experimental.pallas import tpu as pltpu

LANE = 128
ROW_TILE = 512            # measured mem-bound sweet spot (~85% of HBM roofline)
MIB = 1 << 20
_NEG_BIG = -1e30          # mask for padded class lanes (exp underflows to 0)


def _round_up(x, m):
    return (x + m - 1) // m * m


def _vmem_budget_bytes():
    """~80% of per-core VMEM capacity; leaves headroom for compiler scratch/spills."""
    try:
        cap = int(pltpu.get_tpu_info().vmem_capacity_bytes)
    except Exception:
        cap = 64 * MIB    # conservative default (v7x per-TC size)
    return int(cap * 0.8)


# ---------------------------------------------------------------------------
# Per-pallas_call VMEM buffer plans (bytes)
# ---------------------------------------------------------------------------
def _pass0_need(tm, fp, hp):
    need = 2 * tm * fp * 2           # X row tile (bf16, double-buffered)
    need += 2 * fp * hp * 2          # W1 (bf16, constant block)
    need += 2 * tm * hp * 2          # XW1 output tile (bf16, double-buffered)
    return need + 4 * MIB


def _fused_need(tm, np_, hp, cp):
    need = np_ * np_ * 2             # A_hat resident in VMEM (bf16, single copy)
    need += 2 * np_ * hp * 2         # XW1 (constant block, double-buffered)
    need += np_ * cp * 2             # HW2 VMEM scratch (bf16)
    need += 2 * tm * cp * 4          # output tile (f32, double-buffered)
    need += tm * np_ * 2             # materialized A row-slice value
    need += tm * hp * 4 + 2 * tm * cp * 4   # f32 intermediates
    return need + 4 * MIB


def _sweep_need(tm, np_, hp, cp):
    need = 2 * tm * np_ * 2          # A_hat row tile (bf16, double-buffered)
    need += 2 * np_ * hp * 2         # XW1 resident
    need += 2 * np_ * cp * 2         # HW2 resident
    need += 2 * tm * cp * 4          # output tile
    need += tm * hp * 4 + 2 * tm * cp * 4
    return need + 4 * MIB


# ---------------------------------------------------------------------------
# Pass 0: row-tiled feature transform  XW1 = X @ W1   (bf16 in, f32 acc, bf16 out)
# ---------------------------------------------------------------------------
def xw_kernel(x_ref, w_ref, out_ref):
    out_ref[...] = jnp.dot(
        x_ref[...], w_ref[...], preferred_element_type=jnp.float32
    ).astype(out_ref.dtype)


# ---------------------------------------------------------------------------
# Fused passes 1+2 (A_hat resident in VMEM, read from HBM exactly once):
#   phase 0: HW2[rows] = relu(A[rows] @ XW1 + b1) @ W2     (HW2 kept in VMEM scratch)
#   phase 1: out[rows] = log_softmax(A[rows] @ HW2 + b2m, dim=1)
# Grid = (2, Np//tm), both axes "arbitrary" (scratch must stay on one core).
# ---------------------------------------------------------------------------
def fused_agg_kernel(a_hbm_ref, xw1_ref, b1_ref, w2_ref, b2m_ref, out_ref,
                     a_vmem, hw2_vmem):
    p = pl.program_id(0)
    i = pl.program_id(1)
    tm = out_ref.shape[0]
    row = pl.multiple_of(i * tm, tm)

    @pl.when((p == 0) & (i == 0))
    def _():
        # Single HBM read of A_hat for the whole kernel (no double-buffering).
        pltpu.sync_copy(a_hbm_ref, a_vmem)

    a_tile = a_vmem[pl.ds(row, tm), :]           # (tm, Np) bf16, aligned slice

    @pl.when(p == 0)
    def _():
        h = jnp.dot(a_tile, xw1_ref[...], preferred_element_type=jnp.float32)
        h = jnp.maximum(h + b1_ref[...], 0.0).astype(jnp.bfloat16)
        # TODO(synk): F.dropout(training=True) random mask omitted; eval-mode identity.
        hw2 = jnp.dot(h, w2_ref[...], preferred_element_type=jnp.float32)
        hw2_vmem[pl.ds(row, tm), :] = hw2.astype(hw2_vmem.dtype)
        out_ref[...] = jnp.zeros(out_ref.shape, out_ref.dtype)  # defined phase-0 bytes

    @pl.when(p == 1)
    def _():
        logits = jnp.dot(a_tile, hw2_vmem[...], preferred_element_type=jnp.float32)
        logits = logits + b2m_ref[...]           # padded class lanes get -1e30
        m = jnp.max(logits, axis=1, keepdims=True)
        z = logits - m
        lse = jnp.log(jnp.sum(jnp.exp(z), axis=1, keepdims=True))
        out_ref[...] = (z - lse).astype(out_ref.dtype)


# ---------------------------------------------------------------------------
# Fallback (A_hat too big for VMEM): two streaming row-tiled sweeps over A_hat.
# TODO(synk): add a K (contraction) grid axis + f32 accumulator so VMEM stops
#             scaling with graph size for very large N.
# ---------------------------------------------------------------------------
def agg1_kernel(a_ref, xw1_ref, b1_ref, w2_ref, hw2_ref):
    h = jnp.dot(a_ref[...], xw1_ref[...], preferred_element_type=jnp.float32)
    h = jnp.maximum(h + b1_ref[...], 0.0).astype(jnp.bfloat16)
    hw2_ref[...] = jnp.dot(
        h, w2_ref[...], preferred_element_type=jnp.float32
    ).astype(hw2_ref.dtype)


def agg2_kernel(a_ref, hw2_ref, b2m_ref, out_ref):
    logits = jnp.dot(a_ref[...], hw2_ref[...], preferred_element_type=jnp.float32)
    logits = logits + b2m_ref[...]
    m = jnp.max(logits, axis=1, keepdims=True)
    z = logits - m
    lse = jnp.log(jnp.sum(jnp.exp(z), axis=1, keepdims=True))
    out_ref[...] = (z - lse).astype(out_ref.dtype)


# ---------------------------------------------------------------------------
# Fused forward
# ---------------------------------------------------------------------------
def gcn_forward_pallas(a_hat, x, w1, b1, w2, b2m, *, tm):
    np_, fp = x.shape
    hp = w1.shape[1]
    cp = w2.shape[1]
    n_tiles = np_ // tm
    budget = _vmem_budget_bytes()

    # ---- Pass 0: XW1 = X @ W1 (hoisted, computed once; row-parallel) -------
    xw1 = pl.pallas_call(
        xw_kernel,
        out_shape=jax.ShapeDtypeStruct((np_, hp), jnp.bfloat16),
        grid=(n_tiles,),
        in_specs=[
            pl.BlockSpec((tm, fp), lambda i: (i, 0)),
            pl.BlockSpec((fp, hp), lambda i: (0, 0)),
        ],
        out_specs=pl.BlockSpec((tm, hp), lambda i: (i, 0)),
        compiler_params=pltpu.CompilerParams(
            dimension_semantics=("parallel",),
            vmem_limit_bytes=int(min(budget, max(_pass0_need(tm, fp, hp), 32 * MIB))),
        ),
    )(x, w1)

    # ---- Passes 1+2 ---------------------------------------------------------
    if _fused_need(tm, np_, hp, cp) <= budget:
        # A_hat fits VMEM: fused kernel, A read from HBM once.
        out = pl.pallas_call(
            fused_agg_kernel,
            out_shape=jax.ShapeDtypeStruct((np_, cp), jnp.float32),
            grid=(2, n_tiles),
            in_specs=[
                pl.BlockSpec(memory_space=pl.ANY),                # A_hat stays in HBM
                pl.BlockSpec((np_, hp), lambda p, i: (0, 0)),     # XW1 (resident)
                pl.BlockSpec((1, hp), lambda p, i: (0, 0)),       # b1
                pl.BlockSpec((hp, cp), lambda p, i: (0, 0)),      # W2
                pl.BlockSpec((1, cp), lambda p, i: (0, 0)),       # b2 + pad mask
            ],
            out_specs=pl.BlockSpec((tm, cp), lambda p, i: (i, 0)),  # lane-dense (Cp mult of 128)
            scratch_shapes=[
                pltpu.VMEM((np_, np_), jnp.bfloat16),             # A_hat resident copy
                pltpu.VMEM((np_, cp), jnp.bfloat16),              # HW2 intermediate
            ],
            compiler_params=pltpu.CompilerParams(
                dimension_semantics=("arbitrary", "arbitrary"),
                vmem_limit_bytes=int(min(budget, max(_fused_need(tm, np_, hp, cp), 32 * MIB))),
            ),
        )(a_hat, xw1, b1, w2, b2m)
        return out

    # Fallback: stream A_hat row tiles twice (large graphs).
    tm2 = 128
    for cand in (512, 256, 128):
        if np_ % cand == 0 and _sweep_need(cand, np_, hp, cp) <= budget:
            tm2 = cand
            break
    sweep_params = pltpu.CompilerParams(
        dimension_semantics=("parallel",),
        vmem_limit_bytes=int(min(budget, max(_sweep_need(tm2, np_, hp, cp), 32 * MIB))),
    )
    hw2 = pl.pallas_call(
        agg1_kernel,
        out_shape=jax.ShapeDtypeStruct((np_, cp), jnp.bfloat16),
        grid=(np_ // tm2,),
        in_specs=[
            pl.BlockSpec((tm2, np_), lambda i: (i, 0)),
            pl.BlockSpec((np_, hp), lambda i: (0, 0)),
            pl.BlockSpec((1, hp), lambda i: (0, 0)),
            pl.BlockSpec((hp, cp), lambda i: (0, 0)),
        ],
        out_specs=pl.BlockSpec((tm2, cp), lambda i: (i, 0)),
        compiler_params=sweep_params,
    )(a_hat, xw1, b1, w2)
    out = pl.pallas_call(
        agg2_kernel,
        out_shape=jax.ShapeDtypeStruct((np_, cp), jnp.float32),
        grid=(np_ // tm2,),
        in_specs=[
            pl.BlockSpec((tm2, np_), lambda i: (i, 0)),
            pl.BlockSpec((np_, cp), lambda i: (0, 0)),
            pl.BlockSpec((1, cp), lambda i: (0, 0)),
        ],
        out_specs=pl.BlockSpec((tm2, cp), lambda i: (i, 0)),
        compiler_params=sweep_params,
    )(a_hat, hw2, b2m)
    return out


# ---------------------------------------------------------------------------
# Plain-JAX glue: normalized dense adjacency (PyG gcn_norm), padded
# ---------------------------------------------------------------------------
def build_normalized_adjacency(edge_index, num_nodes, num_nodes_padded, dtype=jnp.bfloat16):
    """Dense A_hat = D^{-1/2}(A+I)D^{-1/2}; padded rows/cols stay exactly zero."""
    src = edge_index[0]
    dst = edge_index[1]
    loop = jnp.arange(num_nodes, dtype=edge_index.dtype)  # self loops: real nodes only
    src = jnp.concatenate([src, loop])
    dst = jnp.concatenate([dst, loop])
    w = jnp.ones(src.shape[0], dtype=jnp.float32)
    deg = jnp.zeros((num_nodes_padded,), jnp.float32).at[dst].add(w)
    deg_inv_sqrt = jnp.where(deg > 0, jax.lax.rsqrt(deg), 0.0)
    norm = deg_inv_sqrt[src] * w * deg_inv_sqrt[dst]
    # out[dst] += norm * x[src]  <=>  A_hat[dst, src] = norm
    a_hat = (
        jnp.zeros((num_nodes_padded, num_nodes_padded), jnp.float32)
        .at[dst, src]
        .add(norm)
    )
    return a_hat.astype(dtype)


# ---------------------------------------------------------------------------
# Parameter init (deterministic, glorot-style)
# ---------------------------------------------------------------------------
def init_params(key, in_features, hidden, num_classes):
    k1, k2 = jax.random.split(key)
    s1 = (6.0 / (in_features + hidden)) ** 0.5
    s2 = (6.0 / (hidden + num_classes)) ** 0.5
    w1 = jax.random.uniform(k1, (in_features, hidden), jnp.float32, -s1, s1)
    w2 = jax.random.uniform(k2, (hidden, num_classes), jnp.float32, -s2, s2)
    b1 = jnp.zeros((1, hidden), jnp.float32)
    b2 = jnp.zeros((1, num_classes), jnp.float32)
    return w1, b1, w2, b2


# ---------------------------------------------------------------------------
# Top-level apply: pad to aligned shapes, run Pallas passes, slice back
# ---------------------------------------------------------------------------
@jax.jit
def gcn_apply(x, edge_index, w1, b1, w2, b2):
    n, f = x.shape
    h = w1.shape[1]
    c = w2.shape[1]
    tm = ROW_TILE
    np_ = max(_round_up(n, tm), tm)              # node dim padded to row-tile multiple
    fp = max(_round_up(f, LANE), LANE)
    hp = max(_round_up(h, LANE), LANE)
    cp = max(_round_up(c, LANE), LANE)

    a_hat = build_normalized_adjacency(edge_index, n, np_, dtype=jnp.bfloat16)

    # bf16 MXU operands (f32 accumulation inside the kernels); biases stay f32.
    x_p = jnp.zeros((np_, fp), jnp.bfloat16).at[:n, :f].set(x.astype(jnp.bfloat16))
    w1_p = jnp.zeros((fp, hp), jnp.bfloat16).at[:f, :h].set(w1.astype(jnp.bfloat16))
    b1_p = jnp.zeros((1, hp), jnp.float32).at[:, :h].set(b1)
    w2_p = jnp.zeros((hp, cp), jnp.bfloat16).at[:h, :c].set(w2.astype(jnp.bfloat16))
    b2_m = jnp.full((1, cp), _NEG_BIG, jnp.float32).at[:, :c].set(b2)

    out_p = gcn_forward_pallas(a_hat, x_p, w1_p, b1_p, w2_p, b2_m, tm=tm)
    return out_p[:n, :c]


# ---------------------------------------------------------------------------
# Plain-JAX reference (f32, unpadded) for correctness check
# ---------------------------------------------------------------------------
def gcn_reference(x, edge_index, w1, b1, w2, b2):
    n = x.shape[0]
    a_hat = build_normalized_adjacency(edge_index, n, n, dtype=jnp.float32)
    hidden = jnp.maximum(a_hat @ (x @ w1) + b1, 0.0)
    logits = a_hat @ (hidden @ w2) + b2
    return jax.nn.log_softmax(logits, axis=1)


if __name__ == "__main__":
    # Small synthetic "Cora-like" graph.
    NUM_NODES = 32
    IN_FEATURES = 32     # stand-in for dataset.num_node_features
    HIDDEN = 16
    NUM_CLASSES = 8      # stand-in for dataset.num_classes
    NUM_EDGES = 64

    key = jax.random.PRNGKey(0)
    kx, ke, kp = jax.random.split(key, 3)

    x = jax.random.normal(kx, (NUM_NODES, IN_FEATURES), jnp.float32)
    edge_index = jax.random.randint(ke, (2, NUM_EDGES), 0, NUM_NODES, jnp.int32)

    w1, b1, w2, b2 = init_params(kp, IN_FEATURES, HIDDEN, NUM_CLASSES)

    out = gcn_apply(x, edge_index, w1, b1, w2, b2)
    out = jax.block_until_ready(out)

    assert out.shape == (NUM_NODES, NUM_CLASSES)
    # log_softmax rows must exponentiate-sum to ~1
    row_sums = jnp.sum(jnp.exp(out), axis=1)
    assert jnp.allclose(row_sums, 1.0, atol=1e-3), row_sums
    # match the f32 reference (all matmul operands are bf16 -> loose tolerance)
    ref = gcn_reference(x, edge_index, w1, b1, w2, b2)
    assert jnp.allclose(out, ref, atol=1e-1, rtol=0.0), jnp.max(jnp.abs(out - ref))

    print("KERNEL_OK")
</pallas_src>

<mosaic_0001>
module attributes {stable_mosaic.version = 11 : i64} {
  func.func private @main(%arg0: i32) attributes {dimension_semantics = [#tpu.dimension_semantics<core_parallel>], iteration_bounds = array<i64: 2>, tpu.core_type = #tpu.core_type<sc_scalar_subcore>, window_params = []} {
    return
  }
}

module attributes {stable_mosaic.version = 11 : i64} {
  func.func private @main(%arg0: i32) attributes {dimension_semantics = [#tpu.dimension_semantics<core_parallel>], iteration_bounds = array<i64: 2>, tpu.core_type = #tpu.core_type<sc_scalar_subcore>, window_params = []} {
    return
  }
}

module attributes {stable_mosaic.version = 11 : i64} {
  func.func @xw_kernel(%arg0: i32, %arg1: memref<512x128xbf16, #tpu.memory_space<vmem>>, %arg2: memref<128x128xbf16, #tpu.memory_space<vmem>>, %arg3: memref<512x128xbf16, #tpu.memory_space<vmem>>) attributes {dimension_semantics = [#tpu.dimension_semantics<parallel>], iteration_bounds = array<i64: 1>, scalar_prefetch = 0 : i64, scratch_operands = 0 : i64, tpu.core_type = #tpu.core_type<tc>, window_params = [{transform_indices = @transform_0, window_bounds = array<i64: 512, 128>}, {pipeline_mode = #tpu.pipeline_mode<synchronous>, transform_indices = @transform_1, window_bounds = array<i64: 128, 128>}, {transform_indices = @transform_2, window_bounds = array<i64: 512, 128>}]} {
    %c0 = arith.constant 0 : index
    %c0_0 = arith.constant 0 : index
    %0 = vector.load %arg1[%c0, %c0_0] : memref<512x128xbf16, #tpu.memory_space<vmem>>, vector<512x128xbf16>
    %c0_1 = arith.constant 0 : index
    %c0_2 = arith.constant 0 : index
    %1 = vector.load %arg2[%c0_1, %c0_2] : memref<128x128xbf16, #tpu.memory_space<vmem>>, vector<128x128xbf16>
    %cst = arith.constant dense<0.000000e+00> : vector<512x128xf32>
    %2 = tpu.matmul %0, %1, %cst {dimension_numbers = #tpu.dot_dimension_numbers<[1], [0], [0], [1], [0, 0, 1, 1], [], []>} : vector<512x128xbf16>, vector<128x128xbf16>, vector<512x128xf32> -> vector<512x128xf32>
    %3 = arith.truncf %2 : vector<512x128xf32> to vector<512x128xbf16>
    %c0_3 = arith.constant 0 : index
    %c0_4 = arith.constant 0 : index
    %4 = vector.load %arg3[%c0_3, %c0_4] : memref<512x128xbf16, #tpu.memory_space<vmem>>, vector<512x128xbf16>
    tpu.vector_store %arg3[%c0_3, %c0_4], %3 {strides = array<i32>} : memref<512x128xbf16, #tpu.memory_space<vmem>>, vector<512x128xbf16>,
    return
  }
  func.func @transform_0(%arg0: i32) -> (i32, i32) {
    %c0_i32 = arith.constant 0 : i32
    %c0_i32_0 = arith.constant 0 : i32
    return %arg0, %c0_i32 : i32, i32
  }
  func.func @transform_1(%arg0: i32) -> (i32, i32) {
    %c0_i32 = arith.constant 0 : i32
    %c0_i32_0 = arith.constant 0 : i32
    %c0_i32_1 = arith.constant 0 : i32
    return %c0_i32, %c0_i32_0 : i32, i32
  }
  func.func @transform_2(%arg0: i32) -> (i32, i32) {
    %c0_i32 = arith.constant 0 : i32
    %c0_i32_0 = arith.constant 0 : i32
    return %arg0, %c0_i32 : i32, i32
  }
}

module attributes {stable_mosaic.version = 11 : i64} {
  func.func @fused_agg_kernel(%arg0: i32, %arg1: i32, %arg2: memref<512x512xbf16, #tpu.memory_space<any>>, %arg3: memref<512x128xbf16, #tpu.memory_space<vmem>>, %arg4: memref<1x128xf32, #tpu.memory_space<vmem>>, %arg5: memref<128x128xbf16, #tpu.memory_space<vmem>>, %arg6: memref<1x128xf32, #tpu.memory_space<vmem>>, %arg7: memref<512x128xf32, #tpu.memory_space<vmem>>, %arg8: memref<512x512xbf16, #tpu.memory_space<vmem>>, %arg9: memref<512x128xbf16, #tpu.memory_space<vmem>>) attributes {dimension_semantics = [#tpu.dimension_semantics<arbitrary>, #tpu.dimension_semantics<arbitrary>], iteration_bounds = array<i64: 2, 1>, scalar_prefetch = 0 : i64, scratch_operands = 2 : i64, tpu.core_type = #tpu.core_type<tc>, window_params = [{}, {pipeline_mode = #tpu.pipeline_mode<synchronous>, transform_indices = @transform_1, window_bounds = array<i64: 512, 128>}, {pipeline_mode = #tpu.pipeline_mode<synchronous>, transform_indices = @transform_2, window_bounds = array<i64: 1, 128>}, {pipeline_mode = #tpu.pipeline_mode<synchronous>, transform_indices = @transform_3, window_bounds = array<i64: 128, 128>}, {pipeline_mode = #tpu.pipeline_mode<synchronous>, transform_indices = @transform_4, window_bounds = array<i64: 1, 128>}, {transform_indices = @transform_5, window_bounds = array<i64: 512, 128>}]} {
    %c512_i32 = arith.constant 512 : i32
    %0 = arith.muli %arg1, %c512_i32 : i32
    %1 = tpu.assume_multiple %0, 512 : i32
    %c0_i32 = arith.constant 0 : i32
    %2 = arith.cmpi eq, %arg0, %c0_i32 : i32
    %c0_i32_0 = arith.constant 0 : i32
    %3 = arith.cmpi eq, %arg1, %c0_i32_0 : i32
    %4 = arith.andi %2, %3 : i1
    %5 = arith.extui %4 : i1 to i32
    %c0_i32_1 = arith.constant 0 : i32
    %6 = arith.cmpi ne, %5, %c0_i32_1 : i32
    scf.if %6 {
      "tpu.region"() ({
        %15 = tpu.sem_alloc : memref<!tpu.dma_semaphore, #tpu.memory_space<semaphore_mem>>
        tpu.enqueue_dma source(%arg2 : memref<512x512xbf16, #tpu.memory_space<any>>) target(%arg8 : memref<512x512xbf16, #tpu.memory_space<vmem>>) target_semaphore(%15 : memref<!tpu.dma_semaphore, #tpu.memory_space<semaphore_mem>>)
        tpu.wait_dma2 semaphore(%15 : memref<!tpu.dma_semaphore, #tpu.memory_space<semaphore_mem>>) src(%arg2 : memref<512x512xbf16, #tpu.memory_space<any>>) dst(%arg8 : memref<512x512xbf16, #tpu.memory_space<vmem>>)
        tpu.yield
      }) : () -> ()
    } else {
    }
    %7 = arith.index_cast %1 : i32 to index
    %c0 = arith.constant 0 : index
    %8 = vector.load %arg8[%7, %c0] : memref<512x512xbf16, #tpu.memory_space<vmem>>, vector<512x512xbf16>
    %c0_i32_2 = arith.constant 0 : i32
    %9 = arith.cmpi eq, %arg0, %c0_i32_2 : i32
    %10 = arith.extui %9 : i1 to i32
    %c0_i32_3 = arith.constant 0 : i32
    %11 = arith.cmpi ne, %10, %c0_i32_3 : i32
    scf.if %11 {
      %c0_5 = arith.constant 0 : index
      %c0_6 = arith.constant 0 : index
      %15 = vector.load %arg3[%c0_5, %c0_6] : memref<512x128xbf16, #tpu.memory_space<vmem>>, vector<512x128xbf16>
      %cst = arith.constant dense<0.000000e+00> : vector<512x128xf32>
      %16 = tpu.matmul %8, %15, %cst {dimension_numbers = #tpu.dot_dimension_numbers<[1], [0], [0], [1], [0, 0, 1, 1], [], []>} : vector<512x512xbf16>, vector<512x128xbf16>, vector<512x128xf32> -> vector<512x128xf32>
      %c0_7 = arith.constant 0 : index
      %c0_8 = arith.constant 0 : index
      %17 = vector.load %arg4[%c0_7, %c0_8] : memref<1x128xf32, #tpu.memory_space<vmem>>, vector<1x128xf32>
      %18 = vector.broadcast %17 : vector<1x128xf32> to vector<512x128xf32>
      %19 = arith.addf %16, %18 : vector<512x128xf32>
      %cst_9 = arith.constant 0.000000e+00 : f32
      %20 = vector.broadcast %cst_9 : f32 to vector<512x128xf32>
      %21 = arith.maximumf %19, %20 : vector<512x128xf32>
      %22 = arith.truncf %21 : vector<512x128xf32> to vector<512x128xbf16>
      %c0_10 = arith.constant 0 : index
      %c0_11 = arith.constant 0 : index
      %23 = vector.load %arg5[%c0_10, %c0_11] : memref<128x128xbf16, #tpu.memory_space<vmem>>, vector<128x128xbf16>
      %cst_12 = arith.constant dense<0.000000e+00> : vector<512x128xf32>
      %24 = tpu.matmul %22, %23, %cst_12 {dimension_numbers = #tpu.dot_dimension_numbers<[1], [0], [0], [1], [0, 0, 1, 1], [], []>} : vector<512x128xbf16>, vector<128x128xbf16>, vector<512x128xf32> -> vector<512x128xf32>
      %25 = arith.truncf %24 : vector<512x128xf32> to vector<512x128xbf16>
      %26 = arith.index_cast %1 : i32 to index
      %c0_13 = arith.constant 0 : index
      %27 = vector.load %arg9[%26, %c0_13] : memref<512x128xbf16, #tpu.memory_space<vmem>>, vector<512x128xbf16>
      tpu.vector_store %arg9[%26, %c0_13], %25 {strides = array<i32>} : memref<512x128xbf16, #tpu.memory_space<vmem>>, vector<512x128xbf16>,
      %cst_14 = arith.constant 0.000000e+00 : f32
      %28 = vector.broadcast %cst_14 : f32 to vector<512x128xf32>
      %c0_15 = arith.constant 0 : index
      %c0_16 = arith.constant 0 : index
      %29 = vector.load %arg7[%c0_15, %c0_16] : memref<512x128xf32, #tpu.memory_space<vmem>>, vector<512x128xf32>
      tpu.vector_store %arg7[%c0_15, %c0_16], %28 {strides = array<i32>} : memref<512x128xf32, #tpu.memory_space<vmem>>, vector<512x128xf32>,
    } else {
    }
    %c1_i32 = arith.constant 1 : i32
    %12 = arith.cmpi eq, %arg0, %c1_i32 : i32
    %13 = arith.extui %12 : i1 to i32
    %c0_i32_4 = arith.constant 0 : i32
    %14 = arith.cmpi ne, %13, %c0_i32_4 : i32
    scf.if %14 {
      %c0_5 = arith.constant 0 : index
      %c0_6 = arith.constant 0 : index
      %15 = vector.load %arg9[%c0_5, %c0_6] : memref<512x128xbf16, #tpu.memory_space<vmem>>, vector<512x128xbf16>
      %cst = arith.constant dense<0.000000e+00> : vector<512x128xf32>
      %16 = tpu.matmul %8, %15, %cst {dimension_numbers = #tpu.dot_dimension_numbers<[1], [0], [0], [1], [0, 0, 1, 1], [], []>} : vector<512x512xbf16>, vector<512x128xbf16>, vector<512x128xf32> -> vector<512x128xf32>
      %c0_7 = arith.constant 0 : index
      %c0_8 = arith.constant 0 : index
      %17 = vector.load %arg6[%c0_7, %c0_8] : memref<1x128xf32, #tpu.memory_space<vmem>>, vector<1x128xf32>
      %18 = vector.broadcast %17 : vector<1x128xf32> to vector<512x128xf32>
      %19 = arith.addf %16, %18 : vector<512x128xf32>
      %cst_9 = arith.constant dense<0xFF800000> : vector<512xf32>
      %20 = vector.multi_reduction <maximumf>, %19, %cst_9 [1] : vector<512x128xf32> to vector<512xf32>
      %21 = vector.shape_cast %20 : vector<512xf32> to vector<512x1xf32>
      %22 = vector.broadcast %21 : vector<512x1xf32> to vector<512x128xf32>
      %23 = arith.subf %19, %22 : vector<512x128xf32>
      %24 = math.exp %23 : vector<512x128xf32>
      %cst_10 = arith.constant dense<0.000000e+00> : vector<512xf32>
      %25 = vector.multi_reduction <add>, %24, %cst_10 [1] : vector<512x128xf32> to vector<512xf32>
      %26 = vector.shape_cast %25 : vector<512xf32> to vector<512x1xf32>
      %27 = math.log %26 : vector<512x1xf32>
      %28 = vector.broadcast %27 : vector<512x1xf32> to vector<512x128xf32>
      %29 = arith.subf %23, %28 : vector<512x128xf32>
      %c0_11 = arith.constant 0 : index
      %c0_12 = arith.constant 0 : index
      %30 = vector.load %arg7[%c0_11, %c0_12] : memref<512x128xf32, #tpu.memory_space<vmem>>, vector<512x128xf32>
      tpu.vector_store %arg7[%c0_11, %c0_12], %29 {strides = array<i32>} : memref<512x128xf32, #tpu.memory_space<vmem>>, vector<512x128xf32>,
    } else {
    }
    return
  }
  func.func @transform_1(%arg0: i32, %arg1: i32) -> (i32, i32) {
    %c0_i32 = arith.constant 0 : i32
    %c0_i32_0 = arith.constant 0 : i32
    %c0_i32_1 = arith.constant 0 : i32
    return %c0_i32, %c0_i32_0 : i32, i32
  }
  func.func @transform_2(%arg0: i32, %arg1: i32) -> (i32, i32) {
    %c0_i32 = arith.constant 0 : i32
    %c0_i32_0 = arith.constant 0 : i32
    %c0_i32_1 = arith.constant 0 : i32
    return %c0_i32, %c0_i32_0 : i32, i32
  }
  func.func @transform_3(%arg0: i32, %arg1: i32) -> (i32, i32) {
    %c0_i32 = arith.constant 0 : i32
    %c0_i32_0 = arith.constant 0 : i32
    %c0_i32_1 = arith.constant 0 : i32
    return %c0_i32, %c0_i32_0 : i32, i32
  }
  func.func @transform_4(%arg0: i32, %arg1: i32) -> (i32, i32) {
    %c0_i32 = arith.constant 0 : i32
    %c0_i32_0 = arith.constant 0 : i32
    %c0_i32_1 = arith.constant 0 : i32
    return %c0_i32, %c0_i32_0 : i32, i32
  }
  func.func @transform_5(%arg0: i32, %arg1: i32) -> (i32, i32) {
    %c0_i32 = arith.constant 0 : i32
    %c0_i32_0 = arith.constant 0 : i32
    return %arg1, %c0_i32 : i32, i32
  }
}

</mosaic_0001>

<llo_original>
// kernel: mul.1
$region0: #{mul.1}
  #allocation0 [shape = 's32[1]{0}', space=sflag, size = 0x4, scoped, tag = 'scoped memory for mul.1']
  %s0 = inlined_call_operand.vmem [shape: f32[96], index: 0, kind: input, shape index: {}]
  %s1 = inlined_call_operand.vmem [shape: f32[96], index: 1, kind: input, shape index: {}]
  %s2 = inlined_call_operand.vmem [shape: f32[96], index: 2, kind: output, shape index: {}]
  %v3 = vld [vmem:[%s0] sm:$0x1]
  %v4 = vld [vmem:[%s1] sm:$0x1]
  %5 = xla_tuple %v3, %v4
  %6 = xla_tuple %5
  %v7 = vmul.f32 %v3, %v4
  %8 = xla_tuple %v7
  %9 = vst [vmem:[%s2] sm:$0x1] %v7

// kernel: gcn_apply.2
$region0: #{gcn_apply.2}
  #allocation0 [shape = 'u32[]', space=smem, size = 0x4, offset = 0x4, fixed_abs, tag = 'smem constant byte address 0x4 - core index']
  #allocation1 [shape = 'u32[144,128]{1,0:T(1,128)}', space=vmem, size = 0x12000, scoped, tag = 'internal scratch']
  %s0 = inlined_call_operand.vmem [shape: bf16[512,128], index: 0, kind: input, shape index: {}]
  %s1 = inlined_call_operand.vmem [shape: bf16[128,128], index: 1, kind: input, shape index: {}]
  %s2 = inlined_call_operand.vmem [shape: bf16[512,128], index: 2, kind: output, shape index: {}]
  %s3 = sld [smem:[#allocation0]]
  $region18: #{gcn_apply.2} parent=0
    _
  %s5 = ssub.s32 1, %s3
  %s6 = scalar_select 0, %s5, %s3
  // Predicated region
  $region2: #{gcn_apply.2} parent=0 // pred_check
    _
  $region3: #{gcn_apply.2} parent=0 // pred_check_branch
    %8 = sbr.rel (0) target = $region5
  $region4: #{gcn_apply.2} parent=0 // pred_region
    _
  $region5: #{gcn_apply.2} parent=0 // pred_fallthru
    _
  // Predicated region
  $region6: #{gcn_apply.2} parent=0 // pred_check
    _
  $region7: #{gcn_apply.2} parent=0 // pred_check_branch
    %10 = sbr.rel (0) target = $region9
  $region8: #{gcn_apply.2} parent=0 // pred_region
    _
  $region9: #{gcn_apply.2} parent=0 // pred_fallthru
    _
  %v12 = vld [vmem:[%s0] sm:$0xf]
  %v13 = vld [vmem:[%s0 + $0x4] sm:$0xf]
  %v14 = vld [vmem:[%s0 + $0x8] sm:$0xf]
  %v15 = vld [vmem:[%s0 + $0xc] sm:$0xf]
  %v16 = vld [vmem:[%s0 + $0x10] sm:$0xf]
  %v17 = vld [vmem:[%s0 + $0x14] sm:$0xf]
  %v18 = vld [vmem:[%s0 + $0x18] sm:$0xf]
  %v19 = vld [vmem:[%s0 + $0x1c] sm:$0xf]
  %v20 = vld [vmem:[%s0 + $0x20] sm:$0xf]
  %v21 = vld [vmem:[%s0 + $0x24] sm:$0xf]
  %v22 = vld [vmem:[%s0 + $0x28] sm:$0xf]
  %v23 = vld [vmem:[%s0 + $0x2c] sm:$0xf]
  %v24 = vld [vmem:[%s0 + $0x30] sm:$0xf]
  %v25 = vld [vmem:[%s0 + $0x34] sm:$0xf]
  %v26 = vld [vmem:[%s0 + $0x38] sm:$0xf]
  %v27 = vld [vmem:[%s0 + $0x3c] sm:$0xf]
  %v28 = vld [vmem:[%s0 + $0x40] sm:$0xf]
  %v29 = vld [vmem:[%s0 + $0x44] sm:$0xf]
  %v30 = vld [vmem:[%s0 + $0x48] sm:$0xf]
  %v31 = vld [vmem:[%s0 + $0x4c] sm:$0xf]
  %v32 = vld [vmem:[%s0 + $0x50] sm:$0xf]
  %v33 = vld [vmem:[%s0 + $0x54] sm:$0xf]
  %v34 = vld [vmem:[%s0 + $0x58] sm:$0xf]
  %v35 = vld [vmem:[%s0 + $0x5c] sm:$0xf]
  %v36 = vld [vmem:[%s0 + $0x60] sm:$0xf]
  %v37 = vld [vmem:[%s0 + $0x64] sm:$0xf]
  %v38 = vld [vmem:[%s0 + $0x68] sm:$0xf]
  %v39 = vld [vmem:[%s0 + $0x6c] sm:$0xf]
  %v40 = vld [vmem:[%s0 + $0x70] sm:$0xf]
  %v41 = vld [vmem:[%s0 + $0x74] sm:$0xf]
  %v42 = vld [vmem:[%s0 + $0x78] sm:$0xf]
  %v43 = vld [vmem:[%s0 + $0x7c] sm:$0xf]
  %v44 = vld [vmem:[%s0 + $0x80] sm:$0xf]
  %v45 = vld [vmem:[%s0 + $0x84] sm:$0xf]
  %v46 = vld [vmem:[%s0 + $0x88] sm:$0xf]
  %v47 = vld [vmem:[%s0 + $0x8c] sm:$0xf]
  %v48 = vld [vmem:[%s0 + $0x90] sm:$0xf]
  %v49 = vld [vmem:[%s0 + $0x94] sm:$0xf]
  %v50 = vld [vmem:[%s0 + $0x98] sm:$0xf]
  %v51 = vld [vmem:[%s0 + $0x9c] sm:$0xf]
  %v52 = vld [vmem:[%s0 + $0xa0] sm:$0xf]
  %v53 = vld [vmem:[%s0 + $0xa4] sm:$0xf]
  %v54 = vld [vmem:[%s0 + $0xa8] sm:$0xf]
  %v55 = vld [vmem:[%s0 + $0xac] sm:$0xf]
  %v56 = vld [vmem:[%s0 + $0xb0] sm:$0xf]
  %v57 = vld [vmem:[%s0 + $0xb4] sm:$0xf]
  %v58 = vld [vmem:[%s0 + $0xb8] sm:$0xf]
  %v59 = vld [vmem:[%s0 + $0xbc] sm:$0xf]
  %v60 = vld [vmem:[%s0 + $0xc0] sm:$0xf]
  %v61 = vld [vmem:[%s0 + $0xc4] sm:$0xf]
  %v62 = vld [vmem:[%s0 + $0xc8] sm:$0xf]
  %v63 = vld [vmem:[%s0 + $0xcc] sm:$0xf]
  %v64 = vld [vmem:[%s0 + $0xd0] sm:$0xf]
  %v65 = vld [vmem:[%s0 + $0xd4] sm:$0xf]
  %v66 = vld [vmem:[%s0 + $0xd8] sm:$0xf]
  %v67 = vld [vmem:[%s0 + $0xdc] sm:$0xf]
  %v68 = vld [vmem:[%s0 + $0xe0] sm:$0xf]
  %v69 = vld [vmem:[%s0 + $0xe4] sm:$0xf]
  %v70 = vld [vmem:[%s0 + $0xe8] sm:$0xf]
  %v71 = vld [vmem:[%s0 + $0xec] sm:$0xf]
  %v72 = vld [vmem:[%s0 + $0xf0] sm:$0xf]
  %v73 = vld [vmem:[%s0 + $0xf4] sm:$0xf]
  %v74 = vld [vmem:[%s0 + $0xf8] sm:$0xf]
  %v75 = vld [vmem:[%s0 + $0xfc] sm:$0xf]
  %v76 = vld [vmem:[%s1] sm:$0xf]
  %v77 = vld [vmem:[%s1 + $0x4] sm:$0xf]
  %v78 = vld [vmem:[%s1 + $0x8] sm:$0xf]
  %v79 = vld [vmem:[%s1 + $0xc] sm:$0xf]
  %v80 = vld [vmem:[%s1 + $0x10] sm:$0xf]
  %v81 = vld [vmem:[%s1 + $0x14] sm:$0xf]
  %v82 = vld [vmem:[%s1 + $0x18] sm:$0xf]
  %v83 = vld [vmem:[%s1 + $0x1c] sm:$0xf]
  %v84 = vld [vmem:[%s1 + $0x20] sm:$0xf]
  %v85 = vld [vmem:[%s1 + $0x24] sm:$0xf]
  %v86 = vld [vmem:[%s1 + $0x28] sm:$0xf]
  %v87 = vld [vmem:[%s1 + $0x2c] sm:$0xf]
  %v88 = vld [vmem:[%s1 + $0x30] sm:$0xf]
  %v89 = vld [vmem:[%s1 + $0x34] sm:$0xf]
  %v90 = vld [vmem:[%s1 + $0x38] sm:$0xf]
  %v91 = vld [vmem:[%s1 + $0x3c] sm:$0xf]
  %v156 = vunpack.c.l.b16 %v12
  %v157 = vunpack.c.l.b16 %v13
  %v158 = vunpack.c.l.b16 %v14
  %v159 = vunpack.c.l.b16 %v15
  %v160 = vunpack.c.l.b16 %v16
  %v161 = vunpack.c.l.b16 %v17
  %v162 = vunpack.c.l.b16 %v18
  %v163 = vunpack.c.l.b16 %v19
  %v164 = vunpack.c.l.b16 %v20
  %v165 = vunpack.c.l.b16 %v21
  %v166 = vunpack.c.l.b16 %v22
  %v167 = vunpack.c.l.b16 %v23
  %v168 = vunpack.c.l.b16 %v24
  %v169 = vunpack.c.l.b16 %v25
  %v170 = vunpack.c.l.b16 %v26
  %v171 = vunpack.c.l.b16 %v27
  %v172 = vunpack.c.l.b16 %v28
  %v173 = vunpack.c.l.b16 %v29
  %v174 = vunpack.c.l.b16 %v30
  %v175 = vunpack.c.l.b16 %v31
  %v176 = vunpack.c.l.b16 %v32
  %v177 = vunpack.c.l.b16 %v33
  %v178 = vunpack.c.l.b16 %v34
  %v179 = vunpack.c.l.b16 %v35
  %v180 = vunpack.c.l.b16 %v36
  %v181 = vunpack.c.l.b16 %v37
  %v182 = vunpack.c.l.b16 %v38
  %v183 = vunpack.c.l.b16 %v39
  %v184 = vunpack.c.l.b16 %v40
  %v185 = vunpack.c.l.b16 %v41
  %v186 = vunpack.c.l.b16 %v42
  %v187 = vunpack.c.l.b16 %v43
  %v188 = vunpack.c.l.b16 %v44
  %v189 = vunpack.c.l.b16 %v45
  %v190 = vunpack.c.l.b16 %v46
  %v191 = vunpack.c.l.b16 %v47
  %v192 = vunpack.c.l.b16 %v48
  %v193 = vunpack.c.l.b16 %v49
  %v194 = vunpack.c.l.b16 %v50
  %v195 = vunpack.c.l.b16 %v51
  %v196 = vunpack.c.l.b16 %v52
  %v197 = vunpack.c.l.b16 %v53
  %v198 = vunpack.c.l.b16 %v54
  %v199 = vunpack.c.l.b16 %v55
  %v200 = vunpack.c.l.b16 %v56
  %v201 = vunpack.c.l.b16 %v57
  %v202 = vunpack.c.l.b16 %v58
  %v203 = vunpack.c.l.b16 %v59
  %v204 = vunpack.c.l.b16 %v60
  %v205 = vunpack.c.l.b16 %v61
  %v206 = vunpack.c.l.b16 %v62
  %v207 = vunpack.c.l.b16 %v63
  %v208 = vunpack.c.l.b16 %v64
  %v209 = vunpack.c.l.b16 %v65
  %v210 = vunpack.c.l.b16 %v66
  %v211 = vunpack.c.l.b16 %v67
  %v212 = vunpack.c.l.b16 %v68
  %v213 = vunpack.c.l.b16 %v69
  %v214 = vunpack.c.l.b16 %v70
  %v215 = vunpack.c.l.b16 %v71
  %v216 = vunpack.c.l.b16 %v72
  %v217 = vunpack.c.l.b16 %v73
  %v218 = vunpack.c.l.b16 %v74
  %v219 = vunpack.c.l.b16 %v75
  %v220 = vpack.c.b16 %v157, %v156
  %v221 = vpack.c.b16 %v159, %v158
  %v222 = vpack.c.b16 %v161, %v160
  %v223 = vpack.c.b16 %v163, %v162
  %v224 = vpack.c.b16 %v165, %v164
  %v225 = vpack.c.b16 %v167, %v166
  %v226 = vpack.c.b16 %v169, %v168
  %v227 = vpack.c.b16 %v171, %v170
  %v228 = vpack.c.b16 %v173, %v172
  %v229 = vpack.c.b16 %v175, %v174
  %v230 = vpack.c.b16 %v177, %v176
  %v231 = vpack.c.b16 %v179, %v178
  %v232 = vpack.c.b16 %v181, %v180
  %v233 = vpack.c.b16 %v183, %v182
  %v234 = vpack.c.b16 %v185, %v184
  %v235 = vpack.c.b16 %v187, %v186
  %v236 = vpack.c.b16 %v189, %v188
  %v237 = vpack.c.b16 %v191, %v190
  %v238 = vpack.c.b16 %v193, %v192
  %v239 = vpack.c.b16 %v195, %v194
  %v240 = vpack.c.b16 %v197, %v196
  %v241 = vpack.c.b16 %v199, %v198
  %v242 = vpack.c.b16 %v201, %v200
  %v243 = vpack.c.b16 %v203, %v202
  %v244 = vpack.c.b16 %v205, %v204
  %v245 = vpack.c.b16 %v207, %v206
  %v246 = vpack.c.b16 %v209, %v208
  %v247 = vpack.c.b16 %v211, %v210
  %v248 = vpack.c.b16 %v213, %v212
  %v249 = vpack.c.b16 %v215, %v214
  %v250 = vpack.c.b16 %v217, %v216
  %v251 = vpack.c.b16 %v219, %v218
  %v300 = vunpack.c.l.b16 %v76
  %v301 = vunpack.c.l.b16 %v77
  %v302 = vunpack.c.l.b16 %v78
  %v303 = vunpack.c.l.b16 %v79
  %v304 = vunpack.c.l.b16 %v80
  %v305 = vunpack.c.l.b16 %v81
  %v306 = vunpack.c.l.b16 %v82
  %v307 = vunpack.c.l.b16 %v83
  %v308 = vunpack.c.l.b16 %v84
  %v309 = vunpack.c.l.b16 %v85
  %v310 = vunpack.c.l.b16 %v86
  %v311 = vunpack.c.l.b16 %v87
  %v312 = vunpack.c.l.b16 %v88
  %v313 = vunpack.c.l.b16 %v89
  %v314 = vunpack.c.l.b16 %v90
  %v315 = vunpack.c.l.b16 %v91
  %v316 = vpack.c.b16 %v301, %v300
  %v317 = vpack.c.b16 %v303, %v302
  %v318 = vpack.c.b16 %v305, %v304
  %v319 = vpack.c.b16 %v307, %v306
  %v320 = vpack.c.b16 %v309, %v308
  %v321 = vpack.c.b16 %v311, %v310
  %v322 = vpack.c.b16 %v313, %v312
  %v323 = vpack.c.b16 %v315, %v314
  %332 = vmatprep.subr.bf16.mxu0 0
  %333 = vmatpush1.bf16.msra.mxu0 %v316
  %334 = vmatprep.subr.bf16.mxu0 0
  %335 = vmatpush1.bf16.msra.mxu0 %v317
  %336 = vmatprep.subr.bf16.mxu0 0
  %337 = vmatpush1.bf16.msra.mxu0 %v318
  %338 = vmatprep.subr.bf16.mxu0 0
  %339 = vmatpush1.bf16.msra.mxu0 %v319
  %340 = vmatprep.subr.bf16.mxu0 0
  %341 = vmatpush1.bf16.msra.mxu0 %v320
  %342 = vmatprep.subr.bf16.mxu0 0
  %343 = vmatpush1.bf16.msra.mxu0 %v321
  %344 = vmatprep.subr.bf16.mxu0 0
  %345 = vmatpush1.bf16.msra.mxu0 %v322
  %346 = vmatprep.subr.bf16.mxu0 0
  %347 = vmatpush1.bf16.msra.mxu0 %v323
  %348 = vmatprep.subr.bf16.mxu0 0
  %349 = vmatpush1.bf16.msra.mxu0 0
  %350 = vmatprep.subr.bf16.mxu0 0
  %351 = vmatpush1.bf16.msra.mxu0 0
  %352 = vmatprep.subr.bf16.mxu0 0
  %353 = vmatpush1.bf16.msra.mxu0 0
  %354 = vmatprep.subr.bf16.mxu0 0
  %355 = vmatpush1.bf16.msra.mxu0 0
  %356 = vmatprep.subr.bf16.mxu0 0
  %357 = vmatpush1.bf16.msra.mxu0 0
  %358 = vmatprep.subr.bf16.mxu0 0
  %359 = vmatpush1.bf16.msra.mxu0 0
  %360 = vmatprep.subr.bf16.mxu0 0
  %361 = vmatpush1.bf16.msra.mxu0 0
  %362 = vmatprep.subr.bf16.mxu0 0
  %363 = vmatpush1.bf16.msra.mxu0 0
  %364 = vmatprep.mubr.bf16.mxu0 0
  %365 = vmatmul.mubr.bf16.gmra.mrb[0].mxu0 %v220
  %v366 = vpop.f32.mrb[0].mxu0
  %v367 = vadd.f32 0.0, %v366
  %v368 = vpop.f32.mrb[0].mxu0
  %v369 = vpop.f32.mrb[0].mxu0
  %v370 = vadd.f32 0.0, %v369
  %v371 = vpop.f32.mrb[0].mxu0
  %372 = vmatprep.mubr.bf16.mxu0 0
  %373 = vmatmul.mubr.bf16.gmra.mrb[0].mxu0 %v221
  %v374 = vpop.f32.mrb[0].mxu0
  %v375 = vadd.f32 0.0, %v374
  %v376 = vpop.f32.mrb[0].mxu0
  %v377 = vpop.f32.mrb[0].mxu0
  %v378 = vadd.f32 0.0, %v377
  %v379 = vpop.f32.mrb[0].mxu0
  %380 = vmatprep.mubr.bf16.mxu0 0
  %381 = vmatmul.mubr.bf16.gmra.mrb[0].mxu0 %v222
  %v382 = vpop.f32.mrb[0].mxu0
  %v383 = vadd.f32 0.0, %v382
  %v384 = vpop.f32.mrb[0].mxu0
  %v385 = vpop.f32.mrb[0].mxu0
  %v386 = vadd.f32 0.0, %v385
  %v387 = vpop.f32.mrb[0].mxu0
  %388 = vmatprep.mubr.bf16.mxu0 0
  %389 = vmatmul.mubr.bf16.gmra.mrb[0].mxu0 %v223
  %v390 = vpop.f32.mrb[0].mxu0
  %v391 = vadd.f32 0.0, %v390
  %v392 = vpop.f32.mrb[0].mxu0
  %v393 = vpop.f32.mrb[0].mxu0
  %v394 = vadd.f32 0.0, %v393
  %v395 = vpop.f32.mrb[0].mxu0
  %396 = vmatprep.mubr.bf16.mxu0 0
  %397 = vmatmul.mubr.bf16.gmra.mrb[0].mxu0 %v224
  %v398 = vpop.f32.mrb[0].mxu0
  %v399 = vadd.f32 0.0, %v398
  %v400 = vpop.f32.mrb[0].mxu0
  %v401 = vpop.f32.mrb[0].mxu0
  %v402 = vadd.f32 0.0, %v401
  %v403 = vpop.f32.mrb[0].mxu0
  %404 = vmatprep.mubr.bf16.mxu0 0
  %405 = vmatmul.mubr.bf16.gmra.mrb[0].mxu0 %v225
  %v406 = vpop.f32.mrb[0].mxu0
  %v407 = vadd.f32 0.0, %v406
  %v408 = vpop.f32.mrb[0].mxu0
  %v409 = vpop.f32.mrb[0].mxu0
  %v410 = vadd.f32 0.0, %v409
  %v411 = vpop.f32.mrb[0].mxu0
  %412 = vmatprep.mubr.bf16.mxu0 0
  %413 = vmatmul.mubr.bf16.gmra.mrb[0].mxu0 %v226
  %v414 = vpop.f32.mrb[0].mxu0
  %v415 = vadd.f32 0.0, %v414
  %v416 = vpop.f32.mrb[0].mxu0
  %v417 = vpop.f32.mrb[0].mxu0
  %v418 = vadd.f32 0.0, %v417
  %v419 = vpop.f32.mrb[0].mxu0
  %420 = vmatprep.mubr.bf16.mxu0 0
  %421 = vmatmul.mubr.bf16.gmra.mrb[0].mxu0 %v227
  %v422 = vpop.f32.mrb[0].mxu0
  %v423 = vadd.f32 0.0, %v422
  %v424 = vpop.f32.mrb[0].mxu0
  %v425 = vpop.f32.mrb[0].mxu0
  %v426 = vadd.f32 0.0, %v425
  %v427 = vpop.f32.mrb[0].mxu0
  %428 = vmatprep.mubr.bf16.mxu0 0
  %429 = vmatmul.mubr.bf16.gmra.mrb[0].mxu0 %v228
  %v430 = vpop.f32.mrb[0].mxu0
  %v431 = vadd.f32 0.0, %v430
  %v432 = vpop.f32.mrb[0].mxu0
  %v433 = vpop.f32.mrb[0].mxu0
  %v434 = vadd.f32 0.0, %v433
  %v435 = vpop.f32.mrb[0].mxu0
  %436 = vmatprep.mubr.bf16.mxu0 0
  %437 = vmatmul.mubr.bf16.gmra.mrb[0].mxu0 %v229
  %v438 = vpop.f32.mrb[0].mxu0
  %v439 = vadd.f32 0.0, %v438
  %v440 = vpop.f32.mrb[0].mxu0
  %v441 = vpop.f32.mrb[0].mxu0
  %v442 = vadd.f32 0.0, %v441
  %v443 = vpop.f32.mrb[0].mxu0
  %444 = vmatprep.mubr.bf16.mxu0 0
  %445 = vmatmul.mubr.bf16.gmra.mrb[0].mxu0 %v230
  %v446 = vpop.f32.mrb[0].mxu0
  %v447 = vadd.f32 0.0, %v446
  %v448 = vpop.f32.mrb[0].mxu0
  %v449 = vpop.f32.mrb[0].mxu0
  %v450 = vadd.f32 0.0, %v449
  %v451 = vpop.f32.mrb[0].mxu0
  %452 = vmatprep.mubr.bf16.mxu0 0
  %453 = vmatmul.mubr.bf16.gmra.mrb[0].mxu0 %v231
  %v454 = vpop.f32.mrb[0].mxu0
  %v455 = vadd.f32 0.0, %v454
  %v456 = vpop.f32.mrb[0].mxu0
  %v457 = vpop.f32.mrb[0].mxu0
  %v458 = vadd.f32 0.0, %v457
  %v459 = vpop.f32.mrb[0].mxu0
  %460 = vmatprep.mubr.bf16.mxu0 0
  %461 = vmatmul.mubr.bf16.gmra.mrb[0].mxu0 %v232
  %v462 = vpop.f32.mrb[0].mxu0
  %v463 = vadd.f32 0.0, %v462
  %v464 = vpop.f32.mrb[0].mxu0
  %v465 = vpop.f32.mrb[0].mxu0
  %v466 = vadd.f32 0.0, %v465
  %v467 = vpop.f32.mrb[0].mxu0
  %468 = vmatprep.mubr.bf16.mxu0 0
  %469 = vmatmul.mubr.bf16.gmra.mrb[0].mxu0 %v233
  %v470 = vpop.f32.mrb[0].mxu0
  %v471 = vadd.f32 0.0, %v470
  %v472 = vpop.f32.mrb[0].mxu0
  %v473 = vpop.f32.mrb[0].mxu0
  %v474 = vadd.f32 0.0, %v473
  %v475 = vpop.f32.mrb[0].mxu0
  %476 = vmatprep.mubr.bf16.mxu0 0
  %477 = vmatmul.mubr.bf16.gmra.mrb[0].mxu0 %v234
  %v478 = vpop.f32.mrb[0].mxu0
  %v479 = vadd.f32 0.0, %v478
  %v480 = vpop.f32.mrb[0].mxu0
  %v481 = vpop.f32.mrb[0].mxu0
  %v482 = vadd.f32 0.0, %v481
  %v483 = vpop.f32.mrb[0].mxu0
  %484 = vmatprep.mubr.bf16.mxu0 0
  %485 = vmatmul.mubr.bf16.gmra.mrb[0].mxu0 %v235
  %v486 = vpop.f32.mrb[0].mxu0
  %v487 = vadd.f32 0.0, %v486
  %v488 = vpop.f32.mrb[0].mxu0
  %v489 = vpop.f32.mrb[0].mxu0
  %v490 = vadd.f32 0.0, %v489
  %v491 = vpop.f32.mrb[0].mxu0
  %492 = vmatprep.mubr.bf16.mxu0 0
  %493 = vmatmul.mubr.bf16.gmra.mrb[0].mxu0 %v236
  %v494 = vpop.f32.mrb[0].mxu0
  %v495 = vadd.f32 0.0, %v494
  %v496 = vpop.f32.mrb[0].mxu0
  %v497 = vpop.f32.mrb[0].mxu0
  %v498 = vadd.f32 0.0, %v497
  %v499 = vpop.f32.mrb[0].mxu0
  %500 = vmatprep.mubr.bf16.mxu0 0
  %501 = vmatmul.mubr.bf16.gmra.mrb[0].mxu0 %v237
  %v502 = vpop.f32.mrb[0].mxu0
  %v503 = vadd.f32 0.0, %v502
  %v504 = vpop.f32.mrb[0].mxu0
  %v505 = vpop.f32.mrb[0].mxu0
  %v506 = vadd.f32 0.0, %v505
  %v507 = vpop.f32.mrb[0].mxu0
  %508 = vmatprep.mubr.bf16.mxu0 0
  %509 = vmatmul.mubr.bf16.gmra.mrb[0].mxu0 %v238
  %v510 = vpop.f32.mrb[0].mxu0
  %v511 = vadd.f32 0.0, %v510
  %v512 = vpop.f32.mrb[0].mxu0
  %v513 = vpop.f32.mrb[0].mxu0
  %v514 = vadd.f32 0.0, %v513
  %v515 = vpop.f32.mrb[0].mxu0
  %516 = vmatprep.mubr.bf16.mxu0 0
  %517 = vmatmul.mubr.bf16.gmra.mrb[0].mxu0 %v239
  %v518 = vpop.f32.mrb[0].mxu0
  %v519 = vadd.f32 0.0, %v518
  %v520 = vpop.f32.mrb[0].mxu0
  %v521 = vpop.f32.mrb[0].mxu0
  %v522 = vadd.f32 0.0, %v521
  %v523 = vpop.f32.mrb[0].mxu0
  %524 = vmatprep.mubr.bf16.mxu0 0
  %525 = vmatmul.mubr.bf16.gmra.mrb[0].mxu0 %v240
  %v526 = vpop.f32.mrb[0].mxu0
  %v527 = vadd.f32 0.0, %v526
  %v528 = vpop.f32.mrb[0].mxu0
  %v529 = vpop.f32.mrb[0].mxu0
  %v530 = vadd.f32 0.0, %v529
  %v531 = vpop.f32.mrb[0].mxu0
  %532 = vmatprep.mubr.bf16.mxu0 0
  %533 = vmatmul.mubr.bf16.gmra.mrb[0].mxu0 %v241
  %v534 = vpop.f32.mrb[0].mxu0
  %v535 = vadd.f32 0.0, %v534
  %v536 = vpop.f32.mrb[0].mxu0
  %v537 = vpop.f32.mrb[0].mxu0
  %v538 = vadd.f32 0.0, %v537
  %v539 = vpop.f32.mrb[0].mxu0
  %540 = vmatprep.mubr.bf16.mxu0 0
  %541 = vmatmul.mubr.bf16.gmra.mrb[0].mxu0 %v242
  %v542 = vpop.f32.mrb[0].mxu0
  %v543 = vadd.f32 0.0, %v542
  %v544 = vpop.f32.mrb[0].mxu0
  %v545 = vpop.f32.mrb[0].mxu0
  %v546 = vadd.f32 0.0, %v545
  %v547 = vpop.f32.mrb[0].mxu0
  %548 = vmatprep.mubr.bf16.mxu0 0
  %549 = vmatmul.mubr.bf16.gmra.mrb[0].mxu0 %v243
  %v550 = vpop.f32.mrb[0].mxu0
  %v551 = vadd.f32 0.0, %v550
  %v552 = vpop.f32.mrb[0].mxu0
  %v553 = vpop.f32.mrb[0].mxu0
  %v554 = vadd.f32 0.0, %v553
  %v555 = vpop.f32.mrb[0].mxu0
  %556 = vmatprep.mubr.bf16.mxu0 0
  %557 = vmatmul.mubr.bf16.gmra.mrb[0].mxu0 %v244
  %v558 = vpop.f32.mrb[0].mxu0
  %v559 = vadd.f32 0.0, %v558
  %v560 = vpop.f32.mrb[0].mxu0
  %v561 = vpop.f32.mrb[0].mxu0
  %v562 = vadd.f32 0.0, %v561
  %v563 = vpop.f32.mrb[0].mxu0
  %564 = vmatprep.mubr.bf16.mxu0 0
  %565 = vmatmul.mubr.bf16.gmra.mrb[0].mxu0 %v245
  %v566 = vpop.f32.mrb[0].mxu0
  %v567 = vadd.f32 0.0, %v566
  %v568 = vpop.f32.mrb[0].mxu0
  %v569 = vpop.f32.mrb[0].mxu0
  %v570 = vadd.f32 0.0, %v569
  %v571 = vpop.f32.mrb[0].mxu0
  %572 = vmatprep.mubr.bf16.mxu0 0
  %573 = vmatmul.mubr.bf16.gmra.mrb[0].mxu0 %v246
  %v574 = vpop.f32.mrb[0].mxu0
  %v575 = vadd.f32 0.0, %v574
  %v576 = vpop.f32.mrb[0].mxu0
  %v577 = vpop.f32.mrb[0].mxu0
  %v578 = vadd.f32 0.0, %v577
  %v579 = vpop.f32.mrb[0].mxu0
  %580 = vmatprep.mubr.bf16.mxu0 0
  %581 = vmatmul.mubr.bf16.gmra.mrb[0].mxu0 %v247
  %v582 = vpop.f32.mrb[0].mxu0
  %v583 = vadd.f32 0.0, %v582
  %v584 = vpop.f32.mrb[0].mxu0
  %v585 = vpop.f32.mrb[0].mxu0
  %v586 = vadd.f32 0.0, %v585
  %v587 = vpop.f32.mrb[0].mxu0
  %588 = vmatprep.mubr.bf16.mxu0 0
  %589 = vmatmul.mubr.bf16.gmra.mrb[0].mxu0 %v248
  %v590 = vpop.f32.mrb[0].mxu0
  %v591 = vadd.f32 0.0, %v590
  %v592 = vpop.f32.mrb[0].mxu0
  %v593 = vpop.f32.mrb[0].mxu0
  %v594 = vadd.f32 0.0, %v593
  %v595 = vpop.f32.mrb[0].mxu0
  %596 = vmatprep.mubr.bf16.mxu0 0
  %597 = vmatmul.mubr.bf16.gmra.mrb[0].mxu0 %v249
  %v598 = vpop.f32.mrb[0].mxu0
  %v599 = vadd.f32 0.0, %v598
  %v600 = vpop.f32.mrb[0].mxu0
  %v601 = vpop.f32.mrb[0].mxu0
  %v602 = vadd.f32 0.0, %v601
  %v603 = vpop.f32.mrb[0].mxu0
  %604 = vmatprep.mubr.bf16.mxu0 0
  %605 = vmatmul.mubr.bf16.gmra.mrb[0].mxu0 %v250
  %v606 = vpop.f32.mrb[0].mxu0
  %v607 = vadd.f32 0.0, %v606
  %v608 = vpop.f32.mrb[0].mxu0
  %v609 = vpop.f32.mrb[0].mxu0
  %v610 = vadd.f32 0.0, %v609
  %v611 = vpop.f32.mrb[0].mxu0
  %612 = vmatprep.mubr.bf16.mxu0 0
  %613 = vmatmul.mubr.bf16.gmra.mrb[0].mxu0 %v251
  %v614 = vpop.f32.mrb[0].mxu0
  %v615 = vadd.f32 0.0, %v614
  %v616 = vpop.f32.mrb[0].mxu0
  %v617 = vpop.f32.mrb[0].mxu0
  %v618 = vadd.f32 0.0, %v617
  %v619 = vpop.f32.mrb[0].mxu0
  %620 = vdwg.mxu0
  %v621 = vpack.c.bf16 %v370, %v367
  %v622 = vpack.c.bf16 %v378, %v375
  %v623 = vpack.c.bf16 %v386, %v383
  %v624 = vpack.c.bf16 %v394, %v391
  %v625 = vpack.c.bf16 %v402, %v399
  %v626 = vpack.c.bf16 %v410, %v407
  %v627 = vpack.c.bf16 %v418, %v415
  %v628 = vpack.c.bf16 %v426, %v423
  %v629 = vpack.c.bf16 %v434, %v431
  %v630 = vpack.c.bf16 %v442, %v439
  %v631 = vpack.c.bf16 %v450, %v447
  %v632 = vpack.c.bf16 %v458, %v455
  %v633 = vpack.c.bf16 %v466, %v463
  %v634 = vpack.c.bf16 %v474, %v471
  %v635 = vpack.c.bf16 %v482, %v479
  %v636 = vpack.c.bf16 %v490, %v487
  %v637 = vpack.c.bf16 %v498, %v495
  %v638 = vpack.c.bf16 %v506, %v503
  %v639 = vpack.c.bf16 %v514, %v511
  %v640 = vpack.c.bf16 %v522, %v519
  %v641 = vpack.c.bf16 %v530, %v527
  %v642 = vpack.c.bf16 %v538, %v535
  %v643 = vpack.c.bf16 %v546, %v543
  %v644 = vpack.c.bf16 %v554, %v551
  %v645 = vpack.c.bf16 %v562, %v559
  %v646 = vpack.c.bf16 %v570, %v567
  %v647 = vpack.c.bf16 %v578, %v575
  %v648 = vpack.c.bf16 %v586, %v583
  %v649 = vpack.c.bf16 %v594, %v591
  %v650 = vpack.c.bf16 %v602, %v599
  %v651 = vpack.c.bf16 %v610, %v607
  %v652 = vpack.c.bf16 %v618, %v615
  %v685 = vunpack.c.l.b16 %v621
  %v686 = vunpack.c.h.b16 %v621
  %v687 = vunpack.c.l.b16 %v622
  %v688 = vunpack.c.h.b16 %v622
  %v689 = vunpack.c.l.b16 %v623
  %v690 = vunpack.c.h.b16 %v623
  %v691 = vunpack.c.l.b16 %v624
  %v692 = vunpack.c.h.b16 %v624
  %v693 = vunpack.c.l.b16 %v625
  %v694 = vunpack.c.h.b16 %v625
  %v695 = vunpack.c.l.b16 %v626
  %v696 = vunpack.c.h.b16 %v626
  %v697 = vunpack.c.l.b16 %v627
  %v698 = vunpack.c.h.b16 %v627
  %v699 = vunpack.c.l.b16 %v628
  %v700 = vunpack.c.h.b16 %v628
  %v701 = vunpack.c.l.b16 %v629
  %v702 = vunpack.c.h.b16 %v629
  %v703 = vunpack.c.l.b16 %v630
  %v704 = vunpack.c.h.b16 %v630
  %v705 = vunpack.c.l.b16 %v631
  %v706 = vunpack.c.h.b16 %v631
  %v707 = vunpack.c.l.b16 %v632
  %v708 = vunpack.c.h.b16 %v632
  %v709 = vunpack.c.l.b16 %v633
  %v710 = vunpack.c.h.b16 %v633
  %v711 = vunpack.c.l.b16 %v634
  %v712 = vunpack.c.h.b16 %v634
  %v713 = vunpack.c.l.b16 %v635
  %v714 = vunpack.c.h.b16 %v635
  %v715 = vunpack.c.l.b16 %v636
  %v716 = vunpack.c.h.b16 %v636
  %v717 = vunpack.c.l.b16 %v637
  %v718 = vunpack.c.h.b16 %v637
  %v719 = vunpack.c.l.b16 %v638
  %v720 = vunpack.c.h.b16 %v638
  %v721 = vunpack.c.l.b16 %v639
  %v722 = vunpack.c.h.b16 %v639
  %v723 = vunpack.c.l.b16 %v640
  %v724 = vunpack.c.h.b16 %v640
  %v725 = vunpack.c.l.b16 %v641
  %v726 = vunpack.c.h.b16 %v641
  %v727 = vunpack.c.l.b16 %v642
  %v728 = vunpack.c.h.b16 %v642
  %v729 = vunpack.c.l.b16 %v643
  %v730 = vunpack.c.h.b16 %v643
  %v731 = vunpack.c.l.b16 %v644
  %v732 = vunpack.c.h.b16 %v644
  %v733 = vunpack.c.l.b16 %v645
  %v734 = vunpack.c.h.b16 %v645
  %v735 = vunpack.c.l.b16 %v646
  %v736 = vunpack.c.h.b16 %v646
  %v737 = vunpack.c.l.b16 %v647
  %v738 = vunpack.c.h.b16 %v647
  %v739 = vunpack.c.l.b16 %v648
  %v740 = vunpack.c.h.b16 %v648
  %v741 = vunpack.c.l.b16 %v649
  %v742 = vunpack.c.h.b16 %v649
  %v743 = vunpack.c.l.b16 %v650
  %v744 = vunpack.c.h.b16 %v650
  %v745 = vunpack.c.l.b16 %v651
  %v746 = vunpack.c.h.b16 %v651
  %v747 = vunpack.c.l.b16 %v652
  %v748 = vunpack.c.h.b16 %v652
  %v749 = vpack.c.b16 %v685, %v685
  %v750 = vpack.c.b16 %v686, %v686
  %v751 = vpack.c.b16 %v687, %v687
  %v752 = vpack.c.b16 %v688, %v688
  %v753 = vpack.c.b16 %v689, %v689
  %v754 = vpack.c.b16 %v690, %v690
  %v755 = vpack.c.b16 %v691, %v691
  %v756 = vpack.c.b16 %v692, %v692
  %v757 = vpack.c.b16 %v693, %v693
  %v758 = vpack.c.b16 %v694, %v694
  %v759 = vpack.c.b16 %v695, %v695
  %v760 = vpack.c.b16 %v696, %v696
  %v761 = vpack.c.b16 %v697, %v697
  %v762 = vpack.c.b16 %v698, %v698
  %v763 = vpack.c.b16 %v699, %v699
  %v764 = vpack.c.b16 %v700, %v700
  %v765 = vpack.c.b16 %v701, %v701
  %v766 = vpack.c.b16 %v702, %v702
  %v767 = vpack.c.b16 %v703, %v703
  %v768 = vpack.c.b16 %v704, %v704
  %v769 = vpack.c.b16 %v705, %v705
  %v770 = vpack.c.b16 %v706, %v706
  %v771 = vpack.c.b16 %v707, %v707
  %v772 = vpack.c.b16 %v708, %v708
  %v773 = vpack.c.b16 %v709, %v709
  %v774 = vpack.c.b16 %v710, %v710
  %v775 = vpack.c.b16 %v711, %v711
  %v776 = vpack.c.b16 %v712, %v712
  %v777 = vpack.c.b16 %v713, %v713
  %v778 = vpack.c.b16 %v714, %v714
  %v779 = vpack.c.b16 %v715, %v715
  %v780 = vpack.c.b16 %v716, %v716
  %v781 = vpack.c.b16 %v717, %v717
  %v782 = vpack.c.b16 %v718, %v718
  %v783 = vpack.c.b16 %v719, %v719
  %v784 = vpack.c.b16 %v720, %v720
  %v785 = vpack.c.b16 %v721, %v721
  %v786 = vpack.c.b16 %v722, %v722
  %v787 = vpack.c.b16 %v723, %v723
  %v788 = vpack.c.b16 %v724, %v724
  %v789 = vpack.c.b16 %v725, %v725
  %v790 = vpack.c.b16 %v726, %v726
  %v791 = vpack.c.b16 %v727, %v727
  %v792 = vpack.c.b16 %v728, %v728
  %v793 = vpack.c.b16 %v729, %v729
  %v794 = vpack.c.b16 %v730, %v730
  %v795 = vpack.c.b16 %v731, %v731
  %v796 = vpack.c.b16 %v732, %v732
  %v797 = vpack.c.b16 %v733, %v733
  %v798 = vpack.c.b16 %v734, %v734
  %v799 = vpack.c.b16 %v735, %v735
  %v800 = vpack.c.b16 %v736, %v736
  %v801 = vpack.c.b16 %v737, %v737
  %v802 = vpack.c.b16 %v738, %v738
  %v803 = vpack.c.b16 %v739, %v739
  %v804 = vpack.c.b16 %v740, %v740
  %v805 = vpack.c.b16 %v741, %v741
  %v806 = vpack.c.b16 %v742, %v742
  %v807 = vpack.c.b16 %v743, %v743
  %v808 = vpack.c.b16 %v744, %v744
  %v809 = vpack.c.b16 %v745, %v745
  %v810 = vpack.c.b16 %v746, %v746
  %v811 = vpack.c.b16 %v747, %v747
  %v812 = vpack.c.b16 %v748, %v748
  %877 = vst [vmem:[%s2] sm:$0xf] %v749
  %878 = vst [vmem:[%s2 + $0x4] sm:$0xf] %v750
  %879 = vst [vmem:[%s2 + $0x8] sm:$0xf] %v751
  %880 = vst [vmem:[%s2 + $0xc] sm:$0xf] %v752
  %881 = vst [vmem:[%s2 + $0x10] sm:$0xf] %v753
  %882 = vst [vmem:[%s2 + $0x14] sm:$0xf] %v754
  %883 = vst [vmem:[%s2 + $0x18] sm:$0xf] %v755
  %884 = vst [vmem:[%s2 + $0x1c] sm:$0xf] %v756
  %885 = vst [vmem:[%s2 + $0x20] sm:$0xf] %v757
  %886 = vst [vmem:[%s2 + $0x24] sm:$0xf] %v758
  %887 = vst [vmem:[%s2 + $0x28] sm:$0xf] %v759
  %888 = vst [vmem:[%s2 + $0x2c] sm:$0xf] %v760
  %889 = vst [vmem:[%s2 + $0x30] sm:$0xf] %v761
  %890 = vst [vmem:[%s2 + $0x34] sm:$0xf] %v762
  %891 = vst [vmem:[%s2 + $0x38] sm:$0xf] %v763
  %892 = vst [vmem:[%s2 + $0x3c] sm:$0xf] %v764
  %893 = vst [vmem:[%s2 + $0x40] sm:$0xf] %v765
  %894 = vst [vmem:[%s2 + $0x44] sm:$0xf] %v766
  %895 = vst [vmem:[%s2 + $0x48] sm:$0xf] %v767
  %896 = vst [vmem:[%s2 + $0x4c] sm:$0xf] %v768
  %897 = vst [vmem:[%s2 + $0x50] sm:$0xf] %v769
  %898 = vst [vmem:[%s2 + $0x54] sm:$0xf] %v770
  %899 = vst [vmem:[%s2 + $0x58] sm:$0xf] %v771
  %900 = vst [vmem:[%s2 + $0x5c] sm:$0xf] %v772
  %901 = vst [vmem:[%s2 + $0x60] sm:$0xf] %v773
  %902 = vst [vmem:[%s2 + $0x64] sm:$0xf] %v774
  %903 = vst [vmem:[%s2 + $0x68] sm:$0xf] %v775
  %904 = vst [vmem:[%s2 + $0x6c] sm:$0xf] %v776
  %905 = vst [vmem:[%s2 + $0x70] sm:$0xf] %v777
  %906 = vst [vmem:[%s2 + $0x74] sm:$0xf] %v778
  %907 = vst [vmem:[%s2 + $0x78] sm:$0xf] %v779
  %908 = vst [vmem:[%s2 + $0x7c] sm:$0xf] %v780
  %909 = vst [vmem:[%s2 + $0x80] sm:$0xf] %v781
  %910 = vst [vmem:[%s2 + $0x84] sm:$0xf] %v782
  %911 = vst [vmem:[%s2 + $0x88] sm:$0xf] %v783
  %912 = vst [vmem:[%s2 + $0x8c] sm:$0xf] %v784
  %913 = vst [vmem:[%s2 + $0x90] sm:$0xf] %v785
  %914 = vst [vmem:[%s2 + $0x94] sm:$0xf] %v786
  %915 = vst [vmem:[%s2 + $0x98] sm:$0xf] %v787
  %916 = vst [vmem:[%s2 + $0x9c] sm:$0xf] %v788
  %917 = vst [vmem:[%s2 + $0xa0] sm:$0xf] %v789
  %918 = vst [vmem:[%s2 + $0xa4] sm:$0xf] %v790
  %919 = vst [vmem:[%s2 + $0xa8] sm:$0xf] %v791
  %920 = vst [vmem:[%s2 + $0xac] sm:$0xf] %v792
  %921 = vst [vmem:[%s2 + $0xb0] sm:$0xf] %v793
  %922 = vst [vmem:[%s2 + $0xb4] sm:$0xf] %v794
  %923 = vst [vmem:[%s2 + $0xb8] sm:$0xf] %v795
  %924 = vst [vmem:[%s2 + $0xbc] sm:$0xf] %v796
  %925 = vst [vmem:[%s2 + $0xc0] sm:$0xf] %v797
  %926 = vst [vmem:[%s2 + $0xc4] sm:$0xf] %v798
  %927 = vst [vmem:[%s2 + $0xc8] sm:$0xf] %v799
  %928 = vst [vmem:[%s2 + $0xcc] sm:$0xf] %v800
  %929 = vst [vmem:[%s2 + $0xd0] sm:$0xf] %v801
  %930 = vst [vmem:[%s2 + $0xd4] sm:$0xf] %v802
  %931 = vst [vmem:[%s2 + $0xd8] sm:$0xf] %v803
  %932 = vst [vmem:[%s2 + $0xdc] sm:$0xf] %v804
  %933 = vst [vmem:[%s2 + $0xe0] sm:$0xf] %v805
  %934 = vst [vmem:[%s2 + $0xe4] sm:$0xf] %v806
  %935 = vst [vmem:[%s2 + $0xe8] sm:$0xf] %v807
  %936 = vst [vmem:[%s2 + $0xec] sm:$0xf] %v808
  %937 = vst [vmem:[%s2 + $0xf0] sm:$0xf] %v809
  %938 = vst [vmem:[%s2 + $0xf4] sm:$0xf] %v810
  %939 = vst [vmem:[%s2 + $0xf8] sm:$0xf] %v811
  %940 = vst [vmem:[%s2 + $0xfc] sm:$0xf] %v812
  // Predicated region
  $region10: #{gcn_apply.2} parent=0 // pred_check
    _
  $region11: #{gcn_apply.2} parent=0 // pred_check_branch
    %942 = sbr.rel (0) target = $region13
  $region12: #{gcn_apply.2} parent=0 // pred_region
    _
  $region13: #{gcn_apply.2} parent=0 // pred_fallthru
    _
  // Predicated region
  $region14: #{gcn_apply.2} parent=0 // pred_check
    _
  $region15: #{gcn_apply.2} parent=0 // pred_check_branch
    %944 = sbr.rel (0) target = $region17
  $region16: #{gcn_apply.2} parent=0 // pred_region
    _
  $region17: #{gcn_apply.2} parent=0 // pred_fallthru
    _

// kernel: gcn_apply.3
$region0: #{gcn_apply.3}
  #allocation0 [shape = 'u32[]', space=smem, size = 0x4, offset = 0x4, fixed_abs, tag = 'smem constant byte address 0x4 - core index']
  #allocation1 [shape = 'u32[144,128]{1,0:T(1,128)}', space=vmem, size = 0x12000, scoped, tag = 'internal scratch']
  #allocation2 [shape = 'bf16[512,512]{1,0:T(16,128)(2,1)}', space=vmem, size = 0x80000, scoped, tag = 'scratch operand']
  #allocation3 [shape = 'bf16[512,128]{1,0:T(16,128)(2,1)}', space=vmem, size = 0x20000, scoped, tag = 'scratch operand']
  #allocation5 [shape = 's32[]', space=sflag, size = 0x4, offset = 0, fixed_abs, tag = 'sflag constant byte address 0x0 - dummy sync flag']
  %s0 = inlined_call_operand.vmem [shape: bf16[512,512], index: 0, kind: input, shape index: {}]
  %s1 = inlined_call_operand.vmem [shape: bf16[512,128], index: 1, kind: input, shape index: {}]
  %s2 = inlined_call_operand.vmem [shape: f32[1,128], index: 2, kind: input, shape index: {}]
  %s3 = inlined_call_operand.vmem [shape: bf16[128,128], index: 3, kind: input, shape index: {}]
  %s4 = inlined_call_operand.vmem [shape: f32[1,128], index: 4, kind: input, shape index: {}]
  %s5 = inlined_call_operand.vmem [shape: f32[512,128], index: 5, kind: output, shape index: {}]
  %s6 = sld [smem:[#allocation0]]
  $region99: #{gcn_apply.3} parent=0
    _
  %s8 = ssub.s32 1, %s6
  %s9 = scalar_select 0, %s8, %s6
  loop: start=0, step=1, limit=4
  $region2: #{gcn_apply.3} parent=0 // loop_pre_header
    _
  $region3: #{gcn_apply.3} parent=0 // loop_header
    %s11 = sphi 0, %s15
    %p12 = scmp.ge.s32.totalorder %s11, 4
    %s18 = sphi 0, %s30
    %s19 = sphi 0, %s26
    %s20 = sphi 0, %s18
    %s21 = sphi 0, %s19
    %s22 = sphi 0, %s20
    %s23 = sphi 0, %s21
    %s31 = sphi 0, %s31
    %s33 = sphi 0, %s31
    %s34 = sphi 0, %s33
    %s48 = sphi 0, %s34
    %s52 = sphi 0, %s52
    %s54 = sphi 0, %s52
    %s55 = sphi 0, %s54
    %s69 = sphi 0, %s55
    %s73 = sphi 0, %s73
    %s75 = sphi 0, %s73
    %s76 = sphi 0, %s75
    %s90 = sphi 0, %s76
    %s94 = sphi 0, %s94
    %s96 = sphi 0, %s94
    %s97 = sphi 0, %s96
    %s111 = sphi 0, %s97
    %s117 = sphi 0, %s119
    %s120 = sphi 0, %s117
    %s121 = sphi 0, %s120
    %s137 = sphi 0, %s121
  $region4: #{gcn_apply.3} parent=0 // loop_header_branch
    %14 = sbr.rel (%p12) target = $region8
  $region5: #{gcn_apply.3} parent=0 // loop_body
    %s16 = ssub.s32 %s11, 1
    %s17 = ssub.s32 %s11, 2
    %s24 = sadd.s32 1, %s19
    %p25 = scmp.ge.s32.totalorder %s24, 1
    %s26 = scalar_select %p25, 0, %s24
    %s27 = sadd.s32 1, %s18
    %s28 = scalar_select %p25, %s27, %s18
    %p29 = scmp.ge.s32.totalorder %s28, 2
    %s30 = scalar_select %p29, 0, %s28
    %s32 = sadd.s32 %s31, 1
    %p35 = scmp.eq.s32.totalorder %s11, 1
    %p36 = scmp.ne.s32.totalorder %s31, %s33
    %p37 = scmp.eq.s32.totalorder %s11, 0
    %p38 = por %p36, %p37
    %p39 = scmp.ne.s32.totalorder %s31, %s33
    %p40 = scmp.eq.s32.totalorder %s16, 1
    %p41 = por %p39, %p40
    %p42 = scmp.ne.s32.totalorder %s33, %s34
    %p43 = scmp.eq.s32.totalorder %s16, 0
    %p44 = por %p42, %p43
    %p45 = scmp.ne.s32.totalorder %s33, %s34
    %p46 = scmp.eq.s32.totalorder %s17, 1
    %p47 = por %p45, %p46
    %p49 = scmp.ne.s32.totalorder %s34, %s48
    %p50 = scmp.eq.s32.totalorder %s17, 0
    %p51 = por %p49, %p50
    %s53 = sadd.s32 %s52, 1
    %p56 = scmp.eq.s32.totalorder %s11, 1
    %p57 = scmp.ne.s32.totalorder %s52, %s54
    %p58 = scmp.eq.s32.totalorder %s11, 0
    %p59 = por %p57, %p58
    %p60 = scmp.ne.s32.totalorder %s52, %s54
    %p61 = scmp.eq.s32.totalorder %s16, 1
    %p62 = por %p60, %p61
    %p63 = scmp.ne.s32.totalorder %s54, %s55
    %p64 = scmp.eq.s32.totalorder %s16, 0
    %p65 = por %p63, %p64
    %p66 = scmp.ne.s32.totalorder %s54, %s55
    %p67 = scmp.eq.s32.totalorder %s17, 1
    %p68 = por %p66, %p67
    %p70 = scmp.ne.s32.totalorder %s55, %s69
    %p71 = scmp.eq.s32.totalorder %s17, 0
    %p72 = por %p70, %p71
    %s74 = sadd.s32 %s73, 1
    %p77 = scmp.eq.s32.totalorder %s11, 1
    %p78 = scmp.ne.s32.totalorder %s73, %s75
    %p79 = scmp.eq.s32.totalorder %s11, 0
    %p80 = por %p78, %p79
    %p81 = scmp.ne.s32.totalorder %s73, %s75
    %p82 = scmp.eq.s32.totalorder %s16, 1
    %p83 = por %p81, %p82
    %p84 = scmp.ne.s32.totalorder %s75, %s76
    %p85 = scmp.eq.s32.totalorder %s16, 0
    %p86 = por %p84, %p85
    %p87 = scmp.ne.s32.totalorder %s75, %s76
    %p88 = scmp.eq.s32.totalorder %s17, 1
    %p89 = por %p87, %p88
    %p91 = scmp.ne.s32.totalorder %s76, %s90
    %p92 = scmp.eq.s32.totalorder %s17, 0
    %p93 = por %p91, %p92
    %s95 = sadd.s32 %s94, 1
    %p98 = scmp.eq.s32.totalorder %s11, 1
    %p99 = scmp.ne.s32.totalorder %s94, %s96
    %p100 = scmp.eq.s32.totalorder %s11, 0
    %p101 = por %p99, %p100
    %p102 = scmp.ne.s32.totalorder %s94, %s96
    %p103 = scmp.eq.s32.totalorder %s16, 1
    %p104 = por %p102, %p103
    %p105 = scmp.ne.s32.totalorder %s96, %s97
    %p106 = scmp.eq.s32.totalorder %s16, 0
    %p107 = por %p105, %p106
    %p108 = scmp.ne.s32.totalorder %s96, %s97
    %p109 = scmp.eq.s32.totalorder %s17, 1
    %p110 = por %p108, %p109
    %p112 = scmp.ne.s32.totalorder %s97, %s111
    %p113 = scmp.eq.s32.totalorder %s17, 0
    %p114 = por %p112, %p113
    %s115 = ssub.s32 %s19, %s26
    %p116 = scmp.eq.s32.totalorder %s115, 0
    %s118 = sadd.s32 %s117, 1
    %s119 = scalar_select %p116, %s117, %s118
    %p122 = pneg %p116
    %p123 = scmp.eq.s32.totalorder %s11, 1
    %p124 = por %p122, %p123
    %p125 = scmp.ne.s32.totalorder %s117, %s120
    %p126 = scmp.eq.s32.totalorder %s11, 0
    %p127 = por %p125, %p126
    %p128 = scmp.ne.s32.totalorder %s117, %s120
    %p129 = scmp.eq.s32.totalorder %s16, 1
    %p130 = por %p128, %p129
    %p131 = scmp.ne.s32.totalorder %s120, %s121
    %p132 = scmp.eq.s32.totalorder %s16, 0
    %p133 = por %p131, %p132
    %p134 = scmp.ne.s32.totalorder %s120, %s121
    %p135 = scmp.eq.s32.totalorder %s17, 1
    %p136 = por %p134, %p135
    %p138 = scmp.ne.s32.totalorder %s121, %s137
    %p139 = scmp.eq.s32.totalorder %s17, 0
    %p140 = por %p138, %p139
    %p141 = scmp.le.s32.totalorder 1, %s11
    %p142 = scmp.lt.s32.totalorder %s11, 3
    %p143 = pnand %p141, %p142
    %p144 = pneg %p143
    // Predicated region
    $region9: #{gcn_apply.3} parent=5 // pred_check
      _
    $region10: #{gcn_apply.3} parent=5 // pred_check_branch
      %146 = sbr.rel (%p143) target = $region12
    $region11: #{gcn_apply.3} parent=5 // pred_region
      %s147 = ssub.s32 %s11, 1
      // Predicated region
      $region13: #{gcn_apply.3} parent=11 // pred_check
        %p148 = pneg %p44
      $region14: #{gcn_apply.3} parent=11 // pred_check_branch
        %150 = sbr.rel (%p148) target = $region16
      $region15: #{gcn_apply.3} parent=11 // pred_region
        _
      $region16: #{gcn_apply.3} parent=11 // pred_fallthru
        _
      // Predicated region
      $region17: #{gcn_apply.3} parent=11 // pred_check
        %p151 = pneg %p65
      $region18: #{gcn_apply.3} parent=11 // pred_check_branch
        %153 = sbr.rel (%p151) target = $region20
      $region19: #{gcn_apply.3} parent=11 // pred_region
        _
      $region20: #{gcn_apply.3} parent=11 // pred_fallthru
        _
      // Predicated region
      $region21: #{gcn_apply.3} parent=11 // pred_check
        %p154 = pneg %p86
      $region22: #{gcn_apply.3} parent=11 // pred_check_branch
        %156 = sbr.rel (%p154) target = $region24
      $region23: #{gcn_apply.3} parent=11 // pred_region
        _
      $region24: #{gcn_apply.3} parent=11 // pred_fallthru
        _
      // Predicated region
      $region25: #{gcn_apply.3} parent=11 // pred_check
        %p157 = pneg %p107
      $region26: #{gcn_apply.3} parent=11 // pred_check_branch
        %159 = sbr.rel (%p157) target = $region28
      $region27: #{gcn_apply.3} parent=11 // pred_region
        _
      $region28: #{gcn_apply.3} parent=11 // pred_fallthru
        _
    $region12: #{gcn_apply.3} parent=5 // pred_fallthru
      _
    %p160 = scmp.lt.s32.totalorder %s11, 2
    // Predicated region
    $region29: #{gcn_apply.3} parent=5 // pred_check
      %p161 = pneg %p160
    $region30: #{gcn_apply.3} parent=5 // pred_check_branch
      %163 = sbr.rel (%p161) target = $region32
    $region31: #{gcn_apply.3} parent=5 // pred_region
      _
    $region32: #{gcn_apply.3} parent=5 // pred_fallthru
      _
    %p164 = scmp.le.s32.totalorder 1, %s11
    %p165 = scmp.lt.s32.totalorder %s11, 3
    %p166 = pnand %p164, %p165
    %p167 = pneg %p166
    // Predicated region
    $region33: #{gcn_apply.3} parent=5 // pred_check
      _
    $region34: #{gcn_apply.3} parent=5 // pred_check_branch
      %169 = sbr.rel (%p166) target = $region36
    $region35: #{gcn_apply.3} parent=5 // pred_region
      %s170 = ssub.s32 %s11, 1
      %p171 = pneg %p44
      %p172 = pneg %p41
      %p173 = pneg %p65
      %p174 = pneg %p62
      %p175 = pneg %p86
      %p176 = pneg %p83
      %p177 = pneg %p107
      %p178 = pneg %p104
      %p179 = pneg %p133
      %p180 = pneg %p130
      %s181 = smul.u32 64, %s21
      %p182 = scmp.lt.s32.totalorder %s181, 63
      %s183 = scalar_select %p182, %s181, 63
      %s184 = smul.addr %s183, 8
      %s185 = scalar_lea.vmem %s5, %s184
      %s186 = smul.u32 64, %s21
      %p187 = scmp.lt.s32.totalorder %s186, 63
      %s188 = scalar_select %p187, %s186, 63
      %s189 = smul.addr %s188, 8
      %s190 = scalar_lea.vmem %s5, %s189
      %s191 = smul.u32 64, %s21
      %s193 = smul.u32 %s21, 512
      %p194 = scmp.eq.s32.totalorder %s20, 0
      %p195 = scmp.eq.s32.totalorder %s21, 0
      %p196 = pnand %p194, %p195
      %p197 = pneg %p196
      // Predicated region
      $region37: #{gcn_apply.3} parent=35 // pred_check
        _
      $region38: #{gcn_apply.3} parent=35 // pred_check_branch
        %199 = sbr.rel (%p196) target = $region40
      $region39: #{gcn_apply.3} parent=35 // pred_region
        $region41: #{gcn_apply.3} parent=39
          #allocation4 [shape = 's32[1]{0}', space=sflag, size = 0x4, scoped, tag = 'scoped memory for gcn_apply.3']
          %p201 = scmp.lt.u32.totalorder 4, 8
          %p202 = pneg %p201
          // Predicated region
          $region42: #{gcn_apply.3} parent=41 // pred_check
            _
          $region43: #{gcn_apply.3} parent=41 // pred_check_branch
            %204 = sbr.rel (%p201) target = $region45
          $region44: #{gcn_apply.3} parent=41 // pred_region
            %s729 = sand.u32 4, 7
            %p730 = scmp.eq.s32.totalorder %s729, 0
            %p731 = pneg %p730
            // Predicated region
            $region57: #{gcn_apply.3} parent=44 // pred_check
              _
            $region58: #{gcn_apply.3} parent=44 // pred_check_branch
              %733 = sbr.rel (%p730) target = $region60
            $region59: #{gcn_apply.3} parent=44 // pred_region
              %s734 = sand.u32 4, 7
              %s735 = ssub.s32 4, %s734
              %s736 = scalar_lea.vmem %s0, %s735
              %s737 = ssub.s32 4, %s734
              %s738 = scalar_lea.vmem [#allocation2], %s737
              loop: start=0, step=1, limit=1
              $region61: #{gcn_apply.3} parent=59 // loop_pre_header
                _
              $region62: #{gcn_apply.3} parent=59 // loop_header
                %s740 = sphi 0, %s744
                %p741 = scmp.ge.s32.totalorder %s740, 1
                %s745 = sphi %s0, %s0
                %s746 = sphi [#allocation2], [#allocation2]
              $region63: #{gcn_apply.3} parent=59 // loop_header_branch
                %743 = sbr.rel (%p741) target = $region67
              $region64: #{gcn_apply.3} parent=59 // loop_body
                _
              $region65: #{gcn_apply.3} parent=59 // loop_footer
                %s744 = sadd.s32 1, %s740
              $region66: #{gcn_apply.3} parent=59 // loop_footer_branch
                %739 = sbr.rel target = $region62
              $region67: #{gcn_apply.3} parent=59 // loop_exit
                _
              %s747 = sshllo.u32 0, %s734
              loop: start=0, step=1, limit=1
              $region68: #{gcn_apply.3} parent=59 // loop_pre_header
                _
              $region69: #{gcn_apply.3} parent=59 // loop_header
                %s749 = sphi 0, %s753
                %p750 = scmp.ge.s32.totalorder %s749, 1
                %s754 = sphi %s736, %s736
                %s755 = sphi %s738, %s738
              $region70: #{gcn_apply.3} parent=59 // loop_header_branch
                %752 = sbr.rel (%p750) target = $region74
              $region71: #{gcn_apply.3} parent=59 // loop_body
                %v756 = vld [vmem:[%s754] sm:%s747]
                %757 = vst [vmem:[%s755] sm:%s747] %v756
                %v758 = vld [vmem:[%s754 + $0x10] sm:%s747]
                %759 = vst [vmem:[%s755 + $0x4] sm:%s747] %v758
                %v760 = vld [vmem:[%s754 + $0x4] sm:%s747]
                %761 = vst [vmem:[%s755 + $0x8] sm:%s747] %v760
                %v762 = vld [vmem:[%s754 + $0x14] sm:%s747]
                %763 = vst [vmem:[%s755 + $0xc] sm:%s747] %v762
                %v764 = vld [vmem:[%s754 + $0x8] sm:%s747]
                %765 = vst [vmem:[%s755 + $0x10] sm:%s747] %v764
                %v766 = vld [vmem:[%s754 + $0x18] sm:%s747]
                %767 = vst [vmem:[%s755 + $0x14] sm:%s747] %v766
                %v768 = vld [vmem:[%s754 + $0xc] sm:%s747]
                %769 = vst [vmem:[%s755 + $0x18] sm:%s747] %v768
                %v770 = vld [vmem:[%s754 + $0x1c] sm:%s747]
                %771 = vst [vmem:[%s755 + $0x1c] sm:%s747] %v770
                %v772 = vld [vmem:[%s754 + $0x20] sm:%s747]
                %773 = vst [vmem:[%s755 + $0x20] sm:%s747] %v772
                %v774 = vld [vmem:[%s754 + $0x30] sm:%s747]
                %775 = vst [vmem:[%s755 + $0x24] sm:%s747] %v774
                %v776 = vld [vmem:[%s754 + $0x24] sm:%s747]
                %777 = vst [vmem:[%s755 + $0x28] sm:%s747] %v776
                %v778 = vld [vmem:[%s754 + $0x34] sm:%s747]
                %779 = vst [vmem:[%s755 + $0x2c] sm:%s747] %v778
                %v780 = vld [vmem:[%s754 + $0x28] sm:%s747]
                %781 = vst [vmem:[%s755 + $0x30] sm:%s747] %v780
                %v782 = vld [vmem:[%s754 + $0x38] sm:%s747]
                %783 = vst [vmem:[%s755 + $0x34] sm:%s747] %v782
                %v784 = vld [vmem:[%s754 + $0x2c] sm:%s747]
                %785 = vst [vmem:[%s755 + $0x38] sm:%s747] %v784
                %v786 = vld [vmem:[%s754 + $0x3c] sm:%s747]
                %787 = vst [vmem:[%s755 + $0x3c] sm:%s747] %v786
                %v788 = vld [vmem:[%s754 + $0x40] sm:%s747]
                %789 = vst [vmem:[%s755 + $0x40] sm:%s747] %v788
                %v790 = vld [vmem:[%s754 + $0x50] sm:%s747]
                %791 = vst [vmem:[%s755 + $0x44] sm:%s747] %v790
                %v792 = vld [vmem:[%s754 + $0x44] sm:%s747]
                %793 = vst [vmem:[%s755 + $0x48] sm:%s747] %v792
                %v794 = vld [vmem:[%s754 + $0x54] sm:%s747]
                %795 = vst [vmem:[%s755 + $0x4c] sm:%s747] %v794
                %v796 = vld [vmem:[%s754 + $0x48] sm:%s747]
                %797 = vst [vmem:[%s755 + $0x50] sm:%s747] %v796
                %v798 = vld [vmem:[%s754 + $0x58] sm:%s747]
                %799 = vst [vmem:[%s755 + $0x54] sm:%s747] %v798
                %v800 = vld [vmem:[%s754 + $0x4c] sm:%s747]
                %801 = vst [vmem:[%s755 + $0x58] sm:%s747] %v800
                %v802 = vld [vmem:[%s754 + $0x5c] sm:%s747]
                %803 = vst [vmem:[%s755 + $0x5c] sm:%s747] %v802
                %v804 = vld [vmem:[%s754 + $0x60] sm:%s747]
                %805 = vst [vmem:[%s755 + $0x60] sm:%s747] %v804
                %v806 = vld [vmem:[%s754 + $0x70] sm:%s747]
                %807 = vst [vmem:[%s755 + $0x64] sm:%s747] %v806
                %v808 = vld [vmem:[%s754 + $0x64] sm:%s747]
                %809 = vst [vmem:[%s755 + $0x68] sm:%s747] %v808
                %v810 = vld [vmem:[%s754 + $0x74] sm:%s747]
                %811 = vst [vmem:[%s755 + $0x6c] sm:%s747] %v810
                %v812 = vld [vmem:[%s754 + $0x68] sm:%s747]
                %813 = vst [vmem:[%s755 + $0x70] sm:%s747] %v812
                %v814 = vld [vmem:[%s754 + $0x78] sm:%s747]
                %815 = vst [vmem:[%s755 + $0x74] sm:%s747] %v814
                %v816 = vld [vmem:[%s754 + $0x6c] sm:%s747]
                %817 = vst [vmem:[%s755 + $0x78] sm:%s747] %v816
                %v818 = vld [vmem:[%s754 + $0x7c] sm:%s747]
                %819 = vst [vmem:[%s755 + $0x7c] sm:%s747] %v818
                %v820 = vld [vmem:[%s754 + $0x80] sm:%s747]
                %821 = vst [vmem:[%s755 + $0x80] sm:%s747] %v820
                %v822 = vld [vmem:[%s754 + $0x90] sm:%s747]
                %823 = vst [vmem:[%s755 + $0x84] sm:%s747] %v822
                %v824 = vld [vmem:[%s754 + $0x84] sm:%s747]
                %825 = vst [vmem:[%s755 + $0x88] sm:%s747] %v824
                %v826 = vld [vmem:[%s754 + $0x94] sm:%s747]
                %827 = vst [vmem:[%s755 + $0x8c] sm:%s747] %v826
                %v828 = vld [vmem:[%s754 + $0x88] sm:%s747]
                %829 = vst [vmem:[%s755 + $0x90] sm:%s747] %v828
                %v830 = vld [vmem:[%s754 + $0x98] sm:%s747]
                %831 = vst [vmem:[%s755 + $0x94] sm:%s747] %v830
                %v832 = vld [vmem:[%s754 + $0x8c] sm:%s747]
                %833 = vst [vmem:[%s755 + $0x98] sm:%s747] %v832
                %v834 = vld [vmem:[%s754 + $0x9c] sm:%s747]
                %835 = vst [vmem:[%s755 + $0x9c] sm:%s747] %v834
                %v836 = vld [vmem:[%s754 + $0xa0] sm:%s747]
                %837 = vst [vmem:[%s755 + $0xa0] sm:%s747] %v836
                %v838 = vld [vmem:[%s754 + $0xb0] sm:%s747]
                %839 = vst [vmem:[%s755 + $0xa4] sm:%s747] %v838
                %v840 = vld [vmem:[%s754 + $0xa4] sm:%s747]
                %841 = vst [vmem:[%s755 + $0xa8] sm:%s747] %v840
                %v842 = vld [vmem:[%s754 + $0xb4] sm:%s747]
                %843 = vst [vmem:[%s755 + $0xac] sm:%s747] %v842
                %v844 = vld [vmem:[%s754 + $0xa8] sm:%s747]
                %845 = vst [vmem:[%s755 + $0xb0] sm:%s747] %v844
                %v846 = vld [vmem:[%s754 + $0xb8] sm:%s747]
                %847 = vst [vmem:[%s755 + $0xb4] sm:%s747] %v846
                %v848 = vld [vmem:[%s754 + $0xac] sm:%s747]
                %849 = vst [vmem:[%s755 + $0xb8] sm:%s747] %v848
                %v850 = vld [vmem:[%s754 + $0xbc] sm:%s747]
                %851 = vst [vmem:[%s755 + $0xbc] sm:%s747] %v850
                %v852 = vld [vmem:[%s754 + $0xc0] sm:%s747]
                %853 = vst [vmem:[%s755 + $0xc0] sm:%s747] %v852
                %v854 = vld [vmem:[%s754 + $0xd0] sm:%s747]
                %855 = vst [vmem:[%s755 + $0xc4] sm:%s747] %v854
                %v856 = vld [vmem:[%s754 + $0xc4] sm:%s747]
                %857 = vst [vmem:[%s755 + $0xc8] sm:%s747] %v856
                %v858 = vld [vmem:[%s754 + $0xd4] sm:%s747]
                %859 = vst [vmem:[%s755 + $0xcc] sm:%s747] %v858
                %v860 = vld [vmem:[%s754 + $0xc8] sm:%s747]
                %861 = vst [vmem:[%s755 + $0xd0] sm:%s747] %v860
                %v862 = vld [vmem:[%s754 + $0xd8] sm:%s747]
                %863 = vst [vmem:[%s755 + $0xd4] sm:%s747] %v862
                %v864 = vld [vmem:[%s754 + $0xcc] sm:%s747]
                %865 = vst [vmem:[%s755 + $0xd8] sm:%s747] %v864
                %v866 = vld [vmem:[%s754 + $0xdc] sm:%s747]
                %867 = vst [vmem:[%s755 + $0xdc] sm:%s747] %v866
                %v868 = vld [vmem:[%s754 + $0xe0] sm:%s747]
                %869 = vst [vmem:[%s755 + $0xe0] sm:%s747] %v868
                %v870 = vld [vmem:[%s754 + $0xf0] sm:%s747]
                %871 = vst [vmem:[%s755 + $0xe4] sm:%s747] %v870
                %v872 = vld [vmem:[%s754 + $0xe4] sm:%s747]
                %873 = vst [vmem:[%s755 + $0xe8] sm:%s747] %v872
                %v874 = vld [vmem:[%s754 + $0xf4] sm:%s747]
                %875 = vst [vmem:[%s755 + $0xec] sm:%s747] %v874
                %v876 = vld [vmem:[%s754 + $0xe8] sm:%s747]
                %877 = vst [vmem:[%s755 + $0xf0] sm:%s747] %v876
                %v878 = vld [vmem:[%s754 + $0xf8] sm:%s747]
                %879 = vst [vmem:[%s755 + $0xf4] sm:%s747] %v878
                %v880 = vld [vmem:[%s754 + $0xec] sm:%s747]
                %881 = vst [vmem:[%s755 + $0xf8] sm:%s747] %v880
                %v882 = vld [vmem:[%s754 + $0xfc] sm:%s747]
                %883 = vst [vmem:[%s755 + $0xfc] sm:%s747] %v882
                %v884 = vld [vmem:[%s754 + $0x100] sm:%s747]
                %885 = vst [vmem:[%s755 + $0x100] sm:%s747] %v884
                %v886 = vld [vmem:[%s754 + $0x110] sm:%s747]
                %887 = vst [vmem:[%s755 + $0x104] sm:%s747] %v886
                %v888 = vld [vmem:[%s754 + $0x104] sm:%s747]
                %889 = vst [vmem:[%s755 + $0x108] sm:%s747] %v888
                %v890 = vld [vmem:[%s754 + $0x114] sm:%s747]
                %891 = vst [vmem:[%s755 + $0x10c] sm:%s747] %v890
                %v892 = vld [vmem:[%s754 + $0x108] sm:%s747]
                %893 = vst [vmem:[%s755 + $0x110] sm:%s747] %v892
                %v894 = vld [vmem:[%s754 + $0x118] sm:%s747]
                %895 = vst [vmem:[%s755 + $0x114] sm:%s747] %v894
                %v896 = vld [vmem:[%s754 + $0x10c] sm:%s747]
                %897 = vst [vmem:[%s755 + $0x118] sm:%s747] %v896
                %v898 = vld [vmem:[%s754 + $0x11c] sm:%s747]
                %899 = vst [vmem:[%s755 + $0x11c] sm:%s747] %v898
                %v900 = vld [vmem:[%s754 + $0x120] sm:%s747]
                %901 = vst [vmem:[%s755 + $0x120] sm:%s747] %v900
                %v902 = vld [vmem:[%s754 + $0x130] sm:%s747]
                %903 = vst [vmem:[%s755 + $0x124] sm:%s747] %v902
                %v904 = vld [vmem:[%s754 + $0x124] sm:%s747]
                %905 = vst [vmem:[%s755 + $0x128] sm:%s747] %v904
                %v906 = vld [vmem:[%s754 + $0x134] sm:%s747]
                %907 = vst [vmem:[%s755 + $0x12c] sm:%s747] %v906
                %v908 = vld [vmem:[%s754 + $0x128] sm:%s747]
                %909 = vst [vmem:[%s755 + $0x130] sm:%s747] %v908
                %v910 = vld [vmem:[%s754 + $0x138] sm:%s747]
                %911 = vst [vmem:[%s755 + $0x134] sm:%s747] %v910
                %v912 = vld [vmem:[%s754 + $0x12c] sm:%s747]
                %913 = vst [vmem:[%s755 + $0x138] sm:%s747] %v912
                %v914 = vld [vmem:[%s754 + $0x13c] sm:%s747]
                %915 = vst [vmem:[%s755 + $0x13c] sm:%s747] %v914
                %v916 = vld [vmem:[%s754 + $0x140] sm:%s747]
                %917 = vst [vmem:[%s755 + $0x140] sm:%s747] %v916
                %v918 = vld [vmem:[%s754 + $0x150] sm:%s747]
                %919 = vst [vmem:[%s755 + $0x144] sm:%s747] %v918
                %v920 = vld [vmem:[%s754 + $0x144] sm:%s747]
                %921 = vst [vmem:[%s755 + $0x148] sm:%s747] %v920
                %v922 = vld [vmem:[%s754 + $0x154] sm:%s747]
                %923 = vst [vmem:[%s755 + $0x14c] sm:%s747] %v922
                %v924 = vld [vmem:[%s754 + $0x148] sm:%s747]
                %925 = vst [vmem:[%s755 + $0x150] sm:%s747] %v924
                %v926 = vld [vmem:[%s754 + $0x158] sm:%s747]
                %927 = vst [vmem:[%s755 + $0x154] sm:%s747] %v926
                %v928 = vld [vmem:[%s754 + $0x14c] sm:%s747]
                %929 = vst [vmem:[%s755 + $0x158] sm:%s747] %v928
                %v930 = vld [vmem:[%s754 + $0x15c] sm:%s747]
                %931 = vst [vmem:[%s755 + $0x15c] sm:%s747] %v930
                %v932 = vld [vmem:[%s754 + $0x160] sm:%s747]
                %933 = vst [vmem:[%s755 + $0x160] sm:%s747] %v932
                %v934 = vld [vmem:[%s754 + $0x170] sm:%s747]
                %935 = vst [vmem:[%s755 + $0x164] sm:%s747] %v934
                %v936 = vld [vmem:[%s754 + $0x164] sm:%s747]
                %937 = vst [vmem:[%s755 + $0x168] sm:%s747] %v936
                %v938 = vld [vmem:[%s754 + $0x174] sm:%s747]
                %939 = vst [vmem:[%s755 + $0x16c] sm:%s747] %v938
                %v940 = vld [vmem:[%s754 + $0x168] sm:%s747]
                %941 = vst [vmem:[%s755 + $0x170] sm:%s747] %v940
                %v942 = vld [vmem:[%s754 + $0x178] sm:%s747]
                %943 = vst [vmem:[%s755 + $0x174] sm:%s747] %v942
                %v944 = vld [vmem:[%s754 + $0x16c] sm:%s747]
                %945 = vst [vmem:[%s755 + $0x178] sm:%s747] %v944
                %v946 = vld [vmem:[%s754 + $0x17c] sm:%s747]
                %947 = vst [vmem:[%s755 + $0x17c] sm:%s747] %v946
                %v948 = vld [vmem:[%s754 + $0x180] sm:%s747]
                %949 = vst [vmem:[%s755 + $0x180] sm:%s747] %v948
                %v950 = vld [vmem:[%s754 + $0x190] sm:%s747]
                %951 = vst [vmem:[%s755 + $0x184] sm:%s747] %v950
                %v952 = vld [vmem:[%s754 + $0x184] sm:%s747]
                %953 = vst [vmem:[%s755 + $0x188] sm:%s747] %v952
                %v954 = vld [vmem:[%s754 + $0x194] sm:%s747]
                %955 = vst [vmem:[%s755 + $0x18c] sm:%s747] %v954
                %v956 = vld [vmem:[%s754 + $0x188] sm:%s747]
                %957 = vst [vmem:[%s755 + $0x190] sm:%s747] %v956
                %v958 = vld [vmem:[%s754 + $0x198] sm:%s747]
                %959 = vst [vmem:[%s755 + $0x194] sm:%s747] %v958
                %v960 = vld [vmem:[%s754 + $0x18c] sm:%s747]
                %961 = vst [vmem:[%s755 + $0x198] sm:%s747] %v960
                %v962 = vld [vmem:[%s754 + $0x19c] sm:%s747]
                %963 = vst [vmem:[%s755 + $0x19c] sm:%s747] %v962
                %v964 = vld [vmem:[%s754 + $0x1a0] sm:%s747]
                %965 = vst [vmem:[%s755 + $0x1a0] sm:%s747] %v964
                %v966 = vld [vmem:[%s754 + $0x1b0] sm:%s747]
                %967 = vst [vmem:[%s755 + $0x1a4] sm:%s747] %v966
                %v968 = vld [vmem:[%s754 + $0x1a4] sm:%s747]
                %969 = vst [vmem:[%s755 + $0x1a8] sm:%s747] %v968
                %v970 = vld [vmem:[%s754 + $0x1b4] sm:%s747]
                %971 = vst [vmem:[%s755 + $0x1ac] sm:%s747] %v970
                %v972 = vld [vmem:[%s754 + $0x1a8] sm:%s747]
                %973 = vst [vmem:[%s755 + $0x1b0] sm:%s747] %v972
                %v974 = vld [vmem:[%s754 + $0x1b8] sm:%s747]
                %975 = vst [vmem:[%s755 + $0x1b4] sm:%s747] %v974
                %v976 = vld [vmem:[%s754 + $0x1ac] sm:%s747]
                %977 = vst [vmem:[%s755 + $0x1b8] sm:%s747] %v976
                %v978 = vld [vmem:[%s754 + $0x1bc] sm:%s747]
                %979 = vst [vmem:[%s755 + $0x1bc] sm:%s747] %v978
                %v980 = vld [vmem:[%s754 + $0x1c0] sm:%s747]
                %981 = vst [vmem:[%s755 + $0x1c0] sm:%s747] %v980
                %v982 = vld [vmem:[%s754 + $0x1d0] sm:%s747]
                %983 = vst [vmem:[%s755 + $0x1c4] sm:%s747] %v982
                %v984 = vld [vmem:[%s754 + $0x1c4] sm:%s747]
                %985 = vst [vmem:[%s755 + $0x1c8] sm:%s747] %v984
                %v986 = vld [vmem:[%s754 + $0x1d4] sm:%s747]
                %987 = vst [vmem:[%s755 + $0x1cc] sm:%s747] %v986
                %v988 = vld [vmem:[%s754 + $0x1c8] sm:%s747]
                %989 = vst [vmem:[%s755 + $0x1d0] sm:%s747] %v988
                %v990 = vld [vmem:[%s754 + $0x1d8] sm:%s747]
                %991 = vst [vmem:[%s755 + $0x1d4] sm:%s747] %v990
                %v992 = vld [vmem:[%s754 + $0x1cc] sm:%s747]
                %993 = vst [vmem:[%s755 + $0x1d8] sm:%s747] %v992
                %v994 = vld [vmem:[%s754 + $0x1dc] sm:%s747]
                %995 = vst [vmem:[%s755 + $0x1dc] sm:%s747] %v994
                %v996 = vld [vmem:[%s754 + $0x1e0] sm:%s747]
                %997 = vst [vmem:[%s755 + $0x1e0] sm:%s747] %v996
                %v998 = vld [vmem:[%s754 + $0x1f0] sm:%s747]
                %999 = vst [vmem:[%s755 + $0x1e4] sm:%s747] %v998
                %v1000 = vld [vmem:[%s754 + $0x1e4] sm:%s747]
                %1001 = vst [vmem:[%s755 + $0x1e8] sm:%s747] %v1000
                %v1002 = vld [vmem:[%s754 + $0x1f4] sm:%s747]
                %1003 = vst [vmem:[%s755 + $0x1ec] sm:%s747] %v1002
                %v1004 = vld [vmem:[%s754 + $0x1e8] sm:%s747]
                %1005 = vst [vmem:[%s755 + $0x1f0] sm:%s747] %v1004
                %v1006 = vld [vmem:[%s754 + $0x1f8] sm:%s747]
                %1007 = vst [vmem:[%s755 + $0x1f4] sm:%s747] %v1006
                %v1008 = vld [vmem:[%s754 + $0x1ec] sm:%s747]
                %1009 = vst [vmem:[%s755 + $0x1f8] sm:%s747] %v1008
                %v1010 = vld [vmem:[%s754 + $0x1fc] sm:%s747]
                %1011 = vst [vmem:[%s755 + $0x1fc] sm:%s747] %v1010
                %v1012 = vld [vmem:[%s754 + $0x200] sm:%s747]
                %1013 = vst [vmem:[%s755 + $0x200] sm:%s747] %v1012
                %v1014 = vld [vmem:[%s754 + $0x210] sm:%s747]
                %1015 = vst [vmem:[%s755 + $0x204] sm:%s747] %v1014
                %v1016 = vld [vmem:[%s754 + $0x204] sm:%s747]
                %1017 = vst [vmem:[%s755 + $0x208] sm:%s747] %v1016
                %v1018 = vld [vmem:[%s754 + $0x214] sm:%s747]
                %1019 = vst [vmem:[%s755 + $0x20c] sm:%s747] %v1018
                %v1020 = vld [vmem:[%s754 + $0x208] sm:%s747]
                %1021 = vst [vmem:[%s755 + $0x210] sm:%s747] %v1020
                %v1022 = vld [vmem:[%s754 + $0x218] sm:%s747]
                %1023 = vst [vmem:[%s755 + $0x214] sm:%s747] %v1022
                %v1024 = vld [vmem:[%s754 + $0x20c] sm:%s747]
                %1025 = vst [vmem:[%s755 + $0x218] sm:%s747] %v1024
                %v1026 = vld [vmem:[%s754 + $0x21c] sm:%s747]
                %1027 = vst [vmem:[%s755 + $0x21c] sm:%s747] %v1026
                %v1028 = vld [vmem:[%s754 + $0x220] sm:%s747]
                %1029 = vst [vmem:[%s755 + $0x220] sm:%s747] %v1028
                %v1030 = vld [vmem:[%s754 + $0x230] sm:%s747]
                %1031 = vst [vmem:[%s755 + $0x224] sm:%s747] %v1030
                %v1032 = vld [vmem:[%s754 + $0x224] sm:%s747]
                %1033 = vst [vmem:[%s755 + $0x228] sm:%s747] %v1032
                %v1034 = vld [vmem:[%s754 + $0x234] sm:%s747]
                %1035 = vst [vmem:[%s755 + $0x22c] sm:%s747] %v1034
                %v1036 = vld [vmem:[%s754 + $0x228] sm:%s747]
                %1037 = vst [vmem:[%s755 + $0x230] sm:%s747] %v1036
                %v1038 = vld [vmem:[%s754 + $0x238] sm:%s747]
                %1039 = vst [vmem:[%s755 + $0x234] sm:%s747] %v1038
                %v1040 = vld [vmem:[%s754 + $0x22c] sm:%s747]
                %1041 = vst [vmem:[%s755 + $0x238] sm:%s747] %v1040
                %v1042 = vld [vmem:[%s754 + $0x23c] sm:%s747]
                %1043 = vst [vmem:[%s755 + $0x23c] sm:%s747] %v1042
                %v1044 = vld [vmem:[%s754 + $0x240] sm:%s747]
                %1045 = vst [vmem:[%s755 + $0x240] sm:%s747] %v1044
                %v1046 = vld [vmem:[%s754 + $0x250] sm:%s747]
                %1047 = vst [vmem:[%s755 + $0x244] sm:%s747] %v1046
                %v1048 = vld [vmem:[%s754 + $0x244] sm:%s747]
                %1049 = vst [vmem:[%s755 + $0x248] sm:%s747] %v1048
                %v1050 = vld [vmem:[%s754 + $0x254] sm:%s747]
                %1051 = vst [vmem:[%s755 + $0x24c] sm:%s747] %v1050
                %v1052 = vld [vmem:[%s754 + $0x248] sm:%s747]
                %1053 = vst [vmem:[%s755 + $0x250] sm:%s747] %v1052
                %v1054 = vld [vmem:[%s754 + $0x258] sm:%s747]
                %1055 = vst [vmem:[%s755 + $0x254] sm:%s747] %v1054
                %v1056 = vld [vmem:[%s754 + $0x24c] sm:%s747]
                %1057 = vst [vmem:[%s755 + $0x258] sm:%s747] %v1056
                %v1058 = vld [vmem:[%s754 + $0x25c] sm:%s747]
                %1059 = vst [vmem:[%s755 + $0x25c] sm:%s747] %v1058
                %v1060 = vld [vmem:[%s754 + $0x260] sm:%s747]
                %1061 = vst [vmem:[%s755 + $0x260] sm:%s747] %v1060
                %v1062 = vld [vmem:[%s754 + $0x270] sm:%s747]
                %1063 = vst [vmem:[%s755 + $0x264] sm:%s747] %v1062
                %v1064 = vld [vmem:[%s754 + $0x264] sm:%s747]
                %1065 = vst [vmem:[%s755 + $0x268] sm:%s747] %v1064
                %v1066 = vld [vmem:[%s754 + $0x274] sm:%s747]
                %1067 = vst [vmem:[%s755 + $0x26c] sm:%s747] %v1066
                %v1068 = vld [vmem:[%s754 + $0x268] sm:%s747]
                %1069 = vst [vmem:[%s755 + $0x270] sm:%s747] %v1068
                %v1070 = vld [vmem:[%s754 + $0x278] sm:%s747]
                %1071 = vst [vmem:[%s755 + $0x274] sm:%s747] %v1070
                %v1072 = vld [vmem:[%s754 + $0x26c] sm:%s747]
                %1073 = vst [vmem:[%s755 + $0x278] sm:%s747] %v1072
                %v1074 = vld [vmem:[%s754 + $0x27c] sm:%s747]
                %1075 = vst [vmem:[%s755 + $0x27c] sm:%s747] %v1074
                %v1076 = vld [vmem:[%s754 + $0x280] sm:%s747]
                %1077 = vst [vmem:[%s755 + $0x280] sm:%s747] %v1076
                %v1078 = vld [vmem:[%s754 + $0x290] sm:%s747]
                %1079 = vst [vmem:[%s755 + $0x284] sm:%s747] %v1078
                %v1080 = vld [vmem:[%s754 + $0x284] sm:%s747]
                %1081 = vst [vmem:[%s755 + $0x288] sm:%s747] %v1080
                %v1082 = vld [vmem:[%s754 + $0x294] sm:%s747]
                %1083 = vst [vmem:[%s755 + $0x28c] sm:%s747] %v1082
                %v1084 = vld [vmem:[%s754 + $0x288] sm:%s747]
                %1085 = vst [vmem:[%s755 + $0x290] sm:%s747] %v1084
                %v1086 = vld [vmem:[%s754 + $0x298] sm:%s747]
                %1087 = vst [vmem:[%s755 + $0x294] sm:%s747] %v1086
                %v1088 = vld [vmem:[%s754 + $0x28c] sm:%s747]
                %1089 = vst [vmem:[%s755 + $0x298] sm:%s747] %v1088
                %v1090 = vld [vmem:[%s754 + $0x29c] sm:%s747]
                %1091 = vst [vmem:[%s755 + $0x29c] sm:%s747] %v1090
                %v1092 = vld [vmem:[%s754 + $0x2a0] sm:%s747]
                %1093 = vst [vmem:[%s755 + $0x2a0] sm:%s747] %v1092
                %v1094 = vld [vmem:[%s754 + $0x2b0] sm:%s747]
                %1095 = vst [vmem:[%s755 + $0x2a4] sm:%s747] %v1094
                %v1096 = vld [vmem:[%s754 + $0x2a4] sm:%s747]
                %1097 = vst [vmem:[%s755 + $0x2a8] sm:%s747] %v1096
                %v1098 = vld [vmem:[%s754 + $0x2b4] sm:%s747]
                %1099 = vst [vmem:[%s755 + $0x2ac] sm:%s747] %v1098
                %v1100 = vld [vmem:[%s754 + $0x2a8] sm:%s747]
                %1101 = vst [vmem:[%s755 + $0x2b0] sm:%s747] %v1100
                %v1102 = vld [vmem:[%s754 + $0x2b8] sm:%s747]
                %1103 = vst [vmem:[%s755 + $0x2b4] sm:%s747] %v1102
                %v1104 = vld [vmem:[%s754 + $0x2ac] sm:%s747]
                %1105 = vst [vmem:[%s755 + $0x2b8] sm:%s747] %v1104
                %v1106 = vld [vmem:[%s754 + $0x2bc] sm:%s747]
                %1107 = vst [vmem:[%s755 + $0x2bc] sm:%s747] %v1106
                %v1108 = vld [vmem:[%s754 + $0x2c0] sm:%s747]
                %1109 = vst [vmem:[%s755 + $0x2c0] sm:%s747] %v1108
                %v1110 = vld [vmem:[%s754 + $0x2d0] sm:%s747]
                %1111 = vst [vmem:[%s755 + $0x2c4] sm:%s747] %v1110
                %v1112 = vld [vmem:[%s754 + $0x2c4] sm:%s747]
                %1113 = vst [vmem:[%s755 + $0x2c8] sm:%s747] %v1112
                %v1114 = vld [vmem:[%s754 + $0x2d4] sm:%s747]
                %1115 = vst [vmem:[%s755 + $0x2cc] sm:%s747] %v1114
                %v1116 = vld [vmem:[%s754 + $0x2c8] sm:%s747]
                %1117 = vst [vmem:[%s755 + $0x2d0] sm:%s747] %v1116
                %v1118 = vld [vmem:[%s754 + $0x2d8] sm:%s747]
                %1119 = vst [vmem:[%s755 + $0x2d4] sm:%s747] %v1118
                %v1120 = vld [vmem:[%s754 + $0x2cc] sm:%s747]
                %1121 = vst [vmem:[%s755 + $0x2d8] sm:%s747] %v1120
                %v1122 = vld [vmem:[%s754 + $0x2dc] sm:%s747]
                %1123 = vst [vmem:[%s755 + $0x2dc] sm:%s747] %v1122
                %v1124 = vld [vmem:[%s754 + $0x2e0] sm:%s747]
                %1125 = vst [vmem:[%s755 + $0x2e0] sm:%s747] %v1124
                %v1126 = vld [vmem:[%s754 + $0x2f0] sm:%s747]
                %1127 = vst [vmem:[%s755 + $0x2e4] sm:%s747] %v1126
                %v1128 = vld [vmem:[%s754 + $0x2e4] sm:%s747]
                %1129 = vst [vmem:[%s755 + $0x2e8] sm:%s747] %v1128
                %v1130 = vld [vmem:[%s754 + $0x2f4] sm:%s747]
                %1131 = vst [vmem:[%s755 + $0x2ec] sm:%s747] %v1130
                %v1132 = vld [vmem:[%s754 + $0x2e8] sm:%s747]
                %1133 = vst [vmem:[%s755 + $0x2f0] sm:%s747] %v1132
                %v1134 = vld [vmem:[%s754 + $0x2f8] sm:%s747]
                %1135 = vst [vmem:[%s755 + $0x2f4] sm:%s747] %v1134
                %v1136 = vld [vmem:[%s754 + $0x2ec] sm:%s747]
                %1137 = vst [vmem:[%s755 + $0x2f8] sm:%s747] %v1136
                %v1138 = vld [vmem:[%s754 + $0x2fc] sm:%s747]
                %1139 = vst [vmem:[%s755 + $0x2fc] sm:%s747] %v1138
                %v1140 = vld [vmem:[%s754 + $0x300] sm:%s747]
                %1141 = vst [vmem:[%s755 + $0x300] sm:%s747] %v1140
                %v1142 = vld [vmem:[%s754 + $0x310] sm:%s747]
                %1143 = vst [vmem:[%s755 + $0x304] sm:%s747] %v1142
                %v1144 = vld [vmem:[%s754 + $0x304] sm:%s747]
                %1145 = vst [vmem:[%s755 + $0x308] sm:%s747] %v1144
                %v1146 = vld [vmem:[%s754 + $0x314] sm:%s747]
                %1147 = vst [vmem:[%s755 + $0x30c] sm:%s747] %v1146
                %v1148 = vld [vmem:[%s754 + $0x308] sm:%s747]
                %1149 = vst [vmem:[%s755 + $0x310] sm:%s747] %v1148
                %v1150 = vld [vmem:[%s754 + $0x318] sm:%s747]
                %1151 = vst [vmem:[%s755 + $0x314] sm:%s747] %v1150
                %v1152 = vld [vmem:[%s754 + $0x30c] sm:%s747]
                %1153 = vst [vmem:[%s755 + $0x318] sm:%s747] %v1152
                %v1154 = vld [vmem:[%s754 + $0x31c] sm:%s747]
                %1155 = vst [vmem:[%s755 + $0x31c] sm:%s747] %v1154
                %v1156 = vld [vmem:[%s754 + $0x320] sm:%s747]
                %1157 = vst [vmem:[%s755 + $0x320] sm:%s747] %v1156
                %v1158 = vld [vmem:[%s754 + $0x330] sm:%s747]
                %1159 = vst [vmem:[%s755 + $0x324] sm:%s747] %v1158
                %v1160 = vld [vmem:[%s754 + $0x324] sm:%s747]
                %1161 = vst [vmem:[%s755 + $0x328] sm:%s747] %v1160
                %v1162 = vld [vmem:[%s754 + $0x334] sm:%s747]
                %1163 = vst [vmem:[%s755 + $0x32c] sm:%s747] %v1162
                %v1164 = vld [vmem:[%s754 + $0x328] sm:%s747]
                %1165 = vst [vmem:[%s755 + $0x330] sm:%s747] %v1164
                %v1166 = vld [vmem:[%s754 + $0x338] sm:%s747]
                %1167 = vst [vmem:[%s755 + $0x334] sm:%s747] %v1166
                %v1168 = vld [vmem:[%s754 + $0x32c] sm:%s747]
                %1169 = vst [vmem:[%s755 + $0x338] sm:%s747] %v1168
                %v1170 = vld [vmem:[%s754 + $0x33c] sm:%s747]
                %1171 = vst [vmem:[%s755 + $0x33c] sm:%s747] %v1170
                %v1172 = vld [vmem:[%s754 + $0x340] sm:%s747]
                %1173 = vst [vmem:[%s755 + $0x340] sm:%s747] %v1172
                %v1174 = vld [vmem:[%s754 + $0x350] sm:%s747]
                %1175 = vst [vmem:[%s755 + $0x344] sm:%s747] %v1174
                %v1176 = vld [vmem:[%s754 + $0x344] sm:%s747]
                %1177 = vst [vmem:[%s755 + $0x348] sm:%s747] %v1176
                %v1178 = vld [vmem:[%s754 + $0x354] sm:%s747]
                %1179 = vst [vmem:[%s755 + $0x34c] sm:%s747] %v1178
                %v1180 = vld [vmem:[%s754 + $0x348] sm:%s747]
                %1181 = vst [vmem:[%s755 + $0x350] sm:%s747] %v1180
                %v1182 = vld [vmem:[%s754 + $0x358] sm:%s747]
                %1183 = vst [vmem:[%s755 + $0x354] sm:%s747] %v1182
                %v1184 = vld [vmem:[%s754 + $0x34c] sm:%s747]
                %1185 = vst [vmem:[%s755 + $0x358] sm:%s747] %v1184
                %v1186 = vld [vmem:[%s754 + $0x35c] sm:%s747]
                %1187 = vst [vmem:[%s755 + $0x35c] sm:%s747] %v1186
                %v1188 = vld [vmem:[%s754 + $0x360] sm:%s747]
                %1189 = vst [vmem:[%s755 + $0x360] sm:%s747] %v1188
                %v1190 = vld [vmem:[%s754 + $0x370] sm:%s747]
                %1191 = vst [vmem:[%s755 + $0x364] sm:%s747] %v1190
                %v1192 = vld [vmem:[%s754 + $0x364] sm:%s747]
                %1193 = vst [vmem:[%s755 + $0x368] sm:%s747] %v1192
                %v1194 = vld [vmem:[%s754 + $0x374] sm:%s747]
                %1195 = vst [vmem:[%s755 + $0x36c] sm:%s747] %v1194
                %v1196 = vld [vmem:[%s754 + $0x368] sm:%s747]
                %1197 = vst [vmem:[%s755 + $0x370] sm:%s747] %v1196
                %v1198 = vld [vmem:[%s754 + $0x378] sm:%s747]
                %1199 = vst [vmem:[%s755 + $0x374] sm:%s747] %v1198
                %v1200 = vld [vmem:[%s754 + $0x36c] sm:%s747]
                %1201 = vst [vmem:[%s755 + $0x378] sm:%s747] %v1200
                %v1202 = vld [vmem:[%s754 + $0x37c] sm:%s747]
                %1203 = vst [vmem:[%s755 + $0x37c] sm:%s747] %v1202
                %v1204 = vld [vmem:[%s754 + $0x380] sm:%s747]
                %1205 = vst [vmem:[%s755 + $0x380] sm:%s747] %v1204
                %v1206 = vld [vmem:[%s754 + $0x390] sm:%s747]
                %1207 = vst [vmem:[%s755 + $0x384] sm:%s747] %v1206
                %v1208 = vld [vmem:[%s754 + $0x384] sm:%s747]
                %1209 = vst [vmem:[%s755 + $0x388] sm:%s747] %v1208
                %v1210 = vld [vmem:[%s754 + $0x394] sm:%s747]
                %1211 = vst [vmem:[%s755 + $0x38c] sm:%s747] %v1210
                %v1212 = vld [vmem:[%s754 + $0x388] sm:%s747]
                %1213 = vst [vmem:[%s755 + $0x390] sm:%s747] %v1212
                %v1214 = vld [vmem:[%s754 + $0x398] sm:%s747]
                %1215 = vst [vmem:[%s755 + $0x394] sm:%s747] %v1214
                %v1216 = vld [vmem:[%s754 + $0x38c] sm:%s747]
                %1217 = vst [vmem:[%s755 + $0x398] sm:%s747] %v1216
                %v1218 = vld [vmem:[%s754 + $0x39c] sm:%s747]
                %1219 = vst [vmem:[%s755 + $0x39c] sm:%s747] %v1218
                %v1220 = vld [vmem:[%s754 + $0x3a0] sm:%s747]
                %1221 = vst [vmem:[%s755 + $0x3a0] sm:%s747] %v1220
                %v1222 = vld [vmem:[%s754 + $0x3b0] sm:%s747]
                %1223 = vst [vmem:[%s755 + $0x3a4] sm:%s747] %v1222
                %v1224 = vld [vmem:[%s754 + $0x3a4] sm:%s747]
                %1225 = vst [vmem:[%s755 + $0x3a8] sm:%s747] %v1224
                %v1226 = vld [vmem:[%s754 + $0x3b4] sm:%s747]
                %1227 = vst [vmem:[%s755 + $0x3ac] sm:%s747] %v1226
                %v1228 = vld [vmem:[%s754 + $0x3a8] sm:%s747]
                %1229 = vst [vmem:[%s755 + $0x3b0] sm:%s747] %v1228
                %v1230 = vld [vmem:[%s754 + $0x3b8] sm:%s747]
                %1231 = vst [vmem:[%s755 + $0x3b4] sm:%s747] %v1230
                %v1232 = vld [vmem:[%s754 + $0x3ac] sm:%s747]
                %1233 = vst [vmem:[%s755 + $0x3b8] sm:%s747] %v1232
                %v1234 = vld [vmem:[%s754 + $0x3bc] sm:%s747]
                %1235 = vst [vmem:[%s755 + $0x3bc] sm:%s747] %v1234
                %v1236 = vld [vmem:[%s754 + $0x3c0] sm:%s747]
                %1237 = vst [vmem:[%s755 + $0x3c0] sm:%s747] %v1236
                %v1238 = vld [vmem:[%s754 + $0x3d0] sm:%s747]
                %1239 = vst [vmem:[%s755 + $0x3c4] sm:%s747] %v1238
                %v1240 = vld [vmem:[%s754 + $0x3c4] sm:%s747]
                %1241 = vst [vmem:[%s755 + $0x3c8] sm:%s747] %v1240
                %v1242 = vld [vmem:[%s754 + $0x3d4] sm:%s747]
                %1243 = vst [vmem:[%s755 + $0x3cc] sm:%s747] %v1242
                %v1244 = vld [vmem:[%s754 + $0x3c8] sm:%s747]
                %1245 = vst [vmem:[%s755 + $0x3d0] sm:%s747] %v1244
                %v1246 = vld [vmem:[%s754 + $0x3d8] sm:%s747]
                %1247 = vst [vmem:[%s755 + $0x3d4] sm:%s747] %v1246
                %v1248 = vld [vmem:[%s754 + $0x3cc] sm:%s747]
                %1249 = vst [vmem:[%s755 + $0x3d8] sm:%s747] %v1248
                %v1250 = vld [vmem:[%s754 + $0x3dc] sm:%s747]
                %1251 = vst [vmem:[%s755 + $0x3dc] sm:%s747] %v1250
                %v1252 = vld [vmem:[%s754 + $0x3e0] sm:%s747]
                %1253 = vst [vmem:[%s755 + $0x3e0] sm:%s747] %v1252
                %v1254 = vld [vmem:[%s754 + $0x3f0] sm:%s747]
                %1255 = vst [vmem:[%s755 + $0x3e4] sm:%s747] %v1254
                %v1256 = vld [vmem:[%s754 + $0x3e4] sm:%s747]
                %1257 = vst [vmem:[%s755 + $0x3e8] sm:%s747] %v1256
                %v1258 = vld [vmem:[%s754 + $0x3f4] sm:%s747]
                %1259 = vst [vmem:[%s755 + $0x3ec] sm:%s747] %v1258
                %v1260 = vld [vmem:[%s754 + $0x3e8] sm:%s747]
                %1261 = vst [vmem:[%s755 + $0x3f0] sm:%s747] %v1260
                %v1262 = vld [vmem:[%s754 + $0x3f8] sm:%s747]
                %1263 = vst [vmem:[%s755 + $0x3f4] sm:%s747] %v1262
                %v1264 = vld [vmem:[%s754 + $0x3ec] sm:%s747]
                %1265 = vst [vmem:[%s755 + $0x3f8] sm:%s747] %v1264
                %v1266 = vld [vmem:[%s754 + $0x3fc] sm:%s747]
                %1267 = vst [vmem:[%s755 + $0x3fc] sm:%s747] %v1266
              $region72: #{gcn_apply.3} parent=59 // loop_footer
                %s753 = sadd.s32 1, %s749
              $region73: #{gcn_apply.3} parent=59 // loop_footer_branch
                %748 = sbr.rel target = $region69
              $region74: #{gcn_apply.3} parent=59 // loop_exit
                _
            $region60: #{gcn_apply.3} parent=44 // pred_fallthru
              _
          $region45: #{gcn_apply.3} parent=41 // pred_fallthru
            _
          // Predicated region
          $region46: #{gcn_apply.3} parent=41 // pred_check
            %p205 = pneg %p201
          $region47: #{gcn_apply.3} parent=41 // pred_check_branch
            %207 = sbr.rel (%p205) target = $region49
          $region48: #{gcn_apply.3} parent=41 // pred_region
            %s208 = sshllo.u32 0, 4
            loop: start=0, step=1, limit=1
            $region50: #{gcn_apply.3} parent=48 // loop_pre_header
              _
            $region51: #{gcn_apply.3} parent=48 // loop_header
              %s210 = sphi 0, %s214
              %p211 = scmp.ge.s32.totalorder %s210, 1
              %s215 = sphi %s0, %s0
              %s216 = sphi [#allocation2], [#allocation2]
            $region52: #{gcn_apply.3} parent=48 // loop_header_branch
              %213 = sbr.rel (%p211) target = $region56
            $region53: #{gcn_apply.3} parent=48 // loop_body
              %v217 = vld [vmem:[%s215] sm:%s208]
              %218 = vst [vmem:[%s216] sm:%s208] %v217
              %v219 = vld [vmem:[%s215 + $0x10] sm:%s208]
              %220 = vst [vmem:[%s216 + $0x4] sm:%s208] %v219
              %v221 = vld [vmem:[%s215 + $0x4] sm:%s208]
              %222 = vst [vmem:[%s216 + $0x8] sm:%s208] %v221
              %v223 = vld [vmem:[%s215 + $0x14] sm:%s208]
              %224 = vst [vmem:[%s216 + $0xc] sm:%s208] %v223
              %v225 = vld [vmem:[%s215 + $0x8] sm:%s208]
              %226 = vst [vmem:[%s216 + $0x10] sm:%s208] %v225
              %v227 = vld [vmem:[%s215 + $0x18] sm:%s208]
              %228 = vst [vmem:[%s216 + $0x14] sm:%s208] %v227
              %v229 = vld [vmem:[%s215 + $0xc] sm:%s208]
              %230 = vst [vmem:[%s216 + $0x18] sm:%s208] %v229
              %v231 = vld [vmem:[%s215 + $0x1c] sm:%s208]
              %232 = vst [vmem:[%s216 + $0x1c] sm:%s208] %v231
              %v233 = vld [vmem:[%s215 + $0x20] sm:%s208]
              %234 = vst [vmem:[%s216 + $0x20] sm:%s208] %v233
              %v235 = vld [vmem:[%s215 + $0x30] sm:%s208]
              %236 = vst [vmem:[%s216 + $0x24] sm:%s208] %v235
              %v237 = vld [vmem:[%s215 + $0x24] sm:%s208]
              %238 = vst [vmem:[%s216 + $0x28] sm:%s208] %v237
              %v239 = vld [vmem:[%s215 + $0x34] sm:%s208]
              %240 = vst [vmem:[%s216 + $0x2c] sm:%s208] %v239
              %v241 = vld [vmem:[%s215 + $0x28] sm:%s208]
              %242 = vst [vmem:[%s216 + $0x30] sm:%s208] %v241
              %v243 = vld [vmem:[%s215 + $0x38] sm:%s208]
              %244 = vst [vmem:[%s216 + $0x34] sm:%s208] %v243
              %v245 = vld [vmem:[%s215 + $0x2c] sm:%s208]
              %246 = vst [vmem:[%s216 + $0x38] sm:%s208] %v245
              %v247 = vld [vmem:[%s215 + $0x3c] sm:%s208]
              %248 = vst [vmem:[%s216 + $0x3c] sm:%s208] %v247
              %v249 = vld [vmem:[%s215 + $0x40] sm:%s208]
              %250 = vst [vmem:[%s216 + $0x40] sm:%s208] %v249
              %v251 = vld [vmem:[%s215 + $0x50] sm:%s208]
              %252 = vst [vmem:[%s216 + $0x44] sm:%s208] %v251
              %v253 = vld [vmem:[%s215 + $0x44] sm:%s208]
              %254 = vst [vmem:[%s216 + $0x48] sm:%s208] %v253
              %v255 = vld [vmem:[%s215 + $0x54] sm:%s208]
              %256 = vst [vmem:[%s216 + $0x4c] sm:%s208] %v255
              %v257 = vld [vmem:[%s215 + $0x48] sm:%s208]
              %258 = vst [vmem:[%s216 + $0x50] sm:%s208] %v257
              %v259 = vld [vmem:[%s215 + $0x58] sm:%s208]
              %260 = vst [vmem:[%s216 + $0x54] sm:%s208] %v259
              %v261 = vld [vmem:[%s215 + $0x4c] sm:%s208]
              %262 = vst [vmem:[%s216 + $0x58] sm:%s208] %v261
              %v263 = vld [vmem:[%s215 + $0x5c] sm:%s208]
              %264 = vst [vmem:[%s216 + $0x5c] sm:%s208] %v263
              %v265 = vld [vmem:[%s215 + $0x60] sm:%s208]
              %266 = vst [vmem:[%s216 + $0x60] sm:%s208] %v265
              %v267 = vld [vmem:[%s215 + $0x70] sm:%s208]
              %268 = vst [vmem:[%s216 + $0x64] sm:%s208] %v267
              %v269 = vld [vmem:[%s215 + $0x64] sm:%s208]
              %270 = vst [vmem:[%s216 + $0x68] sm:%s208] %v269
              %v271 = vld [vmem:[%s215 + $0x74] sm:%s208]
              %272 = vst [vmem:[%s216 + $0x6c] sm:%s208] %v271
              %v273 = vld [vmem:[%s215 + $0x68] sm:%s208]
              %274 = vst [vmem:[%s216 + $0x70] sm:%s208] %v273
              %v275 = vld [vmem:[%s215 + $0x78] sm:%s208]
              %276 = vst [vmem:[%s216 + $0x74] sm:%s208] %v275
              %v277 = vld [vmem:[%s215 + $0x6c] sm:%s208]
              %278 = vst [vmem:[%s216 + $0x78] sm:%s208] %v277
              %v279 = vld [vmem:[%s215 + $0x7c] sm:%s208]
              %280 = vst [vmem:[%s216 + $0x7c] sm:%s208] %v279
              %v281 = vld [vmem:[%s215 + $0x80] sm:%s208]
              %282 = vst [vmem:[%s216 + $0x80] sm:%s208] %v281
              %v283 = vld [vmem:[%s215 + $0x90] sm:%s208]
              %284 = vst [vmem:[%s216 + $0x84] sm:%s208] %v283
              %v285 = vld [vmem:[%s215 + $0x84] sm:%s208]
              %286 = vst [vmem:[%s216 + $0x88] sm:%s208] %v285
              %v287 = vld [vmem:[%s215 + $0x94] sm:%s208]
              %288 = vst [vmem:[%s216 + $0x8c] sm:%s208] %v287
              %v289 = vld [vmem:[%s215 + $0x88] sm:%s208]
              %290 = vst [vmem:[%s216 + $0x90] sm:%s208] %v289
              %v291 = vld [vmem:[%s215 + $0x98] sm:%s208]
              %292 = vst [vmem:[%s216 + $0x94] sm:%s208] %v291
              %v293 = vld [vmem:[%s215 + $0x8c] sm:%s208]
              %294 = vst [vmem:[%s216 + $0x98] sm:%s208] %v293
              %v295 = vld [vmem:[%s215 + $0x9c] sm:%s208]
              %296 = vst [vmem:[%s216 + $0x9c] sm:%s208] %v295
              %v297 = vld [vmem:[%s215 + $0xa0] sm:%s208]
              %298 = vst [vmem:[%s216 + $0xa0] sm:%s208] %v297
              %v299 = vld [vmem:[%s215 + $0xb0] sm:%s208]
              %300 = vst [vmem:[%s216 + $0xa4] sm:%s208] %v299
              %v301 = vld [vmem:[%s215 + $0xa4] sm:%s208]
              %302 = vst [vmem:[%s216 + $0xa8] sm:%s208] %v301
              %v303 = vld [vmem:[%s215 + $0xb4] sm:%s208]
              %304 = vst [vmem:[%s216 + $0xac] sm:%s208] %v303
              %v305 = vld [vmem:[%s215 + $0xa8] sm:%s208]
              %306 = vst [vmem:[%s216 + $0xb0] sm:%s208] %v305
              %v307 = vld [vmem:[%s215 + $0xb8] sm:%s208]
              %308 = vst [vmem:[%s216 + $0xb4] sm:%s208] %v307
              %v309 = vld [vmem:[%s215 + $0xac] sm:%s208]
              %310 = vst [vmem:[%s216 + $0xb8] sm:%s208] %v309
              %v311 = vld [vmem:[%s215 + $0xbc] sm:%s208]
              %312 = vst [vmem:[%s216 + $0xbc] sm:%s208] %v311
              %v313 = vld [vmem:[%s215 + $0xc0] sm:%s208]
              %314 = vst [vmem:[%s216 + $0xc0] sm:%s208] %v313
              %v315 = vld [vmem:[%s215 + $0xd0] sm:%s208]
              %316 = vst [vmem:[%s216 + $0xc4] sm:%s208] %v315
              %v317 = vld [vmem:[%s215 + $0xc4] sm:%s208]
              %318 = vst [vmem:[%s216 + $0xc8] sm:%s208] %v317
              %v319 = vld [vmem:[%s215 + $0xd4] sm:%s208]
              %320 = vst [vmem:[%s216 + $0xcc] sm:%s208] %v319
              %v321 = vld [vmem:[%s215 + $0xc8] sm:%s208]
              %322 = vst [vmem:[%s216 + $0xd0] sm:%s208] %v321
              %v323 = vld [vmem:[%s215 + $0xd8] sm:%s208]
              %324 = vst [vmem:[%s216 + $0xd4] sm:%s208] %v323
              %v325 = vld [vmem:[%s215 + $0xcc] sm:%s208]
              %326 = vst [vmem:[%s216 + $0xd8] sm:%s208] %v325
              %v327 = vld [vmem:[%s215 + $0xdc] sm:%s208]
              %328 = vst [vmem:[%s216 + $0xdc] sm:%s208] %v327
              %v329 = vld [vmem:[%s215 + $0xe0] sm:%s208]
              %330 = vst [vmem:[%s216 + $0xe0] sm:%s208] %v329
              %v331 = vld [vmem:[%s215 + $0xf0] sm:%s208]
              %332 = vst [vmem:[%s216 + $0xe4] sm:%s208] %v331
              %v333 = vld [vmem:[%s215 + $0xe4] sm:%s208]
              %334 = vst [vmem:[%s216 + $0xe8] sm:%s208] %v333
              %v335 = vld [vmem:[%s215 + $0xf4] sm:%s208]
              %336 = vst [vmem:[%s216 + $0xec] sm:%s208] %v335
              %v337 = vld [vmem:[%s215 + $0xe8] sm:%s208]
              %338 = vst [vmem:[%s216 + $0xf0] sm:%s208] %v337
              %v339 = vld [vmem:[%s215 + $0xf8] sm:%s208]
              %340 = vst [vmem:[%s216 + $0xf4] sm:%s208] %v339
              %v341 = vld [vmem:[%s215 + $0xec] sm:%s208]
              %342 = vst [vmem:[%s216 + $0xf8] sm:%s208] %v341
              %v343 = vld [vmem:[%s215 + $0xfc] sm:%s208]
              %344 = vst [vmem:[%s216 + $0xfc] sm:%s208] %v343
              %v345 = vld [vmem:[%s215 + $0x100] sm:%s208]
              %346 = vst [vmem:[%s216 + $0x100] sm:%s208] %v345
              %v347 = vld [vmem:[%s215 + $0x110] sm:%s208]
              %348 = vst [vmem:[%s216 + $0x104] sm:%s208] %v347
              %v349 = vld [vmem:[%s215 + $0x104] sm:%s208]
              %350 = vst [vmem:[%s216 + $0x108] sm:%s208] %v349
              %v351 = vld [vmem:[%s215 + $0x114] sm:%s208]
              %352 = vst [vmem:[%s216 + $0x10c] sm:%s208] %v351
              %v353 = vld [vmem:[%s215 + $0x108] sm:%s208]
              %354 = vst [vmem:[%s216 + $0x110] sm:%s208] %v353
              %v355 = vld [vmem:[%s215 + $0x118] sm:%s208]
              %356 = vst [vmem:[%s216 + $0x114] sm:%s208] %v355
              %v357 = vld [vmem:[%s215 + $0x10c] sm:%s208]
              %358 = vst [vmem:[%s216 + $0x118] sm:%s208] %v357
              %v359 = vld [vmem:[%s215 + $0x11c] sm:%s208]
              %360 = vst [vmem:[%s216 + $0x11c] sm:%s208] %v359
              %v361 = vld [vmem:[%s215 + $0x120] sm:%s208]
              %362 = vst [vmem:[%s216 + $0x120] sm:%s208] %v361
              %v363 = vld [vmem:[%s215 + $0x130] sm:%s208]
              %364 = vst [vmem:[%s216 + $0x124] sm:%s208] %v363
              %v365 = vld [vmem:[%s215 + $0x124] sm:%s208]
              %366 = vst [vmem:[%s216 + $0x128] sm:%s208] %v365
              %v367 = vld [vmem:[%s215 + $0x134] sm:%s208]
              %368 = vst [vmem:[%s216 + $0x12c] sm:%s208] %v367
              %v369 = vld [vmem:[%s215 + $0x128] sm:%s208]
              %370 = vst [vmem:[%s216 + $0x130] sm:%s208] %v369
              %v371 = vld [vmem:[%s215 + $0x138] sm:%s208]
              %372 = vst [vmem:[%s216 + $0x134] sm:%s208] %v371
              %v373 = vld [vmem:[%s215 + $0x12c] sm:%s208]
              %374 = vst [vmem:[%s216 + $0x138] sm:%s208] %v373
              %v375 = vld [vmem:[%s215 + $0x13c] sm:%s208]
              %376 = vst [vmem:[%s216 + $0x13c] sm:%s208] %v375
              %v377 = vld [vmem:[%s215 + $0x140] sm:%s208]
              %378 = vst [vmem:[%s216 + $0x140] sm:%s208] %v377
              %v379 = vld [vmem:[%s215 + $0x150] sm:%s208]
              %380 = vst [vmem:[%s216 + $0x144] sm:%s208] %v379
              %v381 = vld [vmem:[%s215 + $0x144] sm:%s208]
              %382 = vst [vmem:[%s216 + $0x148] sm:%s208] %v381
              %v383 = vld [vmem:[%s215 + $0x154] sm:%s208]
              %384 = vst [vmem:[%s216 + $0x14c] sm:%s208] %v383
              %v385 = vld [vmem:[%s215 + $0x148] sm:%s208]
              %386 = vst [vmem:[%s216 + $0x150] sm:%s208] %v385
              %v387 = vld [vmem:[%s215 + $0x158] sm:%s208]
              %388 = vst [vmem:[%s216 + $0x154] sm:%s208] %v387
              %v389 = vld [vmem:[%s215 + $0x14c] sm:%s208]
              %390 = vst [vmem:[%s216 + $0x158] sm:%s208] %v389
              %v391 = vld [vmem:[%s215 + $0x15c] sm:%s208]
              %392 = vst [vmem:[%s216 + $0x15c] sm:%s208] %v391
              %v393 = vld [vmem:[%s215 + $0x160] sm:%s208]
              %394 = vst [vmem:[%s216 + $0x160] sm:%s208] %v393
              %v395 = vld [vmem:[%s215 + $0x170] sm:%s208]
              %396 = vst [vmem:[%s216 + $0x164] sm:%s208] %v395
              %v397 = vld [vmem:[%s215 + $0x164] sm:%s208]
              %398 = vst [vmem:[%s216 + $0x168] sm:%s208] %v397
              %v399 = vld [vmem:[%s215 + $0x174] sm:%s208]
              %400 = vst [vmem:[%s216 + $0x16c] sm:%s208] %v399
              %v401 = vld [vmem:[%s215 + $0x168] sm:%s208]
              %402 = vst [vmem:[%s216 + $0x170] sm:%s208] %v401
              %v403 = vld [vmem:[%s215 + $0x178] sm:%s208]
              %404 = vst [vmem:[%s216 + $0x174] sm:%s208] %v403
              %v405 = vld [vmem:[%s215 + $0x16c] sm:%s208]
              %406 = vst [vmem:[%s216 + $0x178] sm:%s208] %v405
              %v407 = vld [vmem:[%s215 + $0x17c] sm:%s208]
              %408 = vst [vmem:[%s216 + $0x17c] sm:%s208] %v407
              %v409 = vld [vmem:[%s215 + $0x180] sm:%s208]
              %410 = vst [vmem:[%s216 + $0x180] sm:%s208] %v409
              %v411 = vld [vmem:[%s215 + $0x190] sm:%s208]
              %412 = vst [vmem:[%s216 + $0x184] sm:%s208] %v411
              %v413 = vld [vmem:[%s215 + $0x184] sm:%s208]
              %414 = vst [vmem:[%s216 + $0x188] sm:%s208] %v413
              %v415 = vld [vmem:[%s215 + $0x194] sm:%s208]
              %416 = vst [vmem:[%s216 + $0x18c] sm:%s208] %v415
              %v417 = vld [vmem:[%s215 + $0x188] sm:%s208]
              %418 = vst [vmem:[%s216 + $0x190] sm:%s208] %v417
              %v419 = vld [vmem:[%s215 + $0x198] sm:%s208]
              %420 = vst [vmem:[%s216 + $0x194] sm:%s208] %v419
              %v421 = vld [vmem:[%s215 + $0x18c] sm:%s208]
              %422 = vst [vmem:[%s216 + $0x198] sm:%s208] %v421
              %v423 = vld [vmem:[%s215 + $0x19c] sm:%s208]
              %424 = vst [vmem:[%s216 + $0x19c] sm:%s208] %v423
              %v425 = vld [vmem:[%s215 + $0x1a0] sm:%s208]
              %426 = vst [vmem:[%s216 + $0x1a0] sm:%s208] %v425
              %v427 = vld [vmem:[%s215 + $0x1b0] sm:%s208]
              %428 = vst [vmem:[%s216 + $0x1a4] sm:%s208] %v427
              %v429 = vld [vmem:[%s215 + $0x1a4] sm:%s208]
              %430 = vst [vmem:[%s216 + $0x1a8] sm:%s208] %v429
              %v431 = vld [vmem:[%s215 + $0x1b4] sm:%s208]
              %432 = vst [vmem:[%s216 + $0x1ac] sm:%s208] %v431
              %v433 = vld [vmem:[%s215 + $0x1a8] sm:%s208]
              %434 = vst [vmem:[%s216 + $0x1b0] sm:%s208] %v433
              %v435 = vld [vmem:[%s215 + $0x1b8] sm:%s208]
              %436 = vst [vmem:[%s216 + $0x1b4] sm:%s208] %v435
              %v437 = vld [vmem:[%s215 + $0x1ac] sm:%s208]
              %438 = vst [vmem:[%s216 + $0x1b8] sm:%s208] %v437
              %v439 = vld [vmem:[%s215 + $0x1bc] sm:%s208]
              %440 = vst [vmem:[%s216 + $0x1bc] sm:%s208] %v439
              %v441 = vld [vmem:[%s215 + $0x1c0] sm:%s208]
              %442 = vst [vmem:[%s216 + $0x1c0] sm:%s208] %v441
              %v443 = vld [vmem:[%s215 + $0x1d0] sm:%s208]
              %444 = vst [vmem:[%s216 + $0x1c4] sm:%s208] %v443
              %v445 = vld [vmem:[%s215 + $0x1c4] sm:%s208]
              %446 = vst [vmem:[%s216 + $0x1c8] sm:%s208] %v445
              %v447 = vld [vmem:[%s215 + $0x1d4] sm:%s208]
              %448 = vst [vmem:[%s216 + $0x1cc] sm:%s208] %v447
              %v449 = vld [vmem:[%s215 + $0x1c8] sm:%s208]
              %450 = vst [vmem:[%s216 + $0x1d0] sm:%s208] %v449
              %v451 = vld [vmem:[%s215 + $0x1d8] sm:%s208]
              %452 = vst [vmem:[%s216 + $0x1d4] sm:%s208] %v451
              %v453 = vld [vmem:[%s215 + $0x1cc] sm:%s208]
              %454 = vst [vmem:[%s216 + $0x1d8] sm:%s208] %v453
              %v455 = vld [vmem:[%s215 + $0x1dc] sm:%s208]
              %456 = vst [vmem:[%s216 + $0x1dc] sm:%s208] %v455
              %v457 = vld [vmem:[%s215 + $0x1e0] sm:%s208]
              %458 = vst [vmem:[%s216 + $0x1e0] sm:%s208] %v457
              %v459 = vld [vmem:[%s215 + $0x1f0] sm:%s208]
              %460 = vst [vmem:[%s216 + $0x1e4] sm:%s208] %v459
              %v461 = vld [vmem:[%s215 + $0x1e4] sm:%s208]
              %462 = vst [vmem:[%s216 + $0x1e8] sm:%s208] %v461
              %v463 = vld [vmem:[%s215 + $0x1f4] sm:%s208]
              %464 = vst [vmem:[%s216 + $0x1ec] sm:%s208] %v463
              %v465 = vld [vmem:[%s215 + $0x1e8] sm:%s208]
              %466 = vst [vmem:[%s216 + $0x1f0] sm:%s208] %v465
              %v467 = vld [vmem:[%s215 + $0x1f8] sm:%s208]
              %468 = vst [vmem:[%s216 + $0x1f4] sm:%s208] %v467
              %v469 = vld [vmem:[%s215 + $0x1ec] sm:%s208]
              %470 = vst [vmem:[%s216 + $0x1f8] sm:%s208] %v469
              %v471 = vld [vmem:[%s215 + $0x1fc] sm:%s208]
              %472 = vst [vmem:[%s216 + $0x1fc] sm:%s208] %v471
              %v473 = vld [vmem:[%s215 + $0x200] sm:%s208]
              %474 = vst [vmem:[%s216 + $0x200] sm:%s208] %v473
              %v475 = vld [vmem:[%s215 + $0x210] sm:%s208]
              %476 = vst [vmem:[%s216 + $0x204] sm:%s208] %v475
              %v477 = vld [vmem:[%s215 + $0x204] sm:%s208]
              %478 = vst [vmem:[%s216 + $0x208] sm:%s208] %v477
              %v479 = vld [vmem:[%s215 + $0x214] sm:%s208]
              %480 = vst [vmem:[%s216 + $0x20c] sm:%s208] %v479
              %v481 = vld [vmem:[%s215 + $0x208] sm:%s208]
              %482 = vst [vmem:[%s216 + $0x210] sm:%s208] %v481
              %v483 = vld [vmem:[%s215 + $0x218] sm:%s208]
              %484 = vst [vmem:[%s216 + $0x214] sm:%s208] %v483
              %v485 = vld [vmem:[%s215 + $0x20c] sm:%s208]
              %486 = vst [vmem:[%s216 + $0x218] sm:%s208] %v485
              %v487 = vld [vmem:[%s215 + $0x21c] sm:%s208]
              %488 = vst [vmem:[%s216 + $0x21c] sm:%s208] %v487
              %v489 = vld [vmem:[%s215 + $0x220] sm:%s208]
              %490 = vst [vmem:[%s216 + $0x220] sm:%s208] %v489
              %v491 = vld [vmem:[%s215 + $0x230] sm:%s208]
              %492 = vst [vmem:[%s216 + $0x224] sm:%s208] %v491
              %v493 = vld [vmem:[%s215 + $0x224] sm:%s208]
              %494 = vst [vmem:[%s216 + $0x228] sm:%s208] %v493
              %v495 = vld [vmem:[%s215 + $0x234] sm:%s208]
              %496 = vst [vmem:[%s216 + $0x22c] sm:%s208] %v495
              %v497 = vld [vmem:[%s215 + $0x228] sm:%s208]
              %498 = vst [vmem:[%s216 + $0x230] sm:%s208] %v497
              %v499 = vld [vmem:[%s215 + $0x238] sm:%s208]
              %500 = vst [vmem:[%s216 + $0x234] sm:%s208] %v499
              %v501 = vld [vmem:[%s215 + $0x22c] sm:%s208]
              %502 = vst [vmem:[%s216 + $0x238] sm:%s208] %v501
              %v503 = vld [vmem:[%s215 + $0x23c] sm:%s208]
              %504 = vst [vmem:[%s216 + $0x23c] sm:%s208] %v503
              %v505 = vld [vmem:[%s215 + $0x240] sm:%s208]
              %506 = vst [vmem:[%s216 + $0x240] sm:%s208] %v505
              %v507 = vld [vmem:[%s215 + $0x250] sm:%s208]
              %508 = vst [vmem:[%s216 + $0x244] sm:%s208] %v507
              %v509 = vld [vmem:[%s215 + $0x244] sm:%s208]
              %510 = vst [vmem:[%s216 + $0x248] sm:%s208] %v509
              %v511 = vld [vmem:[%s215 + $0x254] sm:%s208]
              %512 = vst [vmem:[%s216 + $0x24c] sm:%s208] %v511
              %v513 = vld [vmem:[%s215 + $0x248] sm:%s208]
              %514 = vst [vmem:[%s216 + $0x250] sm:%s208] %v513
              %v515 = vld [vmem:[%s215 + $0x258] sm:%s208]
              %516 = vst [vmem:[%s216 + $0x254] sm:%s208] %v515
              %v517 = vld [vmem:[%s215 + $0x24c] sm:%s208]
              %518 = vst [vmem:[%s216 + $0x258] sm:%s208] %v517
              %v519 = vld [vmem:[%s215 + $0x25c] sm:%s208]
              %520 = vst [vmem:[%s216 + $0x25c] sm:%s208] %v519
              %v521 = vld [vmem:[%s215 + $0x260] sm:%s208]
              %522 = vst [vmem:[%s216 + $0x260] sm:%s208] %v521
              %v523 = vld [vmem:[%s215 + $0x270] sm:%s208]
              %524 = vst [vmem:[%s216 + $0x264] sm:%s208] %v523
              %v525 = vld [vmem:[%s215 + $0x264] sm:%s208]
              %526 = vst [vmem:[%s216 + $0x268] sm:%s208] %v525
              %v527 = vld [vmem:[%s215 + $0x274] sm:%s208]
              %528 = vst [vmem:[%s216 + $0x26c] sm:%s208] %v527
              %v529 = vld [vmem:[%s215 + $0x268] sm:%s208]
              %530 = vst [vmem:[%s216 + $0x270] sm:%s208] %v529
              %v531 = vld [vmem:[%s215 + $0x278] sm:%s208]
              %532 = vst [vmem:[%s216 + $0x274] sm:%s208] %v531
              %v533 = vld [vmem:[%s215 + $0x26c] sm:%s208]
              %534 = vst [vmem:[%s216 + $0x278] sm:%s208] %v533
              %v535 = vld [vmem:[%s215 + $0x27c] sm:%s208]
              %536 = vst [vmem:[%s216 + $0x27c] sm:%s208] %v535
              %v537 = vld [vmem:[%s215 + $0x280] sm:%s208]
              %538 = vst [vmem:[%s216 + $0x280] sm:%s208] %v537
              %v539 = vld [vmem:[%s215 + $0x290] sm:%s208]
              %540 = vst [vmem:[%s216 + $0x284] sm:%s208] %v539
              %v541 = vld [vmem:[%s215 + $0x284] sm:%s208]
              %542 = vst [vmem:[%s216 + $0x288] sm:%s208] %v541
              %v543 = vld [vmem:[%s215 + $0x294] sm:%s208]
              %544 = vst [vmem:[%s216 + $0x28c] sm:%s208] %v543
              %v545 = vld [vmem:[%s215 + $0x288] sm:%s208]
              %546 = vst [vmem:[%s216 + $0x290] sm:%s208] %v545
              %v547 = vld [vmem:[%s215 + $0x298] sm:%s208]
              %548 = vst [vmem:[%s216 + $0x294] sm:%s208] %v547
              %v549 = vld [vmem:[%s215 + $0x28c] sm:%s208]
              %550 = vst [vmem:[%s216 + $0x298] sm:%s208] %v549
              %v551 = vld [vmem:[%s215 + $0x29c] sm:%s208]
              %552 = vst [vmem:[%s216 + $0x29c] sm:%s208] %v551
              %v553 = vld [vmem:[%s215 + $0x2a0] sm:%s208]
              %554 = vst [vmem:[%s216 + $0x2a0] sm:%s208] %v553
              %v555 = vld [vmem:[%s215 + $0x2b0] sm:%s208]
              %556 = vst [vmem:[%s216 + $0x2a4] sm:%s208] %v555
              %v557 = vld [vmem:[%s215 + $0x2a4] sm:%s208]
              %558 = vst [vmem:[%s216 + $0x2a8] sm:%s208] %v557
              %v559 = vld [vmem:[%s215 + $0x2b4] sm:%s208]
              %560 = vst [vmem:[%s216 + $0x2ac] sm:%s208] %v559
              %v561 = vld [vmem:[%s215 + $0x2a8] sm:%s208]
              %562 = vst [vmem:[%s216 + $0x2b0] sm:%s208] %v561
              %v563 = vld [vmem:[%s215 + $0x2b8] sm:%s208]
              %564 = vst [vmem:[%s216 + $0x2b4] sm:%s208] %v563
              %v565 = vld [vmem:[%s215 + $0x2ac] sm:%s208]
              %566 = vst [vmem:[%s216 + $0x2b8] sm:%s208] %v565
              %v567 = vld [vmem:[%s215 + $0x2bc] sm:%s208]
              %568 = vst [vmem:[%s216 + $0x2bc] sm:%s208] %v567
              %v569 = vld [vmem:[%s215 + $0x2c0] sm:%s208]
              %570 = vst [vmem:[%s216 + $0x2c0] sm:%s208] %v569
              %v571 = vld [vmem:[%s215 + $0x2d0] sm:%s208]
              %572 = vst [vmem:[%s216 + $0x2c4] sm:%s208] %v571
              %v573 = vld [vmem:[%s215 + $0x2c4] sm:%s208]
              %574 = vst [vmem:[%s216 + $0x2c8] sm:%s208] %v573
              %v575 = vld [vmem:[%s215 + $0x2d4] sm:%s208]
              %576 = vst [vmem:[%s216 + $0x2cc] sm:%s208] %v575
              %v577 = vld [vmem:[%s215 + $0x2c8] sm:%s208]
              %578 = vst [vmem:[%s216 + $0x2d0] sm:%s208] %v577
              %v579 = vld [vmem:[%s215 + $0x2d8] sm:%s208]
              %580 = vst [vmem:[%s216 + $0x2d4] sm:%s208] %v579
              %v581 = vld [vmem:[%s215 + $0x2cc] sm:%s208]
              %582 = vst [vmem:[%s216 + $0x2d8] sm:%s208] %v581
              %v583 = vld [vmem:[%s215 + $0x2dc] sm:%s208]
              %584 = vst [vmem:[%s216 + $0x2dc] sm:%s208] %v583
              %v585 = vld [vmem:[%s215 + $0x2e0] sm:%s208]
              %586 = vst [vmem:[%s216 + $0x2e0] sm:%s208] %v585
              %v587 = vld [vmem:[%s215 + $0x2f0] sm:%s208]
              %588 = vst [vmem:[%s216 + $0x2e4] sm:%s208] %v587
              %v589 = vld [vmem:[%s215 + $0x2e4] sm:%s208]
              %590 = vst [vmem:[%s216 + $0x2e8] sm:%s208] %v589
              %v591 = vld [vmem:[%s215 + $0x2f4] sm:%s208]
              %592 = vst [vmem:[%s216 + $0x2ec] sm:%s208] %v591
              %v593 = vld [vmem:[%s215 + $0x2e8] sm:%s208]
              %594 = vst [vmem:[%s216 + $0x2f0] sm:%s208] %v593
              %v595 = vld [vmem:[%s215 + $0x2f8] sm:%s208]
              %596 = vst [vmem:[%s216 + $0x2f4] sm:%s208] %v595
              %v597 = vld [vmem:[%s215 + $0x2ec] sm:%s208]
              %598 = vst [vmem:[%s216 + $0x2f8] sm:%s208] %v597
              %v599 = vld [vmem:[%s215 + $0x2fc] sm:%s208]
              %600 = vst [vmem:[%s216 + $0x2fc] sm:%s208] %v599
              %v601 = vld [vmem:[%s215 + $0x300] sm:%s208]
              %602 = vst [vmem:[%s216 + $0x300] sm:%s208] %v601
              %v603 = vld [vmem:[%s215 + $0x310] sm:%s208]
              %604 = vst [vmem:[%s216 + $0x304] sm:%s208] %v603
              %v605 = vld [vmem:[%s215 + $0x304] sm:%s208]
              %606 = vst [vmem:[%s216 + $0x308] sm:%s208] %v605
              %v607 = vld [vmem:[%s215 + $0x314] sm:%s208]
              %608 = vst [vmem:[%s216 + $0x30c] sm:%s208] %v607
              %v609 = vld [vmem:[%s215 + $0x308] sm:%s208]
              %610 = vst [vmem:[%s216 + $0x310] sm:%s208] %v609
              %v611 = vld [vmem:[%s215 + $0x318] sm:%s208]
              %612 = vst [vmem:[%s216 + $0x314] sm:%s208] %v611
              %v613 = vld [vmem:[%s215 + $0x30c] sm:%s208]
              %614 = vst [vmem:[%s216 + $0x318] sm:%s208] %v613
              %v615 = vld [vmem:[%s215 + $0x31c] sm:%s208]
              %616 = vst [vmem:[%s216 + $0x31c] sm:%s208] %v615
              %v617 = vld [vmem:[%s215 + $0x320] sm:%s208]
              %618 = vst [vmem:[%s216 + $0x320] sm:%s208] %v617
              %v619 = vld [vmem:[%s215 + $0x330] sm:%s208]
              %620 = vst [vmem:[%s216 + $0x324] sm:%s208] %v619
              %v621 = vld [vmem:[%s215 + $0x324] sm:%s208]
              %622 = vst [vmem:[%s216 + $0x328] sm:%s208] %v621
              %v623 = vld [vmem:[%s215 + $0x334] sm:%s208]
              %624 = vst [vmem:[%s216 + $0x32c] sm:%s208] %v623
              %v625 = vld [vmem:[%s215 + $0x328] sm:%s208]
              %626 = vst [vmem:[%s216 + $0x330] sm:%s208] %v625
              %v627 = vld [vmem:[%s215 + $0x338] sm:%s208]
              %628 = vst [vmem:[%s216 + $0x334] sm:%s208] %v627
              %v629 = vld [vmem:[%s215 + $0x32c] sm:%s208]
              %630 = vst [vmem:[%s216 + $0x338] sm:%s208] %v629
              %v631 = vld [vmem:[%s215 + $0x33c] sm:%s208]
              %632 = vst [vmem:[%s216 + $0x33c] sm:%s208] %v631
              %v633 = vld [vmem:[%s215 + $0x340] sm:%s208]
              %634 = vst [vmem:[%s216 + $0x340] sm:%s208] %v633
              %v635 = vld [vmem:[%s215 + $0x350] sm:%s208]
              %636 = vst [vmem:[%s216 + $0x344] sm:%s208] %v635
              %v637 = vld [vmem:[%s215 + $0x344] sm:%s208]
              %638 = vst [vmem:[%s216 + $0x348] sm:%s208] %v637
              %v639 = vld [vmem:[%s215 + $0x354] sm:%s208]
              %640 = vst [vmem:[%s216 + $0x34c] sm:%s208] %v639
              %v641 = vld [vmem:[%s215 + $0x348] sm:%s208]
              %642 = vst [vmem:[%s216 + $0x350] sm:%s208] %v641
              %v643 = vld [vmem:[%s215 + $0x358] sm:%s208]
              %644 = vst [vmem:[%s216 + $0x354] sm:%s208] %v643
              %v645 = vld [vmem:[%s215 + $0x34c] sm:%s208]
              %646 = vst [vmem:[%s216 + $0x358] sm:%s208] %v645
              %v647 = vld [vmem:[%s215 + $0x35c] sm:%s208]
              %648 = vst [vmem:[%s216 + $0x35c] sm:%s208] %v647
              %v649 = vld [vmem:[%s215 + $0x360] sm:%s208]
              %650 = vst [vmem:[%s216 + $0x360] sm:%s208] %v649
              %v651 = vld [vmem:[%s215 + $0x370] sm:%s208]
              %652 = vst [vmem:[%s216 + $0x364] sm:%s208] %v651
              %v653 = vld [vmem:[%s215 + $0x364] sm:%s208]
              %654 = vst [vmem:[%s216 + $0x368] sm:%s208] %v653
              %v655 = vld [vmem:[%s215 + $0x374] sm:%s208]
              %656 = vst [vmem:[%s216 + $0x36c] sm:%s208] %v655
              %v657 = vld [vmem:[%s215 + $0x368] sm:%s208]
              %658 = vst [vmem:[%s216 + $0x370] sm:%s208] %v657
              %v659 = vld [vmem:[%s215 + $0x378] sm:%s208]
              %660 = vst [vmem:[%s216 + $0x374] sm:%s208] %v659
              %v661 = vld [vmem:[%s215 + $0x36c] sm:%s208]
              %662 = vst [vmem:[%s216 + $0x378] sm:%s208] %v661
              %v663 = vld [vmem:[%s215 + $0x37c] sm:%s208]
              %664 = vst [vmem:[%s216 + $0x37c] sm:%s208] %v663
              %v665 = vld [vmem:[%s215 + $0x380] sm:%s208]
              %666 = vst [vmem:[%s216 + $0x380] sm:%s208] %v665
              %v667 = vld [vmem:[%s215 + $0x390] sm:%s208]
              %668 = vst [vmem:[%s216 + $0x384] sm:%s208] %v667
              %v669 = vld [vmem:[%s215 + $0x384] sm:%s208]
              %670 = vst [vmem:[%s216 + $0x388] sm:%s208] %v669
              %v671 = vld [vmem:[%s215 + $0x394] sm:%s208]
              %672 = vst [vmem:[%s216 + $0x38c] sm:%s208] %v671
              %v673 = vld [vmem:[%s215 + $0x388] sm:%s208]
              %674 = vst [vmem:[%s216 + $0x390] sm:%s208] %v673
              %v675 = vld [vmem:[%s215 + $0x398] sm:%s208]
              %676 = vst [vmem:[%s216 + $0x394] sm:%s208] %v675
              %v677 = vld [vmem:[%s215 + $0x38c] sm:%s208]
              %678 = vst [vmem:[%s216 + $0x398] sm:%s208] %v677
              %v679 = vld [vmem:[%s215 + $0x39c] sm:%s208]
              %680 = vst [vmem:[%s216 + $0x39c] sm:%s208] %v679
              %v681 = vld [vmem:[%s215 + $0x3a0] sm:%s208]
              %682 = vst [vmem:[%s216 + $0x3a0] sm:%s208] %v681
              %v683 = vld [vmem:[%s215 + $0x3b0] sm:%s208]
              %684 = vst [vmem:[%s216 + $0x3a4] sm:%s208] %v683
              %v685 = vld [vmem:[%s215 + $0x3a4] sm:%s208]
              %686 = vst [vmem:[%s216 + $0x3a8] sm:%s208] %v685
              %v687 = vld [vmem:[%s215 + $0x3b4] sm:%s208]
              %688 = vst [vmem:[%s216 + $0x3ac] sm:%s208] %v687
              %v689 = vld [vmem:[%s215 + $0x3a8] sm:%s208]
              %690 = vst [vmem:[%s216 + $0x3b0] sm:%s208] %v689
              %v691 = vld [vmem:[%s215 + $0x3b8] sm:%s208]
              %692 = vst [vmem:[%s216 + $0x3b4] sm:%s208] %v691
              %v693 = vld [vmem:[%s215 + $0x3ac] sm:%s208]
              %694 = vst [vmem:[%s216 + $0x3b8] sm:%s208] %v693
              %v695 = vld [vmem:[%s215 + $0x3bc] sm:%s208]
              %696 = vst [vmem:[%s216 + $0x3bc] sm:%s208] %v695
              %v697 = vld [vmem:[%s215 + $0x3c0] sm:%s208]
              %698 = vst [vmem:[%s216 + $0x3c0] sm:%s208] %v697
              %v699 = vld [vmem:[%s215 + $0x3d0] sm:%s208]
              %700 = vst [vmem:[%s216 + $0x3c4] sm:%s208] %v699
              %v701 = vld [vmem:[%s215 + $0x3c4] sm:%s208]
              %702 = vst [vmem:[%s216 + $0x3c8] sm:%s208] %v701
              %v703 = vld [vmem:[%s215 + $0x3d4] sm:%s208]
              %704 = vst [vmem:[%s216 + $0x3cc] sm:%s208] %v703
              %v705 = vld [vmem:[%s215 + $0x3c8] sm:%s208]
              %706 = vst [vmem:[%s216 + $0x3d0] sm:%s208] %v705
              %v707 = vld [vmem:[%s215 + $0x3d8] sm:%s208]
              %708 = vst [vmem:[%s216 + $0x3d4] sm:%s208] %v707
              %v709 = vld [vmem:[%s215 + $0x3cc] sm:%s208]
              %710 = vst [vmem:[%s216 + $0x3d8] sm:%s208] %v709
              %v711 = vld [vmem:[%s215 + $0x3dc] sm:%s208]
              %712 = vst [vmem:[%s216 + $0x3dc] sm:%s208] %v711
              %v713 = vld [vmem:[%s215 + $0x3e0] sm:%s208]
              %714 = vst [vmem:[%s216 + $0x3e0] sm:%s208] %v713
              %v715 = vld [vmem:[%s215 + $0x3f0] sm:%s208]
              %716 = vst [vmem:[%s216 + $0x3e4] sm:%s208] %v715
              %v717 = vld [vmem:[%s215 + $0x3e4] sm:%s208]
              %718 = vst [vmem:[%s216 + $0x3e8] sm:%s208] %v717
              %v719 = vld [vmem:[%s215 + $0x3f4] sm:%s208]
              %720 = vst [vmem:[%s216 + $0x3ec] sm:%s208] %v719
              %v721 = vld [vmem:[%s215 + $0x3e8] sm:%s208]
              %722 = vst [vmem:[%s216 + $0x3f0] sm:%s208] %v721
              %v723 = vld [vmem:[%s215 + $0x3f8] sm:%s208]
              %724 = vst [vmem:[%s216 + $0x3f4] sm:%s208] %v723
              %v725 = vld [vmem:[%s215 + $0x3ec] sm:%s208]
              %726 = vst [vmem:[%s216 + $0x3f8] sm:%s208] %v725
              %v727 = vld [vmem:[%s215 + $0x3fc] sm:%s208]
              %728 = vst [vmem:[%s216 + $0x3fc] sm:%s208] %v727
            $region54: #{gcn_apply.3} parent=48 // loop_footer
              %s214 = sadd.s32 1, %s210
            $region55: #{gcn_apply.3} parent=48 // loop_footer_branch
              %209 = sbr.rel target = $region51
            $region56: #{gcn_apply.3} parent=48 // loop_exit
              _
          $region49: #{gcn_apply.3} parent=41 // pred_fallthru
            _
          // Predicated region
          $region75: #{gcn_apply.3} parent=41 // pred_check
            _
          $region76: #{gcn_apply.3} parent=41 // pred_check_branch
            %1270 = sbr.rel (0) target = $region78
          $region77: #{gcn_apply.3} parent=41 // pred_region
            %1271 = vsyncadd [#allocation4], 16384
          $region78: #{gcn_apply.3} parent=41 // pred_fallthru
            _
          %s1272 = smul.u32 4, 64
          %s1273 = smul.u32 %s1272, 4
          %s1274 = sshll.u32 %s1273, 4
          %1275 = dma.done [#allocation4], %s1274
      $region40: #{gcn_apply.3} parent=35 // pred_fallthru
        _
      %s1276 = sshra.s32 %s193, 4
      %s1277 = sand.u32 %s193, 15
      %s1278 = smul.u32 %s1276, 4
      %s1279 = smul.addr %s1278, 8
      %s1280 = scalar_lea.vmem [#allocation2], %s1279
      %v1281 = vld [vmem:[%s1280] sm:$0xff]
      %v1282 = vld [vmem:[%s1280 + $0x8] sm:$0xff]
      %v1283 = vld [vmem:[%s1280 + $0x10] sm:$0xff]
      %v1284 = vld [vmem:[%s1280 + $0x18] sm:$0xff]
      %v1285 = vld [vmem:[%s1280 + $0x20] sm:$0xff]
      %v1286 = vld [vmem:[%s1280 + $0x28] sm:$0xff]
      %v1287 = vld [vmem:[%s1280 + $0x30] sm:$0xff]
      %v1288 = vld [vmem:[%s1280 + $0x38] sm:$0xff]
      %v1289 = vld [vmem:[%s1280 + $0x40] sm:$0xff]
      %v1290 = vld [vmem:[%s1280 + $0x48] sm:$0xff]
      %v1291 = vld [vmem:[%s1280 + $0x50] sm:$0xff]
      %v1292 = vld [vmem:[%s1280 + $0x58] sm:$0xff]
      %v1293 = vld [vmem:[%s1280 + $0x60] sm:$0xff]
      %v1294 = vld [vmem:[%s1280 + $0x68] sm:$0xff]
      %v1295 = vld [vmem:[%s1280 + $0x70] sm:$0xff]
      %v1296 = vld [vmem:[%s1280 + $0x78] sm:$0xff]
      %v1297 = vld [vmem:[%s1280 + $0x80] sm:$0xff]
      %v1298 = vld [vmem:[%s1280 + $0x88] sm:$0xff]
      %v1299 = vld [vmem:[%s1280 + $0x90] sm:$0xff]
      %v1300 = vld [vmem:[%s1280 + $0x98] sm:$0xff]
      %v1301 = vld [vmem:[%s1280 + $0xa0] sm:$0xff]
      %v1302 = vld [vmem:[%s1280 + $0xa8] sm:$0xff]
      %v1303 = vld [vmem:[%s1280 + $0xb0] sm:$0xff]
      %v1304 = vld [vmem:[%s1280 + $0xb8] sm:$0xff]
      %v1305 = vld [vmem:[%s1280 + $0xc0] sm:$0xff]
      %v1306 = vld [vmem:[%s1280 + $0xc8] sm:$0xff]
      %v1307 = vld [vmem:[%s1280 + $0xd0] sm:$0xff]
      %v1308 = vld [vmem:[%s1280 + $0xd8] sm:$0xff]
      %v1309 = vld [vmem:[%s1280 + $0xe0] sm:$0xff]
      %v1310 = vld [vmem:[%s1280 + $0xe8] sm:$0xff]
      %v1311 = vld [vmem:[%s1280 + $0xf0] sm:$0xff]
      %v1312 = vld [vmem:[%s1280 + $0xf8] sm:$0xff]
      %v1313 = vld [vmem:[%s1280 + $0x100] sm:$0xff]
      %v1314 = vld [vmem:[%s1280 + $0x108] sm:$0xff]
      %v1315 = vld [vmem:[%s1280 + $0x110] sm:$0xff]
      %v1316 = vld [vmem:[%s1280 + $0x118] sm:$0xff]
      %v1317 = vld [vmem:[%s1280 + $0x120] sm:$0xff]
      %v1318 = vld [vmem:[%s1280 + $0x128] sm:$0xff]
      %v1319 = vld [vmem:[%s1280 + $0x130] sm:$0xff]
      %v1320 = vld [vmem:[%s1280 + $0x138] sm:$0xff]
      %v1321 = vld [vmem:[%s1280 + $0x140] sm:$0xff]
      %v1322 = vld [vmem:[%s1280 + $0x148] sm:$0xff]
      %v1323 = vld [vmem:[%s1280 + $0x150] sm:$0xff]
      %v1324 = vld [vmem:[%s1280 + $0x158] sm:$0xff]
      %v1325 = vld [vmem:[%s1280 + $0x160] sm:$0xff]
      %v1326 = vld [vmem:[%s1280 + $0x168] sm:$0xff]
      %v1327 = vld [vmem:[%s1280 + $0x170] sm:$0xff]
      %v1328 = vld [vmem:[%s1280 + $0x178] sm:$0xff]
      %v1329 = vld [vmem:[%s1280 + $0x180] sm:$0xff]
      %v1330 = vld [vmem:[%s1280 + $0x188] sm:$0xff]
      %v1331 = vld [vmem:[%s1280 + $0x190] sm:$0xff]
      %v1332 = vld [vmem:[%s1280 + $0x198] sm:$0xff]
      %v1333 = vld [vmem:[%s1280 + $0x1a0] sm:$0xff]
      %v1334 = vld [vmem:[%s1280 + $0x1a8] sm:$0xff]
      %v1335 = vld [vmem:[%s1280 + $0x1b0] sm:$0xff]
      %v1336 = vld [vmem:[%s1280 + $0x1b8] sm:$0xff]
      %v1337 = vld [vmem:[%s1280 + $0x1c0] sm:$0xff]
      %v1338 = vld [vmem:[%s1280 + $0x1c8] sm:$0xff]
      %v1339 = vld [vmem:[%s1280 + $0x1d0] sm:$0xff]
      %v1340 = vld [vmem:[%s1280 + $0x1d8] sm:$0xff]
      %v1341 = vld [vmem:[%s1280 + $0x1e0] sm:$0xff]
      %v1342 = vld [vmem:[%s1280 + $0x1e8] sm:$0xff]
      %v1343 = vld [vmem:[%s1280 + $0x1f0] sm:$0xff]
      %v1344 = vld [vmem:[%s1280 + $0x1f8] sm:$0xff]
      %v1345 = vld [vmem:[%s1280 + $0x200] sm:$0xff]
      %v1346 = vld [vmem:[%s1280 + $0x208] sm:$0xff]
      %v1347 = vld [vmem:[%s1280 + $0x210] sm:$0xff]
      %v1348 = vld [vmem:[%s1280 + $0x218] sm:$0xff]
      %v1349 = vld [vmem:[%s1280 + $0x220] sm:$0xff]
      %v1350 = vld [vmem:[%s1280 + $0x228] sm:$0xff]
      %v1351 = vld [vmem:[%s1280 + $0x230] sm:$0xff]
      %v1352 = vld [vmem:[%s1280 + $0x238] sm:$0xff]
      %v1353 = vld [vmem:[%s1280 + $0x240] sm:$0xff]
      %v1354 = vld [vmem:[%s1280 + $0x248] sm:$0xff]
      %v1355 = vld [vmem:[%s1280 + $0x250] sm:$0xff]
      %v1356 = vld [vmem:[%s1280 + $0x258] sm:$0xff]
      %v1357 = vld [vmem:[%s1280 + $0x260] sm:$0xff]
      %v1358 = vld [vmem:[%s1280 + $0x268] sm:$0xff]
      %v1359 = vld [vmem:[%s1280 + $0x270] sm:$0xff]
      %v1360 = vld [vmem:[%s1280 + $0x278] sm:$0xff]
      %v1361 = vld [vmem:[%s1280 + $0x280] sm:$0xff]
      %v1362 = vld [vmem:[%s1280 + $0x288] sm:$0xff]
      %v1363 = vld [vmem:[%s1280 + $0x290] sm:$0xff]
      %v1364 = vld [vmem:[%s1280 + $0x298] sm:$0xff]
      %v1365 = vld [vmem:[%s1280 + $0x2a0] sm:$0xff]
      %v1366 = vld [vmem:[%s1280 + $0x2a8] sm:$0xff]
      %v1367 = vld [vmem:[%s1280 + $0x2b0] sm:$0xff]
      %v1368 = vld [vmem:[%s1280 + $0x2b8] sm:$0xff]
      %v1369 = vld [vmem:[%s1280 + $0x2c0] sm:$0xff]
      %v1370 = vld [vmem:[%s1280 + $0x2c8] sm:$0xff]
      %v1371 = vld [vmem:[%s1280 + $0x2d0] sm:$0xff]
      %v1372 = vld [vmem:[%s1280 + $0x2d8] sm:$0xff]
      %v1373 = vld [vmem:[%s1280 + $0x2e0] sm:$0xff]
      %v1374 = vld [vmem:[%s1280 + $0x2e8] sm:$0xff]
      %v1375 = vld [vmem:[%s1280 + $0x2f0] sm:$0xff]
      %v1376 = vld [vmem:[%s1280 + $0x2f8] sm:$0xff]
      %v1377 = vld [vmem:[%s1280 + $0x300] sm:$0xff]
      %v1378 = vld [vmem:[%s1280 + $0x308] sm:$0xff]
      %v1379 = vld [vmem:[%s1280 + $0x310] sm:$0xff]
      %v1380 = vld [vmem:[%s1280 + $0x318] sm:$0xff]
      %v1381 = vld [vmem:[%s1280 + $0x320] sm:$0xff]
      %v1382 = vld [vmem:[%s1280 + $0x328] sm:$0xff]
      %v1383 = vld [vmem:[%s1280 + $0x330] sm:$0xff]
      %v1384 = vld [vmem:[%s1280 + $0x338] sm:$0xff]
      %v1385 = vld [vmem:[%s1280 + $0x340] sm:$0xff]
      %v1386 = vld [vmem:[%s1280 + $0x348] sm:$0xff]
      %v1387 = vld [vmem:[%s1280 + $0x350] sm:$0xff]
      %v1388 = vld [vmem:[%s1280 + $0x358] sm:$0xff]
      %v1389 = vld [vmem:[%s1280 + $0x360] sm:$0xff]
      %v1390 = vld [vmem:[%s1280 + $0x368] sm:$0xff]
      %v1391 = vld [vmem:[%s1280 + $0x370] sm:$0xff]
      %v1392 = vld [vmem:[%s1280 + $0x378] sm:$0xff]
      %v1393 = vld [vmem:[%s1280 + $0x380] sm:$0xff]
      %v1394 = vld [vmem:[%s1280 + $0x388] sm:$0xff]
      %v1395 = vld [vmem:[%s1280 + $0x390] sm:$0xff]
      %v1396 = vld [vmem:[%s1280 + $0x398] sm:$0xff]
      %v1397 = vld [vmem:[%s1280 + $0x3a0] sm:$0xff]
      %v1398 = vld [vmem:[%s1280 + $0x3a8] sm:$0xff]
      %v1399 = vld [vmem:[%s1280 + $0x3b0] sm:$0xff]
      %v1400 = vld [vmem:[%s1280 + $0x3b8] sm:$0xff]
      %v1401 = vld [vmem:[%s1280 + $0x3c0] sm:$0xff]
      %v1402 = vld [vmem:[%s1280 + $0x3c8] sm:$0xff]
      %v1403 = vld [vmem:[%s1280 + $0x3d0] sm:$0xff]
      %v1404 = vld [vmem:[%s1280 + $0x3d8] sm:$0xff]
      %v1405 = vld [vmem:[%s1280 + $0x3e0] sm:$0xff]
      %v1406 = vld [vmem:[%s1280 + $0x3e8] sm:$0xff]
      %v1407 = vld [vmem:[%s1280 + $0x3f0] sm:$0xff]
      %v1408 = vld [vmem:[%s1280 + $0x3f8] sm:$0xff]
      // Predicated region
      $region79: #{gcn_apply.3} parent=35 // pred_check
        %p1409 = pneg %p194
      $region80: #{gcn_apply.3} parent=35 // pred_check_branch
        %1411 = sbr.rel (%p1409) target = $region82
      $region81: #{gcn_apply.3} parent=35 // pred_region
        %v1412 = vld [vmem:[%s1] sm:$0xf]
        %v1413 = vld [vmem:[%s1 + $0x4] sm:$0xf]
        %v1414 = vld [vmem:[%s1 + $0x8] sm:$0xf]
        %v1415 = vld [vmem:[%s1 + $0xc] sm:$0xf]
        %v1416 = vld [vmem:[%s1 + $0x10] sm:$0xf]
        %v1417 = vld [vmem:[%s1 + $0x14] sm:$0xf]
        %v1418 = vld [vmem:[%s1 + $0x18] sm:$0xf]
        %v1419 = vld [vmem:[%s1 + $0x1c] sm:$0xf]
        %v1420 = vld [vmem:[%s1 + $0x20] sm:$0xf]
        %v1421 = vld [vmem:[%s1 + $0x24] sm:$0xf]
        %v1422 = vld [vmem:[%s1 + $0x28] sm:$0xf]
        %v1423 = vld [vmem:[%s1 + $0x2c] sm:$0xf]
        %v1424 = vld [vmem:[%s1 + $0x30] sm:$0xf]
        %v1425 = vld [vmem:[%s1 + $0x34] sm:$0xf]
        %v1426 = vld [vmem:[%s1 + $0x38] sm:$0xf]
        %v1427 = vld [vmem:[%s1 + $0x3c] sm:$0xf]
        %v1428 = vld [vmem:[%s1 + $0x40] sm:$0xf]
        %v1429 = vld [vmem:[%s1 + $0x44] sm:$0xf]
        %v1430 = vld [vmem:[%s1 + $0x48] sm:$0xf]
        %v1431 = vld [vmem:[%s1 + $0x4c] sm:$0xf]
        %v1432 = vld [vmem:[%s1 + $0x50] sm:$0xf]
        %v1433 = vld [vmem:[%s1 + $0x54] sm:$0xf]
        %v1434 = vld [vmem:[%s1 + $0x58] sm:$0xf]
        %v1435 = vld [vmem:[%s1 + $0x5c] sm:$0xf]
        %v1436 = vld [vmem:[%s1 + $0x60] sm:$0xf]
        %v1437 = vld [vmem:[%s1 + $0x64] sm:$0xf]
        %v1438 = vld [vmem:[%s1 + $0x68] sm:$0xf]
        %v1439 = vld [vmem:[%s1 + $0x6c] sm:$0xf]
        %v1440 = vld [vmem:[%s1 + $0x70] sm:$0xf]
        %v1441 = vld [vmem:[%s1 + $0x74] sm:$0xf]
        %v1442 = vld [vmem:[%s1 + $0x78] sm:$0xf]
        %v1443 = vld [vmem:[%s1 + $0x7c] sm:$0xf]
        %v1444 = vld [vmem:[%s1 + $0x80] sm:$0xf]
        %v1445 = vld [vmem:[%s1 + $0x84] sm:$0xf]
        %v1446 = vld [vmem:[%s1 + $0x88] sm:$0xf]
        %v1447 = vld [vmem:[%s1 + $0x8c] sm:$0xf]
        %v1448 = vld [vmem:[%s1 + $0x90] sm:$0xf]
        %v1449 = vld [vmem:[%s1 + $0x94] sm:$0xf]
        %v1450 = vld [vmem:[%s1 + $0x98] sm:$0xf]
        %v1451 = vld [vmem:[%s1 + $0x9c] sm:$0xf]
        %v1452 = vld [vmem:[%s1 + $0xa0] sm:$0xf]
        %v1453 = vld [vmem:[%s1 + $0xa4] sm:$0xf]
        %v1454 = vld [vmem:[%s1 + $0xa8] sm:$0xf]
        %v1455 = vld [vmem:[%s1 + $0xac] sm:$0xf]
        %v1456 = vld [vmem:[%s1 + $0xb0] sm:$0xf]
        %v1457 = vld [vmem:[%s1 + $0xb4] sm:$0xf]
        %v1458 = vld [vmem:[%s1 + $0xb8] sm:$0xf]
        %v1459 = vld [vmem:[%s1 + $0xbc] sm:$0xf]
        %v1460 = vld [vmem:[%s1 + $0xc0] sm:$0xf]
        %v1461 = vld [vmem:[%s1 + $0xc4] sm:$0xf]
        %v1462 = vld [vmem:[%s1 + $0xc8] sm:$0xf]
        %v1463 = vld [vmem:[%s1 + $0xcc] sm:$0xf]
        %v1464 = vld [vmem:[%s1 + $0xd0] sm:$0xf]
        %v1465 = vld [vmem:[%s1 + $0xd4] sm:$0xf]
        %v1466 = vld [vmem:[%s1 + $0xd8] sm:$0xf]
        %v1467 = vld [vmem:[%s1 + $0xdc] sm:$0xf]
        %v1468 = vld [vmem:[%s1 + $0xe0] sm:$0xf]
        %v1469 = vld [vmem:[%s1 + $0xe4] sm:$0xf]
        %v1470 = vld [vmem:[%s1 + $0xe8] sm:$0xf]
        %v1471 = vld [vmem:[%s1 + $0xec] sm:$0xf]
        %v1472 = vld [vmem:[%s1 + $0xf0] sm:$0xf]
        %v1473 = vld [vmem:[%s1 + $0xf4] sm:$0xf]
        %v1474 = vld [vmem:[%s1 + $0xf8] sm:$0xf]
        %v1475 = vld [vmem:[%s1 + $0xfc] sm:$0xf]
        %v1476 = vld [vmem:[%s2] sm:$0x1]
        %v1478 = vlaneseq
        %v1479 = vshrl.u32 %v1478, 7
        %v1480 = vsub.s32 0, %v1479
        %v1481 = vrot.slane %v1476, %v1480
        %v1547 = vunpack.c.l.b16 %v1412
        %v1548 = vunpack.c.l.b16 %v1413
        %v1549 = vunpack.c.l.b16 %v1414
        %v1550 = vunpack.c.l.b16 %v1415
        %v1551 = vunpack.c.l.b16 %v1416
        %v1552 = vunpack.c.l.b16 %v1417
        %v1553 = vunpack.c.l.b16 %v1418
        %v1554 = vunpack.c.l.b16 %v1419
        %v1555 = vunpack.c.l.b16 %v1420
        %v1556 = vunpack.c.l.b16 %v1421
        %v1557 = vunpack.c.l.b16 %v1422
        %v1558 = vunpack.c.l.b16 %v1423
        %v1559 = vunpack.c.l.b16 %v1424
        %v1560 = vunpack.c.l.b16 %v1425
        %v1561 = vunpack.c.l.b16 %v1426
        %v1562 = vunpack.c.l.b16 %v1427
        %v1563 = vunpack.c.l.b16 %v1428
        %v1564 = vunpack.c.l.b16 %v1429
        %v1565 = vunpack.c.l.b16 %v1430
        %v1566 = vunpack.c.l.b16 %v1431
        %v1567 = vunpack.c.l.b16 %v1432
        %v1568 = vunpack.c.l.b16 %v1433
        %v1569 = vunpack.c.l.b16 %v1434
        %v1570 = vunpack.c.l.b16 %v1435
        %v1571 = vunpack.c.l.b16 %v1436
        %v1572 = vunpack.c.l.b16 %v1437
        %v1573 = vunpack.c.l.b16 %v1438
        %v1574 = vunpack.c.l.b16 %v1439
        %v1575 = vunpack.c.l.b16 %v1440
        %v1576 = vunpack.c.l.b16 %v1441
        %v1577 = vunpack.c.l.b16 %v1442
        %v1578 = vunpack.c.l.b16 %v1443
        %v1579 = vunpack.c.l.b16 %v1444
        %v1580 = vunpack.c.l.b16 %v1445
        %v1581 = vunpack.c.l.b16 %v1446
        %v1582 = vunpack.c.l.b16 %v1447
        %v1583 = vunpack.c.l.b16 %v1448
        %v1584 = vunpack.c.l.b16 %v1449
        %v1585 = vunpack.c.l.b16 %v1450
        %v1586 = vunpack.c.l.b16 %v1451
        %v1587 = vunpack.c.l.b16 %v1452
        %v1588 = vunpack.c.l.b16 %v1453
        %v1589 = vunpack.c.l.b16 %v1454
        %v1590 = vunpack.c.l.b16 %v1455
        %v1591 = vunpack.c.l.b16 %v1456
        %v1592 = vunpack.c.l.b16 %v1457
        %v1593 = vunpack.c.l.b16 %v1458
        %v1594 = vunpack.c.l.b16 %v1459
        %v1595 = vunpack.c.l.b16 %v1460
        %v1596 = vunpack.c.l.b16 %v1461
        %v1597 = vunpack.c.l.b16 %v1462
        %v1598 = vunpack.c.l.b16 %v1463
        %v1599 = vunpack.c.l.b16 %v1464
        %v1600 = vunpack.c.l.b16 %v1465
        %v1601 = vunpack.c.l.b16 %v1466
        %v1602 = vunpack.c.l.b16 %v1467
        %v1603 = vunpack.c.l.b16 %v1468
        %v1604 = vunpack.c.l.b16 %v1469
        %v1605 = vunpack.c.l.b16 %v1470
        %v1606 = vunpack.c.l.b16 %v1471
        %v1607 = vunpack.c.l.b16 %v1472
        %v1608 = vunpack.c.l.b16 %v1473
        %v1609 = vunpack.c.l.b16 %v1474
        %v1610 = vunpack.c.l.b16 %v1475
        %v1611 = vpack.c.b16 %v1548, %v1547
        %v1612 = vpack.c.b16 %v1550, %v1549
        %v1613 = vpack.c.b16 %v1552, %v1551
        %v1614 = vpack.c.b16 %v1554, %v1553
        %v1615 = vpack.c.b16 %v1556, %v1555
        %v1616 = vpack.c.b16 %v1558, %v1557
        %v1617 = vpack.c.b16 %v1560, %v1559
        %v1618 = vpack.c.b16 %v1562, %v1561
        %v1619 = vpack.c.b16 %v1564, %v1563
        %v1620 = vpack.c.b16 %v1566, %v1565
        %v1621 = vpack.c.b16 %v1568, %v1567
        %v1622 = vpack.c.b16 %v1570, %v1569
        %v1623 = vpack.c.b16 %v1572, %v1571
        %v1624 = vpack.c.b16 %v1574, %v1573
        %v1625 = vpack.c.b16 %v1576, %v1575
        %v1626 = vpack.c.b16 %v1578, %v1577
        %v1627 = vpack.c.b16 %v1580, %v1579
        %v1628 = vpack.c.b16 %v1582, %v1581
        %v1629 = vpack.c.b16 %v1584, %v1583
        %v1630 = vpack.c.b16 %v1586, %v1585
        %v1631 = vpack.c.b16 %v1588, %v1587
        %v1632 = vpack.c.b16 %v1590, %v1589
        %v1633 = vpack.c.b16 %v1592, %v1591
        %v1634 = vpack.c.b16 %v1594, %v1593
        %v1635 = vpack.c.b16 %v1596, %v1595
        %v1636 = vpack.c.b16 %v1598, %v1597
        %v1637 = vpack.c.b16 %v1600, %v1599
        %v1638 = vpack.c.b16 %v1602, %v1601
        %v1639 = vpack.c.b16 %v1604, %v1603
        %v1640 = vpack.c.b16 %v1606, %v1605
        %v1641 = vpack.c.b16 %v1608, %v1607
        %v1642 = vpack.c.b16 %v1610, %v1609
        %1675 = vmatprep.subr.bf16.mxu0 0
        %1676 = vmatpush1.bf16.msra.mxu0 %v1611
        %1677 = vmatprep.subr.bf16.mxu0 0
        %1678 = vmatpush1.bf16.msra.mxu0 %v1612
        %1679 = vmatprep.subr.bf16.mxu0 0
        %1680 = vmatpush1.bf16.msra.mxu0 %v1613
        %1681 = vmatprep.subr.bf16.mxu0 0
        %1682 = vmatpush1.bf16.msra.mxu0 %v1614
        %1683 = vmatprep.subr.bf16.mxu0 0
        %1684 = vmatpush1.bf16.msra.mxu0 %v1615
        %1685 = vmatprep.subr.bf16.mxu0 0
        %1686 = vmatpush1.bf16.msra.mxu0 %v1616
        %1687 = vmatprep.subr.bf16.mxu0 0
        %1688 = vmatpush1.bf16.msra.mxu0 %v1617
        %1689 = vmatprep.subr.bf16.mxu0 0
        %1690 = vmatpush1.bf16.msra.mxu0 %v1618
        %1691 = vmatprep.subr.bf16.mxu0 0
        %1692 = vmatpush1.bf16.msra.mxu0 %v1619
        %1693 = vmatprep.subr.bf16.mxu0 0
        %1694 = vmatpush1.bf16.msra.mxu0 %v1620
        %1695 = vmatprep.subr.bf16.mxu0 0
        %1696 = vmatpush1.bf16.msra.mxu0 %v1621
        %1697 = vmatprep.subr.bf16.mxu0 0
        %1698 = vmatpush1.bf16.msra.mxu0 %v1622
        %1699 = vmatprep.subr.bf16.mxu0 0
        %1700 = vmatpush1.bf16.msra.mxu0 %v1623
        %1701 = vmatprep.subr.bf16.mxu0 0
        %1702 = vmatpush1.bf16.msra.mxu0 %v1624
        %1703 = vmatprep.subr.bf16.mxu0 0
        %1704 = vmatpush1.bf16.msra.mxu0 %v1625
        %1705 = vmatprep.subr.bf16.mxu0 0
        %1706 = vmatpush1.bf16.msra.mxu0 %v1626
        %1707 = vmatprep.mubr.bf16.mxu0 %v1282
        %1708 = vmatmul.mubr.bf16.gmra.mrb[0].mxu0 %v1281
        %v1709 = vpop.f32.mrb[0].mxu0
        %v1710 = vadd.f32 %v1481, %v1709
        %v1711 = vpop.f32.mrb[0].mxu0
        %v1712 = vpop.f32.mrb[0].mxu0
        %v1713 = vadd.f32 %v1481, %v1712
        %v1714 = vpop.f32.mrb[0].mxu0
        %1715 = vmatprep.mubr.bf16.mxu0 %v1286
        %1716 = vmatmul.mubr.bf16.gmra.mrb[0].mxu0 %v1285
        %v1717 = vpop.f32.mrb[0].mxu0
        %v1718 = vadd.f32 %v1481, %v1717
        %v1719 = vpop.f32.mrb[0].mxu0
        %v1720 = vpop.f32.mrb[0].mxu0
        %v1721 = vadd.f32 %v1481, %v1720
        %v1722 = vpop.f32.mrb[0].mxu0
        %1723 = vmatprep.mubr.bf16.mxu0 %v1290
        %1724 = vmatmul.mubr.bf16.gmra.mrb[0].mxu0 %v1289
        %v1725 = vpop.f32.mrb[0].mxu0
        %v1726 = vadd.f32 %v1481, %v1725
        %v1727 = vpop.f32.mrb[0].mxu0
        %v1728 = vpop.f32.mrb[0].mxu0
        %v1729 = vadd.f32 %v1481, %v1728
        %v1730 = vpop.f32.mrb[0].mxu0
        %1731 = vmatprep.mubr.bf16.mxu0 %v1294
        %1732 = vmatmul.mubr.bf16.gmra.mrb[0].mxu0 %v1293
        %v1733 = vpop.f32.mrb[0].mxu0
        %v1734 = vadd.f32 %v1481, %v1733
        %v1735 = vpop.f32.mrb[0].mxu0
        %v1736 = vpop.f32.mrb[0].mxu0
        %v1737 = vadd.f32 %v1481, %v1736
        %v1738 = vpop.f32.mrb[0].mxu0
        %1739 = vmatprep.mubr.bf16.mxu0 %v1298
        %1740 = vmatmul.mubr.bf16.gmra.mrb[0].mxu0 %v1297
        %v1741 = vpop.f32.mrb[0].mxu0
        %v1742 = vadd.f32 %v1481, %v1741
        %v1743 = vpop.f32.mrb[0].mxu0
        %v1744 = vpop.f32.mrb[0].mxu0
        %v1745 = vadd.f32 %v1481, %v1744
        %v1746 = vpop.f32.mrb[0].mxu0
        %1747 = vmatprep.mubr.bf16.mxu0 %v1302
        %1748 = vmatmul.mubr.bf16.gmra.mrb[0].mxu0 %v1301
        %v1749 = vpop.f32.mrb[0].mxu0
        %v1750 = vadd.f32 %v1481, %v1749
        %v1751 = vpop.f32.mrb[0].mxu0
        %v1752 = vpop.f32.mrb[0].mxu0
        %v1753 = vadd.f32 %v1481, %v1752
        %v1754 = vpop.f32.mrb[0].mxu0
        %1755 = vmatprep.mubr.bf16.mxu0 %v1306
        %1756 = vmatmul.mubr.bf16.gmra.mrb[0].mxu0 %v1305
        %v1757 = vpop.f32.mrb[0].mxu0
        %v1758 = vadd.f32 %v1481, %v1757
        %v1759 = vpop.f32.mrb[0].mxu0
        %v1760 = vpop.f32.mrb[0].mxu0
        %v1761 = vadd.f32 %v1481, %v1760
        %v1762 = vpop.f32.mrb[0].mxu0
        %1763 = vmatprep.mubr.bf16.mxu0 %v1310
        %1764 = vmatmul.mubr.bf16.gmra.mrb[0].mxu0 %v1309
        %v1765 = vpop.f32.mrb[0].mxu0
        %v1766 = vadd.f32 %v1481, %v1765
        %v1767 = vpop.f32.mrb[0].mxu0
        %v1768 = vpop.f32.mrb[0].mxu0
        %v1769 = vadd.f32 %v1481, %v1768
        %v1770 = vpop.f32.mrb[0].mxu0
        %1771 = vmatprep.mubr.bf16.mxu0 %v1314
        %1772 = vmatmul.mubr.bf16.gmra.mrb[0].mxu0 %v1313
        %v1773 = vpop.f32.mrb[0].mxu0
        %v1774 = vadd.f32 %v1481, %v1773
        %v1775 = vpop.f32.mrb[0].mxu0
        %v1776 = vpop.f32.mrb[0].mxu0
        %v1777 = vadd.f32 %v1481, %v1776
        %v1778 = vpop.f32.mrb[0].mxu0
        %1779 = vmatprep.mubr.bf16.mxu0 %v1318
        %1780 = vmatmul.mubr.bf16.gmra.mrb[0].mxu0 %v1317
        %v1781 = vpop.f32.mrb[0].mxu0
        %v1782 = vadd.f32 %v1481, %v1781
        %v1783 = vpop.f32.mrb[0].mxu0
        %v1784 = vpop.f32.mrb[0].mxu0
        %v1785 = vadd.f32 %v1481, %v1784
        %v1786 = vpop.f32.mrb[0].mxu0
        %1787 = vmatprep.mubr.bf16.mxu0 %v1322
        %1788 = vmatmul.mubr.bf16.gmra.mrb[0].mxu0 %v1321
        %v1789 = vpop.f32.mrb[0].mxu0
        %v1790 = vadd.f32 %v1481, %v1789
        %v1791 = vpop.f32.mrb[0].mxu0
        %v1792 = vpop.f32.mrb[0].mxu0
        %v1793 = vadd.f32 %v1481, %v1792
        %v1794 = vpop.f32.mrb[0].mxu0
        %1795 = vmatprep.mubr.bf16.mxu0 %v1326
        %1796 = vmatmul.mubr.bf16.gmra.mrb[0].mxu0 %v1325
        %v1797 = vpop.f32.mrb[0].mxu0
        %v1798 = vadd.f32 %v1481, %v1797
        %v1799 = vpop.f32.mrb[0].mxu0
        %v1800 = vpop.f32.mrb[0].mxu0
        %v1801 = vadd.f32 %v1481, %v1800
        %v1802 = vpop.f32.mrb[0].mxu0
        %1803 = vmatprep.mubr.bf16.mxu0 %v1330
        %1804 = vmatmul.mubr.bf16.gmra.mrb[0].mxu0 %v1329
        %v1805 = vpop.f32.mrb[0].mxu0
        %v1806 = vadd.f32 %v1481, %v1805
        %v1807 = vpop.f32.mrb[0].mxu0
        %v1808 = vpop.f32.mrb[0].mxu0
        %v1809 = vadd.f32 %v1481, %v1808
        %v1810 = vpop.f32.mrb[0].mxu0
        %1811 = vmatprep.mubr.bf16.mxu0 %v1334
        %1812 = vmatmul.mubr.bf16.gmra.mrb[0].mxu0 %v1333
        %v1813 = vpop.f32.mrb[0].mxu0
        %v1814 = vadd.f32 %v1481, %v1813
        %v1815 = vpop.f32.mrb[0].mxu0
        %v1816 = vpop.f32.mrb[0].mxu0
        %v1817 = vadd.f32 %v1481, %v1816
        %v1818 = vpop.f32.mrb[0].mxu0
        %1819 = vmatprep.mubr.bf16.mxu0 %v1338
        %1820 = vmatmul.mubr.bf16.gmra.mrb[0].mxu0 %v1337
        %v1821 = vpop.f32.mrb[0].mxu0
        %v1822 = vadd.f32 %v1481, %v1821
        %v1823 = vpop.f32.mrb[0].mxu0
        %v1824 = vpop.f32.mrb[0].mxu0
        %v1825 = vadd.f32 %v1481, %v1824
        %v1826 = vpop.f32.mrb[0].mxu0
        %1827 = vmatprep.mubr.bf16.mxu0 %v1342
        %1828 = vmatmul.mubr.bf16.gmra.mrb[0].mxu0 %v1341
        %v1829 = vpop.f32.mrb[0].mxu0
        %v1830 = vadd.f32 %v1481, %v1829
        %v1831 = vpop.f32.mrb[0].mxu0
        %v1832 = vpop.f32.mrb[0].mxu0
        %v1833 = vadd.f32 %v1481, %v1832
        %v1834 = vpop.f32.mrb[0].mxu0
        %1835 = vmatprep.mubr.bf16.mxu0 %v1346
        %1836 = vmatmul.mubr.bf16.gmra.mrb[0].mxu0 %v1345
        %v1837 = vpop.f32.mrb[0].mxu0
        %v1838 = vadd.f32 %v1481, %v1837
        %v1839 = vpop.f32.mrb[0].mxu0
        %v1840 = vpop.f32.mrb[0].mxu0
        %v1841 = vadd.f32 %v1481, %v1840
        %v1842 = vpop.f32.mrb[0].mxu0
        %1843 = vmatprep.mubr.bf16.mxu0 %v1350
        %1844 = vmatmul.mubr.bf16.gmra.mrb[0].mxu0 %v1349
        %v1845 = vpop.f32.mrb[0].mxu0
        %v1846 = vadd.f32 %v1481, %v1845
        %v1847 = vpop.f32.mrb[0].mxu0
        %v1848 = vpop.f32.mrb[0].mxu0
        %v1849 = vadd.f32 %v1481, %v1848
        %v1850 = vpop.f32.mrb[0].mxu0
        %1851 = vmatprep.mubr.bf16.mxu0 %v1354
        %1852 = vmatmul.mubr.bf16.gmra.mrb[0].mxu0 %v1353
        %v1853 = vpop.f32.mrb[0].mxu0
        %v1854 = vadd.f32 %v1481, %v1853
        %v1855 = vpop.f32.mrb[0].mxu0
        %v1856 = vpop.f32.mrb[0].mxu0
        %v1857 = vadd.f32 %v1481, %v1856
        %v1858 = vpop.f32.mrb[0].mxu0
        %1859 = vmatprep.mubr.bf16.mxu0 %v1358
        %1860 = vmatmul.mubr.bf16.gmra.mrb[0].mxu0 %v1357
        %v1861 = vpop.f32.mrb[0].mxu0
        %v1862 = vadd.f32 %v1481, %v1861
        %v1863 = vpop.f32.mrb[0].mxu0
        %v1864 = vpop.f32.mrb[0].mxu0
        %v1865 = vadd.f32 %v1481, %v1864
        %v1866 = vpop.f32.mrb[0].mxu0
        %1867 = vmatprep.mubr.bf16.mxu0 %v1362
        %1868 = vmatmul.mubr.bf16.gmra.mrb[0].mxu0 %v1361
        %v1869 = vpop.f32.mrb[0].mxu0
        %v1870 = vadd.f32 %v1481, %v1869
        %v1871 = vpop.f32.mrb[0].mxu0
        %v1872 = vpop.f32.mrb[0].mxu0
        %v1873 = vadd.f32 %v1481, %v1872
        %v1874 = vpop.f32.mrb[0].mxu0
        %1875 = vmatprep.mubr.bf16.mxu0 %v1366
        %1876 = vmatmul.mubr.bf16.gmra.mrb[0].mxu0 %v1365
        %v1877 = vpop.f32.mrb[0].mxu0
        %v1878 = vadd.f32 %v1481, %v1877
        %v1879 = vpop.f32.mrb[0].mxu0
        %v1880 = vpop.f32.mrb[0].mxu0
        %v1881 = vadd.f32 %v1481, %v1880
        %v1882 = vpop.f32.mrb[0].mxu0
        %1883 = vmatprep.mubr.bf16.mxu0 %v1370
        %1884 = vmatmul.mubr.bf16.gmra.mrb[0].mxu0 %v1369
        %v1885 = vpop.f32.mrb[0].mxu0
        %v1886 = vadd.f32 %v1481, %v1885
        %v1887 = vpop.f32.mrb[0].mxu0
        %v1888 = vpop.f32.mrb[0].mxu0
        %v1889 = vadd.f32 %v1481, %v1888
        %v1890 = vpop.f32.mrb[0].mxu0
        %1891 = vmatprep.mubr.bf16.mxu0 %v1374
        %1892 = vmatmul.mubr.bf16.gmra.mrb[0].mxu0 %v1373
        %v1893 = vpop.f32.mrb[0].mxu0
        %v1894 = vadd.f32 %v1481, %v1893
        %v1895 = vpop.f32.mrb[0].mxu0
        %v1896 = vpop.f32.mrb[0].mxu0
        %v1897 = vadd.f32 %v1481, %v1896
        %v1898 = vpop.f32.mrb[0].mxu0
        %1899 = vmatprep.mubr.bf16.mxu0 %v1378
        %1900 = vmatmul.mubr.bf16.gmra.mrb[0].mxu0 %v1377
        %v1901 = vpop.f32.mrb[0].mxu0
        %v1902 = vadd.f32 %v1481, %v1901
        %v1903 = vpop.f32.mrb[0].mxu0
        %v1904 = vpop.f32.mrb[0].mxu0
        %v1905 = vadd.f32 %v1481, %v1904
        %v1906 = vpop.f32.mrb[0].mxu0
        %1907 = vmatprep.mubr.bf16.mxu0 %v1382
        %1908 = vmatmul.mubr.bf16.gmra.mrb[0].mxu0 %v1381
        %v1909 = vpop.f32.mrb[0].mxu0
        %v1910 = vadd.f32 %v1481, %v1909
        %v1911 = vpop.f32.mrb[0].mxu0
        %v1912 = vpop.f32.mrb[0].mxu0
        %v1913 = vadd.f32 %v1481, %v1912
        %v1914 = vpop.f32.mrb[0].mxu0
        %1915 = vmatprep.mubr.bf16.mxu0 %v1386
        %1916 = vmatmul.mubr.bf16.gmra.mrb[0].mxu0 %v1385
        %v1917 = vpop.f32.mrb[0].mxu0
        %v1918 = vadd.f32 %v1481, %v1917
        %v1919 = vpop.f32.mrb[0].mxu0
        %v1920 = vpop.f32.mrb[0].mxu0
        %v1921 = vadd.f32 %v1481, %v1920
        %v1922 = vpop.f32.mrb[0].mxu0
        %1923 = vmatprep.mubr.bf16.mxu0 %v1390
        %1924 = vmatmul.mubr.bf16.gmra.mrb[0].mxu0 %v1389
        %v1925 = vpop.f32.mrb[0].mxu0
        %v1926 = vadd.f32 %v1481, %v1925
        %v1927 = vpop.f32.mrb[0].mxu0
        %v1928 = vpop.f32.mrb[0].mxu0
        %v1929 = vadd.f32 %v1481, %v1928
        %v1930 = vpop.f32.mrb[0].mxu0
        %1931 = vmatprep.mubr.bf16.mxu0 %v1394
        %1932 = vmatmul.mubr.bf16.gmra.mrb[0].mxu0 %v1393
        %v1933 = vpop.f32.mrb[0].mxu0
        %v1934 = vadd.f32 %v1481, %v1933
        %v1935 = vpop.f32.mrb[0].mxu0
        %v1936 = vpop.f32.mrb[0].mxu0
        %v1937 = vadd.f32 %v1481, %v1936
        %v1938 = vpop.f32.mrb[0].mxu0
        %1939 = vmatprep.mubr.bf16.mxu0 %v1398
        %1940 = vmatmul.mubr.bf16.gmra.mrb[0].mxu0 %v1397
        %v1941 = vpop.f32.mrb[0].mxu0
        %v1942 = vadd.f32 %v1481, %v1941
        %v1943 = vpop.f32.mrb[0].mxu0
        %v1944 = vpop.f32.mrb[0].mxu0
        %v1945 = vadd.f32 %v1481, %v1944
        %v1946 = vpop.f32.mrb[0].mxu0
        %1947 = vmatprep.mubr.bf16.mxu0 %v1402
        %1948 = vmatmul.mubr.bf16.gmra.mrb[0].mxu0 %v1401
        %v1949 = vpop.f32.mrb[0].mxu0
        %v1950 = vadd.f32 %v1481, %v1949
        %v1951 = vpop.f32.mrb[0].mxu0
        %v1952 = vpop.f32.mrb[0].mxu0
        %v1953 = vadd.f32 %v1481, %v1952
        %v1954 = vpop.f32.mrb[0].mxu0
        %1955 = vmatprep.mubr.bf16.mxu0 %v1406
        %1956 = vmatmul.mubr.bf16.gmra.mrb[0].mxu0 %v1405
        %v1957 = vpop.f32.mrb[0].mxu0
        %v1958 = vadd.f32 %v1481, %v1957
        %v1959 = vpop.f32.mrb[0].mxu0
        %v1960 = vpop.f32.mrb[0].mxu0
        %v1961 = vadd.f32 %v1481, %v1960
        %v1962 = vpop.f32.mrb[0].mxu0
        %1963 = vdwg.mxu0
        %1964 = vmatprep.subr.bf16.mxu0 0
        %1965 = vmatpush1.bf16.msra.mxu0 %v1627
        %1966 = vmatprep.subr.bf16.mxu0 0
        %1967 = vmatpush1.bf16.msra.mxu0 %v1628
        %1968 = vmatprep.subr.bf16.mxu0 0
        %1969 = vmatpush1.bf16.msra.mxu0 %v1629
        %1970 = vmatprep.subr.bf16.mxu0 0
        %1971 = vmatpush1.bf16.msra.mxu0 %v1630
        %1972 = vmatprep.subr.bf16.mxu0 0
        %1973 = vmatpush1.bf16.msra.mxu0 %v1631
        %1974 = vmatprep.subr.bf16.mxu0 0
        %1975 = vmatpush1.bf16.msra.mxu0 %v1632
        %1976 = vmatprep.subr.bf16.mxu0 0
        %1977 = vmatpush1.bf16.msra.mxu0 %v1633
        %1978 = vmatprep.subr.bf16.mxu0 0
        %1979 = vmatpush1.bf16.msra.mxu0 %v1634
        %1980 = vmatprep.subr.bf16.mxu0 0
        %1981 = vmatpush1.bf16.msra.mxu0 %v1635
        %1982 = vmatprep.subr.bf16.mxu0 0
        %1983 = vmatpush1.bf16.msra.mxu0 %v1636
        %1984 = vmatprep.subr.bf16.mxu0 0
        %1985 = vmatpush1.bf16.msra.mxu0 %v1637
        %1986 = vmatprep.subr.bf16.mxu0 0
        %1987 = vmatpush1.bf16.msra.mxu0 %v1638
        %1988 = vmatprep.subr.bf16.mxu0 0
        %1989 = vmatpush1.bf16.msra.mxu0 %v1639
        %1990 = vmatprep.subr.bf16.mxu0 0
        %1991 = vmatpush1.bf16.msra.mxu0 %v1640
        %1992 = vmatprep.subr.bf16.mxu0 0
        %1993 = vmatpush1.bf16.msra.mxu0 %v1641
        %1994 = vmatprep.subr.bf16.mxu0 0
        %1995 = vmatpush1.bf16.msra.mxu0 %v1642
        %1996 = vmatprep.mubr.bf16.mxu0 %v1284
        %1997 = vmatmul.mubr.bf16.gmra.mrb[0].mxu0 %v1283
        %v1998 = vpop.f32.mrb[0].mxu0
        %v1999 = vadd.f32 %v1710, %v1998
        %v2000 = vpop.f32.mrb[0].mxu0
        %v2001 = vpop.f32.mrb[0].mxu0
        %v2002 = vadd.f32 %v1713, %v2001
        %v2003 = vpop.f32.mrb[0].mxu0
        %2004 = vmatprep.mubr.bf16.mxu0 %v1288
        %2005 = vmatmul.mubr.bf16.gmra.mrb[0].mxu0 %v1287
        %v2006 = vpop.f32.mrb[0].mxu0
        %v2007 = vadd.f32 %v1718, %v2006
        %v2008 = vpop.f32.mrb[0].mxu0
        %v2009 = vpop.f32.mrb[0].mxu0
        %v2010 = vadd.f32 %v1721, %v2009
        %v2011 = vpop.f32.mrb[0].mxu0
        %2012 = vmatprep.mubr.bf16.mxu0 %v1292
        %2013 = vmatmul.mubr.bf16.gmra.mrb[0].mxu0 %v1291
        %v2014 = vpop.f32.mrb[0].mxu0
        %v2015 = vadd.f32 %v1726, %v2014
        %v2016 = vpop.f32.mrb[0].mxu0
        %v2017 = vpop.f32.mrb[0].mxu0
        %v2018 = vadd.f32 %v1729, %v2017
        %v2019 = vpop.f32.mrb[0].mxu0
        %2020 = vmatprep.mubr.bf16.mxu0 %v1296
        %2021 = vmatmul.mubr.bf16.gmra.mrb[0].mxu0 %v1295
        %v2022 = vpop.f32.mrb[0].mxu0
        %v2023 = vadd.f32 %v1734, %v2022
        %v2024 = vpop.f32.mrb[0].mxu0
        %v2025 = vpop.f32.mrb[0].mxu0
        %v2026 = vadd.f32 %v1737, %v2025
        %v2027 = vpop.f32.mrb[0].mxu0
        %2028 = vmatprep.mubr.bf16.mxu0 %v1300
        %2029 = vmatmul.mubr.bf16.gmra.mrb[0].mxu0 %v1299
        %v2030 = vpop.f32.mrb[0].mxu0
        %v2031 = vadd.f32 %v1742, %v2030
        %v2032 = vpop.f32.mrb[0].mxu0
        %v2033 = vpop.f32.mrb[0].mxu0
        %v2034 = vadd.f32 %v1745, %v2033
        %v2035 = vpop.f32.mrb[0].mxu0
        %2036 = vmatprep.mubr.bf16.mxu0 %v1304
        %2037 = vmatmul.mubr.bf16.gmra.mrb[0].mxu0 %v1303
        %v2038 = vpop.f32.mrb[0].mxu0
        %v2039 = vadd.f32 %v1750, %v2038
        %v2040 = vpop.f32.mrb[0].mxu0
        %v2041 = vpop.f32.mrb[0].mxu0
        %v2042 = vadd.f32 %v1753, %v2041
        %v2043 = vpop.f32.mrb[0].mxu0
        %2044 = vmatprep.mubr.bf16.mxu0 %v1308
        %2045 = vmatmul.mubr.bf16.gmra.mrb[0].mxu0 %v1307
        %v2046 = vpop.f32.mrb[0].mxu0
        %v2047 = vadd.f32 %v1758, %v2046
        %v2048 = vpop.f32.mrb[0].mxu0
        %v2049 = vpop.f32.mrb[0].mxu0
        %v2050 = vadd.f32 %v1761, %v2049
        %v2051 = vpop.f32.mrb[0].mxu0
        %2052 = vmatprep.mubr.bf16.mxu0 %v1312
        %2053 = vmatmul.mubr.bf16.gmra.mrb[0].mxu0 %v1311
        %v2054 = vpop.f32.mrb[0].mxu0
        %v2055 = vadd.f32 %v1766, %v2054
        %v2056 = vpop.f32.mrb[0].mxu0
        %v2057 = vpop.f32.mrb[0].mxu0
        %v2058 = vadd.f32 %v1769, %v2057
        %v2059 = vpop.f32.mrb[0].mxu0
        %2060 = vmatprep.mubr.bf16.mxu0 %v1316
        %2061 = vmatmul.mubr.bf16.gmra.mrb[0].mxu0 %v1315
        %v2062 = vpop.f32.mrb[0].mxu0
        %v2063 = vadd.f32 %v1774, %v2062
        %v2064 = vpop.f32.mrb[0].mxu0
        %v2065 = vpop.f32.mrb[0].mxu0
        %v2066 = vadd.f32 %v1777, %v2065
        %v2067 = vpop.f32.mrb[0].mxu0
        %2068 = vmatprep.mubr.bf16.mxu0 %v1320
        %2069 = vmatmul.mubr.bf16.gmra.mrb[0].mxu0 %v1319
        %v2070 = vpop.f32.mrb[0].mxu0
        %v2071 = vadd.f32 %v1782, %v2070
        %v2072 = vpop.f32.mrb[0].mxu0
        %v2073 = vpop.f32.mrb[0].mxu0
        %v2074 = vadd.f32 %v1785, %v2073
        %v2075 = vpop.f32.mrb[0].mxu0
        %2076 = vmatprep.mubr.bf16.mxu0 %v1324
        %2077 = vmatmul.mubr.bf16.gmra.mrb[0].mxu0 %v1323
        %v2078 = vpop.f32.mrb[0].mxu0
        %v2079 = vadd.f32 %v1790, %v2078
        %v2080 = vpop.f32.mrb[0].mxu0
        %v2081 = vpop.f32.mrb[0].mxu0
        %v2082 = vadd.f32 %v1793, %v2081
        %v2083 = vpop.f32.mrb[0].mxu0
        %2084 = vmatprep.mubr.bf16.mxu0 %v1328
        %2085 = vmatmul.mubr.bf16.gmra.mrb[0].mxu0 %v1327
        %v2086 = vpop.f32.mrb[0].mxu0
        %v2087 = vadd.f32 %v1798, %v2086
        %v2088 = vpop.f32.mrb[0].mxu0
        %v2089 = vpop.f32.mrb[0].mxu0
        %v2090 = vadd.f32 %v1801, %v2089
        %v2091 = vpop.f32.mrb[0].mxu0
        %2092 = vmatprep.mubr.bf16.mxu0 %v1332
        %2093 = vmatmul.mubr.bf16.gmra.mrb[0].mxu0 %v1331
        %v2094 = vpop.f32.mrb[0].mxu0
        %v2095 = vadd.f32 %v1806, %v2094
        %v2096 = vpop.f32.mrb[0].mxu0
        %v2097 = vpop.f32.mrb[0].mxu0
        %v2098 = vadd.f32 %v1809, %v2097
        %v2099 = vpop.f32.mrb[0].mxu0
        %2100 = vmatprep.mubr.bf16.mxu0 %v1336
        %2101 = vmatmul.mubr.bf16.gmra.mrb[0].mxu0 %v1335
        %v2102 = vpop.f32.mrb[0].mxu0
        %v2103 = vadd.f32 %v1814, %v2102
        %v2104 = vpop.f32.mrb[0].mxu0
        %v2105 = vpop.f32.mrb[0].mxu0
        %v2106 = vadd.f32 %v1817, %v2105
        %v2107 = vpop.f32.mrb[0].mxu0
        %2108 = vmatprep.mubr.bf16.mxu0 %v1340
        %2109 = vmatmul.mubr.bf16.gmra.mrb[0].mxu0 %v1339
        %v2110 = vpop.f32.mrb[0].mxu0
        %v2111 = vadd.f32 %v1822, %v2110
        %v2112 = vpop.f32.mrb[0].mxu0
        %v2113 = vpop.f32.mrb[0].mxu0
        %v2114 = vadd.f32 %v1825, %v2113
        %v2115 = vpop.f32.mrb[0].mxu0
        %2116 = vmatprep.mubr.bf16.mxu0 %v1344
        %2117 = vmatmul.mubr.bf16.gmra.mrb[0].mxu0 %v1343
        %v2118 = vpop.f32.mrb[0].mxu0
        %v2119 = vadd.f32 %v1830, %v2118
        %v2120 = vpop.f32.mrb[0].mxu0
        %v2121 = vpop.f32.mrb[0].mxu0
        %v2122 = vadd.f32 %v1833, %v2121
        %v2123 = vpop.f32.mrb[0].mxu0
        %2124 = vmatprep.mubr.bf16.mxu0 %v1348
        %2125 = vmatmul.mubr.bf16.gmra.mrb[0].mxu0 %v1347
        %v2126 = vpop.f32.mrb[0].mxu0
        %v2127 = vadd.f32 %v1838, %v2126
        %v2128 = vpop.f32.mrb[0].mxu0
        %v2129 = vpop.f32.mrb[0].mxu0
        %v2130 = vadd.f32 %v1841, %v2129
        %v2131 = vpop.f32.mrb[0].mxu0
        %2132 = vmatprep.mubr.bf16.mxu0 %v1352
        %2133 = vmatmul.mubr.bf16.gmra.mrb[0].mxu0 %v1351
        %v2134 = vpop.f32.mrb[0].mxu0
        %v2135 = vadd.f32 %v1846, %v2134
        %v2136 = vpop.f32.mrb[0].mxu0
        %v2137 = vpop.f32.mrb[0].mxu0
        %v2138 = vadd.f32 %v1849, %v2137
        %v2139 = vpop.f32.mrb[0].mxu0
        %2140 = vmatprep.mubr.bf16.mxu0 %v1356
        %2141 = vmatmul.mubr.bf16.gmra.mrb[0].mxu0 %v1355
        %v2142 = vpop.f32.mrb[0].mxu0
        %v2143 = vadd.f32 %v1854, %v2142
        %v2144 = vpop.f32.mrb[0].mxu0
        %v2145 = vpop.f32.mrb[0].mxu0
        %v2146 = vadd.f32 %v1857, %v2145
        %v2147 = vpop.f32.mrb[0].mxu0
        %2148 = vmatprep.mubr.bf16.mxu0 %v1360
        %2149 = vmatmul.mubr.bf16.gmra.mrb[0].mxu0 %v1359
        %v2150 = vpop.f32.mrb[0].mxu0
        %v2151 = vadd.f32 %v1862, %v2150
        %v2152 = vpop.f32.mrb[0].mxu0
        %v2153 = vpop.f32.mrb[0].mxu0
        %v2154 = vadd.f32 %v1865, %v2153
        %v2155 = vpop.f32.mrb[0].mxu0
        %2156 = vmatprep.mubr.bf16.mxu0 %v1364
        %2157 = vmatmul.mubr.bf16.gmra.mrb[0].mxu0 %v1363
        %v2158 = vpop.f32.mrb[0].mxu0
        %v2159 = vadd.f32 %v1870, %v2158
        %v2160 = vpop.f32.mrb[0].mxu0
        %v2161 = vpop.f32.mrb[0].mxu0
        %v2162 = vadd.f32 %v1873, %v2161
        %v2163 = vpop.f32.mrb[0].mxu0
        %2164 = vmatprep.mubr.bf16.mxu0 %v1368
        %2165 = vmatmul.mubr.bf16.gmra.mrb[0].mxu0 %v1367
        %v2166 = vpop.f32.mrb[0].mxu0
        %v2167 = vadd.f32 %v1878, %v2166
        %v2168 = vpop.f32.mrb[0].mxu0
        %v2169 = vpop.f32.mrb[0].mxu0
        %v2170 = vadd.f32 %v1881, %v2169
        %v2171 = vpop.f32.mrb[0].mxu0
        %2172 = vmatprep.mubr.bf16.mxu0 %v1372
        %2173 = vmatmul.mubr.bf16.gmra.mrb[0].mxu0 %v1371
        %v2174 = vpop.f32.mrb[0].mxu0
        %v2175 = vadd.f32 %v1886, %v2174
        %v2176 = vpop.f32.mrb[0].mxu0
        %v2177 = vpop.f32.mrb[0].mxu0
        %v2178 = vadd.f32 %v1889, %v2177
        %v2179 = vpop.f32.mrb[0].mxu0
        %2180 = vmatprep.mubr.bf16.mxu0 %v1376
        %2181 = vmatmul.mubr.bf16.gmra.mrb[0].mxu0 %v1375
        %v2182 = vpop.f32.mrb[0].mxu0
        %v2183 = vadd.f32 %v1894, %v2182
        %v2184 = vpop.f32.mrb[0].mxu0
        %v2185 = vpop.f32.mrb[0].mxu0
        %v2186 = vadd.f32 %v1897, %v2185
        %v2187 = vpop.f32.mrb[0].mxu0
        %2188 = vmatprep.mubr.bf16.mxu0 %v1380
        %2189 = vmatmul.mubr.bf16.gmra.mrb[0].mxu0 %v1379
        %v2190 = vpop.f32.mrb[0].mxu0
        %v2191 = vadd.f32 %v1902, %v2190
        %v2192 = vpop.f32.mrb[0].mxu0
        %v2193 = vpop.f32.mrb[0].mxu0
        %v2194 = vadd.f32 %v1905, %v2193
        %v2195 = vpop.f32.mrb[0].mxu0
        %2196 = vmatprep.mubr.bf16.mxu0 %v1384
        %2197 = vmatmul.mubr.bf16.gmra.mrb[0].mxu0 %v1383
        %v2198 = vpop.f32.mrb[0].mxu0
        %v2199 = vadd.f32 %v1910, %v2198
        %v2200 = vpop.f32.mrb[0].mxu0
        %v2201 = vpop.f32.mrb[0].mxu0
        %v2202 = vadd.f32 %v1913, %v2201
        %v2203 = vpop.f32.mrb[0].mxu0
        %2204 = vmatprep.mubr.bf16.mxu0 %v1388
        %2205 = vmatmul.mubr.bf16.gmra.mrb[0].mxu0 %v1387
        %v2206 = vpop.f32.mrb[0].mxu0
        %v2207 = vadd.f32 %v1918, %v2206
        %v2208 = vpop.f32.mrb[0].mxu0
        %v2209 = vpop.f32.mrb[0].mxu0
        %v2210 = vadd.f32 %v1921, %v2209
        %v2211 = vpop.f32.mrb[0].mxu0
        %2212 = vmatprep.mubr.bf16.mxu0 %v1392
        %2213 = vmatmul.mubr.bf16.gmra.mrb[0].mxu0 %v1391
        %v2214 = vpop.f32.mrb[0].mxu0
        %v2215 = vadd.f32 %v1926, %v2214
        %v2216 = vpop.f32.mrb[0].mxu0
        %v2217 = vpop.f32.mrb[0].mxu0
        %v2218 = vadd.f32 %v1929, %v2217
        %v2219 = vpop.f32.mrb[0].mxu0
        %2220 = vmatprep.mubr.bf16.mxu0 %v1396
        %2221 = vmatmul.mubr.bf16.gmra.mrb[0].mxu0 %v1395
        %v2222 = vpop.f32.mrb[0].mxu0
        %v2223 = vadd.f32 %v1934, %v2222
        %v2224 = vpop.f32.mrb[0].mxu0
        %v2225 = vpop.f32.mrb[0].mxu0
        %v2226 = vadd.f32 %v1937, %v2225
        %v2227 = vpop.f32.mrb[0].mxu0
        %2228 = vmatprep.mubr.bf16.mxu0 %v1400
        %2229 = vmatmul.mubr.bf16.gmra.mrb[0].mxu0 %v1399
        %v2230 = vpop.f32.mrb[0].mxu0
        %v2231 = vadd.f32 %v1942, %v2230
        %v2232 = vpop.f32.mrb[0].mxu0
        %v2233 = vpop.f32.mrb[0].mxu0
        %v2234 = vadd.f32 %v1945, %v2233
        %v2235 = vpop.f32.mrb[0].mxu0
        %2236 = vmatprep.mubr.bf16.mxu0 %v1404
        %2237 = vmatmul.mubr.bf16.gmra.mrb[0].mxu0 %v1403
        %v2238 = vpop.f32.mrb[0].mxu0
        %v2239 = vadd.f32 %v1950, %v2238
        %v2240 = vpop.f32.mrb[0].mxu0
        %v2241 = vpop.f32.mrb[0].mxu0
        %v2242 = vadd.f32 %v1953, %v2241
        %v2243 = vpop.f32.mrb[0].mxu0
        %2244 = vmatprep.mubr.bf16.mxu0 %v1408
        %2245 = vmatmul.mubr.bf16.gmra.mrb[0].mxu0 %v1407
        %v2246 = vpop.f32.mrb[0].mxu0
        %v2247 = vadd.f32 %v1958, %v2246
        %v2248 = vpop.f32.mrb[0].mxu0
        %v2249 = vpop.f32.mrb[0].mxu0
        %v2250 = vadd.f32 %v1961, %v2249
        %v2251 = vpop.f32.mrb[0].mxu0
        %2252 = vdwg.mxu0
        %v2253 = vmax.f32 %v1999, 0.0
        %v2254 = vmax.f32 %v2002, 0.0
        %v2255 = vmax.f32 %v2007, 0.0
        %v2256 = vmax.f32 %v2010, 0.0
        %v2257 = vmax.f32 %v2015, 0.0
        %v2258 = vmax.f32 %v2018, 0.0
        %v2259 = vmax.f32 %v2023, 0.0
        %v2260 = vmax.f32 %v2026, 0.0
        %v2261 = vmax.f32 %v2031, 0.0
        %v2262 = vmax.f32 %v2034, 0.0
        %v2263 = vmax.f32 %v2039, 0.0
        %v2264 = vmax.f32 %v2042, 0.0
        %v2265 = vmax.f32 %v2047, 0.0
        %v2266 = vmax.f32 %v2050, 0.0
        %v2267 = vmax.f32 %v2055, 0.0
        %v2268 = vmax.f32 %v2058, 0.0
        %v2269 = vmax.f32 %v2063, 0.0
        %v2270 = vmax.f32 %v2066, 0.0
        %v2271 = vmax.f32 %v2071, 0.0
        %v2272 = vmax.f32 %v2074, 0.0
        %v2273 = vmax.f32 %v2079, 0.0
        %v2274 = vmax.f32 %v2082, 0.0
        %v2275 = vmax.f32 %v2087, 0.0
        %v2276 = vmax.f32 %v2090, 0.0
        %v2277 = vmax.f32 %v2095, 0.0
        %v2278 = vmax.f32 %v2098, 0.0
        %v2279 = vmax.f32 %v2103, 0.0
        %v2280 = vmax.f32 %v2106, 0.0
        %v2281 = vmax.f32 %v2111, 0.0
        %v2282 = vmax.f32 %v2114, 0.0
        %v2283 = vmax.f32 %v2119, 0.0
        %v2284 = vmax.f32 %v2122, 0.0
        %v2285 = vmax.f32 %v2127, 0.0
        %v2286 = vmax.f32 %v2130, 0.0
        %v2287 = vmax.f32 %v2135, 0.0
        %v2288 = vmax.f32 %v2138, 0.0
        %v2289 = vmax.f32 %v2143, 0.0
        %v2290 = vmax.f32 %v2146, 0.0
        %v2291 = vmax.f32 %v2151, 0.0
        %v2292 = vmax.f32 %v2154, 0.0
        %v2293 = vmax.f32 %v2159, 0.0
        %v2294 = vmax.f32 %v2162, 0.0
        %v2295 = vmax.f32 %v2167, 0.0
        %v2296 = vmax.f32 %v2170, 0.0
        %v2297 = vmax.f32 %v2175, 0.0
        %v2298 = vmax.f32 %v2178, 0.0
        %v2299 = vmax.f32 %v2183, 0.0
        %v2300 = vmax.f32 %v2186, 0.0
        %v2301 = vmax.f32 %v2191, 0.0
        %v2302 = vmax.f32 %v2194, 0.0
        %v2303 = vmax.f32 %v2199, 0.0
        %v2304 = vmax.f32 %v2202, 0.0
        %v2305 = vmax.f32 %v2207, 0.0
        %v2306 = vmax.f32 %v2210, 0.0
        %v2307 = vmax.f32 %v2215, 0.0
        %v2308 = vmax.f32 %v2218, 0.0
        %v2309 = vmax.f32 %v2223, 0.0
        %v2310 = vmax.f32 %v2226, 0.0
        %v2311 = vmax.f32 %v2231, 0.0
        %v2312 = vmax.f32 %v2234, 0.0
        %v2313 = vmax.f32 %v2239, 0.0
        %v2314 = vmax.f32 %v2242, 0.0
        %v2315 = vmax.f32 %v2247, 0.0
        %v2316 = vmax.f32 %v2250, 0.0
        %v2317 = vpack.c.bf16 %v2254, %v2253
        %v2318 = vpack.c.bf16 %v2256, %v2255
        %v2319 = vpack.c.bf16 %v2258, %v2257
        %v2320 = vpack.c.bf16 %v2260, %v2259
        %v2321 = vpack.c.bf16 %v2262, %v2261
        %v2322 = vpack.c.bf16 %v2264, %v2263
        %v2323 = vpack.c.bf16 %v2266, %v2265
        %v2324 = vpack.c.bf16 %v2268, %v2267
        %v2325 = vpack.c.bf16 %v2270, %v2269
        %v2326 = vpack.c.bf16 %v2272, %v2271
        %v2327 = vpack.c.bf16 %v2274, %v2273
        %v2328 = vpack.c.bf16 %v2276, %v2275
        %v2329 = vpack.c.bf16 %v2278, %v2277
        %v2330 = vpack.c.bf16 %v2280, %v2279
        %v2331 = vpack.c.bf16 %v2282, %v2281
        %v2332 = vpack.c.bf16 %v2284, %v2283
        %v2333 = vpack.c.bf16 %v2286, %v2285
        %v2334 = vpack.c.bf16 %v2288, %v2287
        %v2335 = vpack.c.bf16 %v2290, %v2289
        %v2336 = vpack.c.bf16 %v2292, %v2291
        %v2337 = vpack.c.bf16 %v2294, %v2293
        %v2338 = vpack.c.bf16 %v2296, %v2295
        %v2339 = vpack.c.bf16 %v2298, %v2297
        %v2340 = vpack.c.bf16 %v2300, %v2299
        %v2341 = vpack.c.bf16 %v2302, %v2301
        %v2342 = vpack.c.bf16 %v2304, %v2303
        %v2343 = vpack.c.bf16 %v2306, %v2305
        %v2344 = vpack.c.bf16 %v2308, %v2307
        %v2345 = vpack.c.bf16 %v2310, %v2309
        %v2346 = vpack.c.bf16 %v2312, %v2311
        %v2347 = vpack.c.bf16 %v2314, %v2313
        %v2348 = vpack.c.bf16 %v2316, %v2315
        %v2349 = vld [vmem:[%s3] sm:$0xf]
        %v2350 = vld [vmem:[%s3 + $0x4] sm:$0xf]
        %v2351 = vld [vmem:[%s3 + $0x8] sm:$0xf]
        %v2352 = vld [vmem:[%s3 + $0xc] sm:$0xf]
        %v2353 = vld [vmem:[%s3 + $0x10] sm:$0xf]
        %v2354 = vld [vmem:[%s3 + $0x14] sm:$0xf]
        %v2355 = vld [vmem:[%s3 + $0x18] sm:$0xf]
        %v2356 = vld [vmem:[%s3 + $0x1c] sm:$0xf]
        %v2357 = vld [vmem:[%s3 + $0x20] sm:$0xf]
        %v2358 = vld [vmem:[%s3 + $0x24] sm:$0xf]
        %v2359 = vld [vmem:[%s3 + $0x28] sm:$0xf]
        %v2360 = vld [vmem:[%s3 + $0x2c] sm:$0xf]
        %v2361 = vld [vmem:[%s3 + $0x30] sm:$0xf]
        %v2362 = vld [vmem:[%s3 + $0x34] sm:$0xf]
        %v2363 = vld [vmem:[%s3 + $0x38] sm:$0xf]
        %v2364 = vld [vmem:[%s3 + $0x3c] sm:$0xf]
        %v2381 = vunpack.c.l.b16 %v2349
        %v2382 = vunpack.c.l.b16 %v2350
        %v2383 = vunpack.c.l.b16 %v2351
        %v2384 = vunpack.c.l.b16 %v2352
        %v2385 = vunpack.c.l.b16 %v2353
        %v2386 = vunpack.c.l.b16 %v2354
        %v2387 = vunpack.c.l.b16 %v2355
        %v2388 = vunpack.c.l.b16 %v2356
        %v2389 = vunpack.c.l.b16 %v2357
        %v2390 = vunpack.c.l.b16 %v2358
        %v2391 = vunpack.c.l.b16 %v2359
        %v2392 = vunpack.c.l.b16 %v2360
        %v2393 = vunpack.c.l.b16 %v2361
        %v2394 = vunpack.c.l.b16 %v2362
        %v2395 = vunpack.c.l.b16 %v2363
        %v2396 = vunpack.c.l.b16 %v2364
        %v2397 = vpack.c.b16 %v2382, %v2381
        %v2398 = vpack.c.b16 %v2384, %v2383
        %v2399 = vpack.c.b16 %v2386, %v2385
        %v2400 = vpack.c.b16 %v2388, %v2387
        %v2401 = vpack.c.b16 %v2390, %v2389
        %v2402 = vpack.c.b16 %v2392, %v2391
        %v2403 = vpack.c.b16 %v2394, %v2393
        %v2404 = vpack.c.b16 %v2396, %v2395
        %2413 = vmatprep.subr.bf16.mxu0 0
        %2414 = vmatpush1.bf16.msra.mxu0 %v2397
        %2415 = vmatprep.subr.bf16.mxu0 0
        %2416 = vmatpush1.bf16.msra.mxu0 %v2398
        %2417 = vmatprep.subr.bf16.mxu0 0
        %2418 = vmatpush1.bf16.msra.mxu0 %v2399
        %2419 = vmatprep.subr.bf16.mxu0 0
        %2420 = vmatpush1.bf16.msra.mxu0 %v2400
        %2421 = vmatprep.subr.bf16.mxu0 0
        %2422 = vmatpush1.bf16.msra.mxu0 %v2401
        %2423 = vmatprep.subr.bf16.mxu0 0
        %2424 = vmatpush1.bf16.msra.mxu0 %v2402
        %2425 = vmatprep.subr.bf16.mxu0 0
        %2426 = vmatpush1.bf16.msra.mxu0 %v2403
        %2427 = vmatprep.subr.bf16.mxu0 0
        %2428 = vmatpush1.bf16.msra.mxu0 %v2404
        %2429 = vmatprep.subr.bf16.mxu0 0
        %2430 = vmatpush1.bf16.msra.mxu0 0
        %2431 = vmatprep.subr.bf16.mxu0 0
        %2432 = vmatpush1.bf16.msra.mxu0 0
        %2433 = vmatprep.subr.bf16.mxu0 0
        %2434 = vmatpush1.bf16.msra.mxu0 0
        %2435 = vmatprep.subr.bf16.mxu0 0
        %2436 = vmatpush1.bf16.msra.mxu0 0
        %2437 = vmatprep.subr.bf16.mxu0 0
        %2438 = vmatpush1.bf16.msra.mxu0 0
        %2439 = vmatprep.subr.bf16.mxu0 0
        %2440 = vmatpush1.bf16.msra.mxu0 0
        %2441 = vmatprep.subr.bf16.mxu0 0
        %2442 = vmatpush1.bf16.msra.mxu0 0
        %2443 = vmatprep.subr.bf16.mxu0 0
        %2444 = vmatpush1.bf16.msra.mxu0 0
        %2445 = vmatprep.mubr.bf16.mxu0 0
        %2446 = vmatmul.mubr.bf16.gmra.mrb[0].mxu0 %v2317
        %v2447 = vpop.f32.mrb[0].mxu0
        %v2448 = vadd.f32 0.0, %v2447
        %v2449 = vpop.f32.mrb[0].mxu0
        %v2450 = vpop.f32.mrb[0].mxu0
        %v2451 = vadd.f32 0.0, %v2450
        %v2452 = vpop.f32.mrb[0].mxu0
        %2453 = vmatprep.mubr.bf16.mxu0 0
        %2454 = vmatmul.mubr.bf16.gmra.mrb[0].mxu0 %v2318
        %v2455 = vpop.f32.mrb[0].mxu0
        %v2456 = vadd.f32 0.0, %v2455
        %v2457 = vpop.f32.mrb[0].mxu0
        %v2458 = vpop.f32.mrb[0].mxu0
        %v2459 = vadd.f32 0.0, %v2458
        %v2460 = vpop.f32.mrb[0].mxu0
        %2461 = vmatprep.mubr.bf16.mxu0 0
        %2462 = vmatmul.mubr.bf16.gmra.mrb[0].mxu0 %v2319
        %v2463 = vpop.f32.mrb[0].mxu0
        %v2464 = vadd.f32 0.0, %v2463
        %v2465 = vpop.f32.mrb[0].mxu0
        %v2466 = vpop.f32.mrb[0].mxu0
        %v2467 = vadd.f32 0.0, %v2466
        %v2468 = vpop.f32.mrb[0].mxu0
        %2469 = vmatprep.mubr.bf16.mxu0 0
        %2470 = vmatmul.mubr.bf16.gmra.mrb[0].mxu0 %v2320
        %v2471 = vpop.f32.mrb[0].mxu0
        %v2472 = vadd.f32 0.0, %v2471
        %v2473 = vpop.f32.mrb[0].mxu0
        %v2474 = vpop.f32.mrb[0].mxu0
        %v2475 = vadd.f32 0.0, %v2474
        %v2476 = vpop.f32.mrb[0].mxu0
        %2477 = vmatprep.mubr.bf16.mxu0 0
        %2478 = vmatmul.mubr.bf16.gmra.mrb[0].mxu0 %v2321
        %v2479 = vpop.f32.mrb[0].mxu0
        %v2480 = vadd.f32 0.0, %v2479
        %v2481 = vpop.f32.mrb[0].mxu0
        %v2482 = vpop.f32.mrb[0].mxu0
        %v2483 = vadd.f32 0.0, %v2482
        %v2484 = vpop.f32.mrb[0].mxu0
        %2485 = vmatprep.mubr.bf16.mxu0 0
        %2486 = vmatmul.mubr.bf16.gmra.mrb[0].mxu0 %v2322
        %v2487 = vpop.f32.mrb[0].mxu0
        %v2488 = vadd.f32 0.0, %v2487
        %v2489 = vpop.f32.mrb[0].mxu0
        %v2490 = vpop.f32.mrb[0].mxu0
        %v2491 = vadd.f32 0.0, %v2490
        %v2492 = vpop.f32.mrb[0].mxu0
        %2493 = vmatprep.mubr.bf16.mxu0 0
        %2494 = vmatmul.mubr.bf16.gmra.mrb[0].mxu0 %v2323
        %v2495 = vpop.f32.mrb[0].mxu0
        %v2496 = vadd.f32 0.0, %v2495
        %v2497 = vpop.f32.mrb[0].mxu0
        %v2498 = vpop.f32.mrb[0].mxu0
        %v2499 = vadd.f32 0.0, %v2498
        %v2500 = vpop.f32.mrb[0].mxu0
        %2501 = vmatprep.mubr.bf16.mxu0 0
        %2502 = vmatmul.mubr.bf16.gmra.mrb[0].mxu0 %v2324
        %v2503 = vpop.f32.mrb[0].mxu0
        %v2504 = vadd.f32 0.0, %v2503
        %v2505 = vpop.f32.mrb[0].mxu0
        %v2506 = vpop.f32.mrb[0].mxu0
        %v2507 = vadd.f32 0.0, %v2506
        %v2508 = vpop.f32.mrb[0].mxu0
        %2509 = vmatprep.mubr.bf16.mxu0 0
        %2510 = vmatmul.mubr.bf16.gmra.mrb[0].mxu0 %v2325
        %v2511 = vpop.f32.mrb[0].mxu0
        %v2512 = vadd.f32 0.0, %v2511
        %v2513 = vpop.f32.mrb[0].mxu0
        %v2514 = vpop.f32.mrb[0].mxu0
        %v2515 = vadd.f32 0.0, %v2514
        %v2516 = vpop.f32.mrb[0].mxu0
        %2517 = vmatprep.mubr.bf16.mxu0 0
        %2518 = vmatmul.mubr.bf16.gmra.mrb[0].mxu0 %v2326
        %v2519 = vpop.f32.mrb[0].mxu0
        %v2520 = vadd.f32 0.0, %v2519
        %v2521 = vpop.f32.mrb[0].mxu0
        %v2522 = vpop.f32.mrb[0].mxu0
        %v2523 = vadd.f32 0.0, %v2522
        %v2524 = vpop.f32.mrb[0].mxu0
        %2525 = vmatprep.mubr.bf16.mxu0 0
        %2526 = vmatmul.mubr.bf16.gmra.mrb[0].mxu0 %v2327
        %v2527 = vpop.f32.mrb[0].mxu0
        %v2528 = vadd.f32 0.0, %v2527
        %v2529 = vpop.f32.mrb[0].mxu0
        %v2530 = vpop.f32.mrb[0].mxu0
        %v2531 = vadd.f32 0.0, %v2530
        %v2532 = vpop.f32.mrb[0].mxu0
        %2533 = vmatprep.mubr.bf16.mxu0 0
        %2534 = vmatmul.mubr.bf16.gmra.mrb[0].mxu0 %v2328
        %v2535 = vpop.f32.mrb[0].mxu0
        %v2536 = vadd.f32 0.0, %v2535
        %v2537 = vpop.f32.mrb[0].mxu0
        %v2538 = vpop.f32.mrb[0].mxu0
        %v2539 = vadd.f32 0.0, %v2538
        %v2540 = vpop.f32.mrb[0].mxu0
        %2541 = vmatprep.mubr.bf16.mxu0 0
        %2542 = vmatmul.mubr.bf16.gmra.mrb[0].mxu0 %v2329
        %v2543 = vpop.f32.mrb[0].mxu0
        %v2544 = vadd.f32 0.0, %v2543
        %v2545 = vpop.f32.mrb[0].mxu0
        %v2546 = vpop.f32.mrb[0].mxu0
        %v2547 = vadd.f32 0.0, %v2546
        %v2548 = vpop.f32.mrb[0].mxu0
        %2549 = vmatprep.mubr.bf16.mxu0 0
        %2550 = vmatmul.mubr.bf16.gmra.mrb[0].mxu0 %v2330
        %v2551 = vpop.f32.mrb[0].mxu0
        %v2552 = vadd.f32 0.0, %v2551
        %v2553 = vpop.f32.mrb[0].mxu0
        %v2554 = vpop.f32.mrb[0].mxu0
        %v2555 = vadd.f32 0.0, %v2554
        %v2556 = vpop.f32.mrb[0].mxu0
        %2557 = vmatprep.mubr.bf16.mxu0 0
        %2558 = vmatmul.mubr.bf16.gmra.mrb[0].mxu0 %v2331
        %v2559 = vpop.f32.mrb[0].mxu0
        %v2560 = vadd.f32 0.0, %v2559
        %v2561 = vpop.f32.mrb[0].mxu0
        %v2562 = vpop.f32.mrb[0].mxu0
        %v2563 = vadd.f32 0.0, %v2562
        %v2564 = vpop.f32.mrb[0].mxu0
        %2565 = vmatprep.mubr.bf16.mxu0 0
        %2566 = vmatmul.mubr.bf16.gmra.mrb[0].mxu0 %v2332
        %v2567 = vpop.f32.mrb[0].mxu0
        %v2568 = vadd.f32 0.0, %v2567
        %v2569 = vpop.f32.mrb[0].mxu0
        %v2570 = vpop.f32.mrb[0].mxu0
        %v2571 = vadd.f32 0.0, %v2570
        %v2572 = vpop.f32.mrb[0].mxu0
        %2573 = vmatprep.mubr.bf16.mxu0 0
        %2574 = vmatmul.mubr.bf16.gmra.mrb[0].mxu0 %v2333
        %v2575 = vpop.f32.mrb[0].mxu0
        %v2576 = vadd.f32 0.0, %v2575
        %v2577 = vpop.f32.mrb[0].mxu0
        %v2578 = vpop.f32.mrb[0].mxu0
        %v2579 = vadd.f32 0.0, %v2578
        %v2580 = vpop.f32.mrb[0].mxu0
        %2581 = vmatprep.mubr.bf16.mxu0 0
        %2582 = vmatmul.mubr.bf16.gmra.mrb[0].mxu0 %v2334
        %v2583 = vpop.f32.mrb[0].mxu0
        %v2584 = vadd.f32 0.0, %v2583
        %v2585 = vpop.f32.mrb[0].mxu0
        %v2586 = vpop.f32.mrb[0].mxu0
        %v2587 = vadd.f32 0.0, %v2586
        %v2588 = vpop.f32.mrb[0].mxu0
        %2589 = vmatprep.mubr.bf16.mxu0 0
        %2590 = vmatmul.mubr.bf16.gmra.mrb[0].mxu0 %v2335
        %v2591 = vpop.f32.mrb[0].mxu0
        %v2592 = vadd.f32 0.0, %v2591
        %v2593 = vpop.f32.mrb[0].mxu0
        %v2594 = vpop.f32.mrb[0].mxu0
        %v2595 = vadd.f32 0.0, %v2594
        %v2596 = vpop.f32.mrb[0].mxu0
        %2597 = vmatprep.mubr.bf16.mxu0 0
        %2598 = vmatmul.mubr.bf16.gmra.mrb[0].mxu0 %v2336
        %v2599 = vpop.f32.mrb[0].mxu0
        %v2600 = vadd.f32 0.0, %v2599
        %v2601 = vpop.f32.mrb[0].mxu0
        %v2602 = vpop.f32.mrb[0].mxu0
        %v2603 = vadd.f32 0.0, %v2602
        %v2604 = vpop.f32.mrb[0].mxu0
        %2605 = vmatprep.mubr.bf16.mxu0 0
        %2606 = vmatmul.mubr.bf16.gmra.mrb[0].mxu0 %v2337
        %v2607 = vpop.f32.mrb[0].mxu0
        %v2608 = vadd.f32 0.0, %v2607
        %v2609 = vpop.f32.mrb[0].mxu0
        %v2610 = vpop.f32.mrb[0].mxu0
        %v2611 = vadd.f32 0.0, %v2610
        %v2612 = vpop.f32.mrb[0].mxu0
        %2613 = vmatprep.mubr.bf16.mxu0 0
        %2614 = vmatmul.mubr.bf16.gmra.mrb[0].mxu0 %v2338
        %v2615 = vpop.f32.mrb[0].mxu0
        %v2616 = vadd.f32 0.0, %v2615
        %v2617 = vpop.f32.mrb[0].mxu0
        %v2618 = vpop.f32.mrb[0].mxu0
        %v2619 = vadd.f32 0.0, %v2618
        %v2620 = vpop.f32.mrb[0].mxu0
        %2621 = vmatprep.mubr.bf16.mxu0 0
        %2622 = vmatmul.mubr.bf16.gmra.mrb[0].mxu0 %v2339
        %v2623 = vpop.f32.mrb[0].mxu0
        %v2624 = vadd.f32 0.0, %v2623
        %v2625 = vpop.f32.mrb[0].mxu0
        %v2626 = vpop.f32.mrb[0].mxu0
        %v2627 = vadd.f32 0.0, %v2626
        %v2628 = vpop.f32.mrb[0].mxu0
        %2629 = vmatprep.mubr.bf16.mxu0 0
        %2630 = vmatmul.mubr.bf16.gmra.mrb[0].mxu0 %v2340
        %v2631 = vpop.f32.mrb[0].mxu0
        %v2632 = vadd.f32 0.0, %v2631
        %v2633 = vpop.f32.mrb[0].mxu0
        %v2634 = vpop.f32.mrb[0].mxu0
        %v2635 = vadd.f32 0.0, %v2634
        %v2636 = vpop.f32.mrb[0].mxu0
        %2637 = vmatprep.mubr.bf16.mxu0 0
        %2638 = vmatmul.mubr.bf16.gmra.mrb[0].mxu0 %v2341
        %v2639 = vpop.f32.mrb[0].mxu0
        %v2640 = vadd.f32 0.0, %v2639
        %v2641 = vpop.f32.mrb[0].mxu0
        %v2642 = vpop.f32.mrb[0].mxu0
        %v2643 = vadd.f32 0.0, %v2642
        %v2644 = vpop.f32.mrb[0].mxu0
        %2645 = vmatprep.mubr.bf16.mxu0 0
        %2646 = vmatmul.mubr.bf16.gmra.mrb[0].mxu0 %v2342
        %v2647 = vpop.f32.mrb[0].mxu0
        %v2648 = vadd.f32 0.0, %v2647
        %v2649 = vpop.f32.mrb[0].mxu0
        %v2650 = vpop.f32.mrb[0].mxu0
        %v2651 = vadd.f32 0.0, %v2650
        %v2652 = vpop.f32.mrb[0].mxu0
        %2653 = vmatprep.mubr.bf16.mxu0 0
        %2654 = vmatmul.mubr.bf16.gmra.mrb[0].mxu0 %v2343
        %v2655 = vpop.f32.mrb[0].mxu0
        %v2656 = vadd.f32 0.0, %v2655
        %v2657 = vpop.f32.mrb[0].mxu0
        %v2658 = vpop.f32.mrb[0].mxu0
        %v2659 = vadd.f32 0.0, %v2658
        %v2660 = vpop.f32.mrb[0].mxu0
        %2661 = vmatprep.mubr.bf16.mxu0 0
        %2662 = vmatmul.mubr.bf16.gmra.mrb[0].mxu0 %v2344
        %v2663 = vpop.f32.mrb[0].mxu0
        %v2664 = vadd.f32 0.0, %v2663
        %v2665 = vpop.f32.mrb[0].mxu0
        %v2666 = vpop.f32.mrb[0].mxu0
        %v2667 = vadd.f32 0.0, %v2666
        %v2668 = vpop.f32.mrb[0].mxu0
        %2669 = vmatprep.mubr.bf16.mxu0 0
        %2670 = vmatmul.mubr.bf16.gmra.mrb[0].mxu0 %v2345
        %v2671 = vpop.f32.mrb[0].mxu0
        %v2672 = vadd.f32 0.0, %v2671
        %v2673 = vpop.f32.mrb[0].mxu0
        %v2674 = vpop.f32.mrb[0].mxu0
        %v2675 = vadd.f32 0.0, %v2674
        %v2676 = vpop.f32.mrb[0].mxu0
        %2677 = vmatprep.mubr.bf16.mxu0 0
        %2678 = vmatmul.mubr.bf16.gmra.mrb[0].mxu0 %v2346
        %v2679 = vpop.f32.mrb[0].mxu0
        %v2680 = vadd.f32 0.0, %v2679
        %v2681 = vpop.f32.mrb[0].mxu0
        %v2682 = vpop.f32.mrb[0].mxu0
        %v2683 = vadd.f32 0.0, %v2682
        %v2684 = vpop.f32.mrb[0].mxu0
        %2685 = vmatprep.mubr.bf16.mxu0 0
        %2686 = vmatmul.mubr.bf16.gmra.mrb[0].mxu0 %v2347
        %v2687 = vpop.f32.mrb[0].mxu0
        %v2688 = vadd.f32 0.0, %v2687
        %v2689 = vpop.f32.mrb[0].mxu0
        %v2690 = vpop.f32.mrb[0].mxu0
        %v2691 = vadd.f32 0.0, %v2690
        %v2692 = vpop.f32.mrb[0].mxu0
        %2693 = vmatprep.mubr.bf16.mxu0 0
        %2694 = vmatmul.mubr.bf16.gmra.mrb[0].mxu0 %v2348
        %v2695 = vpop.f32.mrb[0].mxu0
        %v2696 = vadd.f32 0.0, %v2695
        %v2697 = vpop.f32.mrb[0].mxu0
        %v2698 = vpop.f32.mrb[0].mxu0
        %v2699 = vadd.f32 0.0, %v2698
        %v2700 = vpop.f32.mrb[0].mxu0
        %2701 = vdwg.mxu0
        %v2702 = vpack.c.bf16 %v2451, %v2448
        %v2703 = vpack.c.bf16 %v2459, %v2456
        %v2704 = vpack.c.bf16 %v2467, %v2464
        %v2705 = vpack.c.bf16 %v2475, %v2472
        %v2706 = vpack.c.bf16 %v2483, %v2480
        %v2707 = vpack.c.bf16 %v2491, %v2488
        %v2708 = vpack.c.bf16 %v2499, %v2496
        %v2709 = vpack.c.bf16 %v2507, %v2504
        %v2710 = vpack.c.bf16 %v2515, %v2512
        %v2711 = vpack.c.bf16 %v2523, %v2520
        %v2712 = vpack.c.bf16 %v2531, %v2528
        %v2713 = vpack.c.bf16 %v2539, %v2536
        %v2714 = vpack.c.bf16 %v2547, %v2544
        %v2715 = vpack.c.bf16 %v2555, %v2552
        %v2716 = vpack.c.bf16 %v2563, %v2560
        %v2717 = vpack.c.bf16 %v2571, %v2568
        %v2718 = vpack.c.bf16 %v2579, %v2576
        %v2719 = vpack.c.bf16 %v2587, %v2584
        %v2720 = vpack.c.bf16 %v2595, %v2592
        %v2721 = vpack.c.bf16 %v2603, %v2600
        %v2722 = vpack.c.bf16 %v2611, %v2608
        %v2723 = vpack.c.bf16 %v2619, %v2616
        %v2724 = vpack.c.bf16 %v2627, %v2624
        %v2725 = vpack.c.bf16 %v2635, %v2632
        %v2726 = vpack.c.bf16 %v2643, %v2640
        %v2727 = vpack.c.bf16 %v2651, %v2648
        %v2728 = vpack.c.bf16 %v2659, %v2656
        %v2729 = vpack.c.bf16 %v2667, %v2664
        %v2730 = vpack.c.bf16 %v2675, %v2672
        %v2731 = vpack.c.bf16 %v2683, %v2680
        %v2732 = vpack.c.bf16 %v2691, %v2688
        %v2733 = vpack.c.bf16 %v2699, %v2696
        %s2734 = smul.addr %s1276, 8
        %s2735 = scalar_lea.vmem [#allocation3], %s2734
        %2736 = vst [vmem:[%s2735] sm:$0xff] %v2702
        %2737 = vst [vmem:[%s2735 + $0x8] sm:$0xff] %v2703
        %2738 = vst [vmem:[%s2735 + $0x10] sm:$0xff] %v2704
        %2739 = vst [vmem:[%s2735 + $0x18] sm:$0xff] %v2705
        %2740 = vst [vmem:[%s2735 + $0x20] sm:$0xff] %v2706
        %2741 = vst [vmem:[%s2735 + $0x28] sm:$0xff] %v2707
        %2742 = vst [vmem:[%s2735 + $0x30] sm:$0xff] %v2708
        %2743 = vst [vmem:[%s2735 + $0x38] sm:$0xff] %v2709
        %2744 = vst [vmem:[%s2735 + $0x40] sm:$0xff] %v2710
        %2745 = vst [vmem:[%s2735 + $0x48] sm:$0xff] %v2711
        %2746 = vst [vmem:[%s2735 + $0x50] sm:$0xff] %v2712
        %2747 = vst [vmem:[%s2735 + $0x58] sm:$0xff] %v2713
        %2748 = vst [vmem:[%s2735 + $0x60] sm:$0xff] %v2714
        %2749 = vst [vmem:[%s2735 + $0x68] sm:$0xff] %v2715
        %2750 = vst [vmem:[%s2735 + $0x70] sm:$0xff] %v2716
        %2751 = vst [vmem:[%s2735 + $0x78] sm:$0xff] %v2717
        %2752 = vst [vmem:[%s2735 + $0x80] sm:$0xff] %v2718
        %2753 = vst [vmem:[%s2735 + $0x88] sm:$0xff] %v2719
        %2754 = vst [vmem:[%s2735 + $0x90] sm:$0xff] %v2720
        %2755 = vst [vmem:[%s2735 + $0x98] sm:$0xff] %v2721
        %2756 = vst [vmem:[%s2735 + $0xa0] sm:$0xff] %v2722
        %2757 = vst [vmem:[%s2735 + $0xa8] sm:$0xff] %v2723
        %2758 = vst [vmem:[%s2735 + $0xb0] sm:$0xff] %v2724
        %2759 = vst [vmem:[%s2735 + $0xb8] sm:$0xff] %v2725
        %2760 = vst [vmem:[%s2735 + $0xc0] sm:$0xff] %v2726
        %2761 = vst [vmem:[%s2735 + $0xc8] sm:$0xff] %v2727
        %2762 = vst [vmem:[%s2735 + $0xd0] sm:$0xff] %v2728
        %2763 = vst [vmem:[%s2735 + $0xd8] sm:$0xff] %v2729
        %2764 = vst [vmem:[%s2735 + $0xe0] sm:$0xff] %v2730
        %2765 = vst [vmem:[%s2735 + $0xe8] sm:$0xff] %v2731
        %2766 = vst [vmem:[%s2735 + $0xf0] sm:$0xff] %v2732
        %2767 = vst [vmem:[%s2735 + $0xf8] sm:$0xff] %v2733
        %2768 = vst [vmem:[%s190] sm:$0xff] 0.0
        %2769 = vst [vmem:[%s190 + $0x8] sm:$0xff] 0.0
        %2770 = vst [vmem:[%s190 + $0x10] sm:$0xff] 0.0
        %2771 = vst [vmem:[%s190 + $0x18] sm:$0xff] 0.0
        %2772 = vst [vmem:[%s190 + $0x20] sm:$0xff] 0.0
        %2773 = vst [vmem:[%s190 + $0x28] sm:$0xff] 0.0
        %2774 = vst [vmem:[%s190 + $0x30] sm:$0xff] 0.0
        %2775 = vst [vmem:[%s190 + $0x38] sm:$0xff] 0.0
        %2776 = vst [vmem:[%s190 + $0x40] sm:$0xff] 0.0
        %2777 = vst [vmem:[%s190 + $0x48] sm:$0xff] 0.0
        %2778 = vst [vmem:[%s190 + $0x50] sm:$0xff] 0.0
        %2779 = vst [vmem:[%s190 + $0x58] sm:$0xff] 0.0
        %2780 = vst [vmem:[%s190 + $0x60] sm:$0xff] 0.0
        %2781 = vst [vmem:[%s190 + $0x68] sm:$0xff] 0.0
        %2782 = vst [vmem:[%s190 + $0x70] sm:$0xff] 0.0
        %2783 = vst [vmem:[%s190 + $0x78] sm:$0xff] 0.0
        %2784 = vst [vmem:[%s190 + $0x80] sm:$0xff] 0.0
        %2785 = vst [vmem:[%s190 + $0x88] sm:$0xff] 0.0
        %2786 = vst [vmem:[%s190 + $0x90] sm:$0xff] 0.0
        %2787 = vst [vmem:[%s190 + $0x98] sm:$0xff] 0.0
        %2788 = vst [vmem:[%s190 + $0xa0] sm:$0xff] 0.0
        %2789 = vst [vmem:[%s190 + $0xa8] sm:$0xff] 0.0
        %2790 = vst [vmem:[%s190 + $0xb0] sm:$0xff] 0.0
        %2791 = vst [vmem:[%s190 + $0xb8] sm:$0xff] 0.0
        %2792 = vst [vmem:[%s190 + $0xc0] sm:$0xff] 0.0
        %2793 = vst [vmem:[%s190 + $0xc8] sm:$0xff] 0.0
        %2794 = vst [vmem:[%s190 + $0xd0] sm:$0xff] 0.0
        %2795 = vst [vmem:[%s190 + $0xd8] sm:$0xff] 0.0
        %2796 = vst [vmem:[%s190 + $0xe0] sm:$0xff] 0.0
        %2797 = vst [vmem:[%s190 + $0xe8] sm:$0xff] 0.0
        %2798 = vst [vmem:[%s190 + $0xf0] sm:$0xff] 0.0
        %2799 = vst [vmem:[%s190 + $0xf8] sm:$0xff] 0.0
        %2800 = vst [vmem:[%s190 + $0x100] sm:$0xff] 0.0
        %2801 = vst [vmem:[%s190 + $0x108] sm:$0xff] 0.0
        %2802 = vst [vmem:[%s190 + $0x110] sm:$0xff] 0.0
        %2803 = vst [vmem:[%s190 + $0x118] sm:$0xff] 0.0
        %2804 = vst [vmem:[%s190 + $0x120] sm:$0xff] 0.0
        %2805 = vst [vmem:[%s190 + $0x128] sm:$0xff] 0.0
        %2806 = vst [vmem:[%s190 + $0x130] sm:$0xff] 0.0
        %2807 = vst [vmem:[%s190 + $0x138] sm:$0xff] 0.0
        %2808 = vst [vmem:[%s190 + $0x140] sm:$0xff] 0.0
        %2809 = vst [vmem:[%s190 + $0x148] sm:$0xff] 0.0
        %2810 = vst [vmem:[%s190 + $0x150] sm:$0xff] 0.0
        %2811 = vst [vmem:[%s190 + $0x158] sm:$0xff] 0.0
        %2812 = vst [vmem:[%s190 + $0x160] sm:$0xff] 0.0
        %2813 = vst [vmem:[%s190 + $0x168] sm:$0xff] 0.0
        %2814 = vst [vmem:[%s190 + $0x170] sm:$0xff] 0.0
        %2815 = vst [vmem:[%s190 + $0x178] sm:$0xff] 0.0
        %2816 = vst [vmem:[%s190 + $0x180] sm:$0xff] 0.0
        %2817 = vst [vmem:[%s190 + $0x188] sm:$0xff] 0.0
        %2818 = vst [vmem:[%s190 + $0x190] sm:$0xff] 0.0
        %2819 = vst [vmem:[%s190 + $0x198] sm:$0xff] 0.0
        %2820 = vst [vmem:[%s190 + $0x1a0] sm:$0xff] 0.0
        %2821 = vst [vmem:[%s190 + $0x1a8] sm:$0xff] 0.0
        %2822 = vst [vmem:[%s190 + $0x1b0] sm:$0xff] 0.0
        %2823 = vst [vmem:[%s190 + $0x1b8] sm:$0xff] 0.0
        %2824 = vst [vmem:[%s190 + $0x1c0] sm:$0xff] 0.0
        %2825 = vst [vmem:[%s190 + $0x1c8] sm:$0xff] 0.0
        %2826 = vst [vmem:[%s190 + $0x1d0] sm:$0xff] 0.0
        %2827 = vst [vmem:[%s190 + $0x1d8] sm:$0xff] 0.0
        %2828 = vst [vmem:[%s190 + $0x1e0] sm:$0xff] 0.0
        %2829 = vst [vmem:[%s190 + $0x1e8] sm:$0xff] 0.0
        %2830 = vst [vmem:[%s190 + $0x1f0] sm:$0xff] 0.0
        %2831 = vst [vmem:[%s190 + $0x1f8] sm:$0xff] 0.0
      $region82: #{gcn_apply.3} parent=35 // pred_fallthru
        _
      %p2832 = scmp.eq.s32.totalorder %s20, 1
      // Predicated region
      $region83: #{gcn_apply.3} parent=35 // pred_check
        %p2833 = pneg %p2832
      $region84: #{gcn_apply.3} parent=35 // pred_check_branch
        %2835 = sbr.rel (%p2833) target = $region86
      $region85: #{gcn_apply.3} parent=35 // pred_region
        %v2836 = vld [vmem:[#allocation3] sm:$0xff]
        %v2837 = vld [vmem:[#allocation3 + $0x8] sm:$0xff]
        %v2838 = vld [vmem:[#allocation3 + $0x10] sm:$0xff]
        %v2839 = vld [vmem:[#allocation3 + $0x18] sm:$0xff]
        %v2840 = vld [vmem:[#allocation3 + $0x20] sm:$0xff]
        %v2841 = vld [vmem:[#allocation3 + $0x28] sm:$0xff]
        %v2842 = vld [vmem:[#allocation3 + $0x30] sm:$0xff]
        %v2843 = vld [vmem:[#allocation3 + $0x38] sm:$0xff]
        %v2844 = vld [vmem:[#allocation3 + $0x40] sm:$0xff]
        %v2845 = vld [vmem:[#allocation3 + $0x48] sm:$0xff]
        %v2846 = vld [vmem:[#allocation3 + $0x50] sm:$0xff]
        %v2847 = vld [vmem:[#allocation3 + $0x58] sm:$0xff]
        %v2848 = vld [vmem:[#allocation3 + $0x60] sm:$0xff]
        %v2849 = vld [vmem:[#allocation3 + $0x68] sm:$0xff]
        %v2850 = vld [vmem:[#allocation3 + $0x70] sm:$0xff]
        %v2851 = vld [vmem:[#allocation3 + $0x78] sm:$0xff]
        %v2852 = vld [vmem:[#allocation3 + $0x80] sm:$0xff]
        %v2853 = vld [vmem:[#allocation3 + $0x88] sm:$0xff]
        %v2854 = vld [vmem:[#allocation3 + $0x90] sm:$0xff]
        %v2855 = vld [vmem:[#allocation3 + $0x98] sm:$0xff]
        %v2856 = vld [vmem:[#allocation3 + $0xa0] sm:$0xff]
        %v2857 = vld [vmem:[#allocation3 + $0xa8] sm:$0xff]
        %v2858 = vld [vmem:[#allocation3 + $0xb0] sm:$0xff]
        %v2859 = vld [vmem:[#allocation3 + $0xb8] sm:$0xff]
        %v2860 = vld [vmem:[#allocation3 + $0xc0] sm:$0xff]
        %v2861 = vld [vmem:[#allocation3 + $0xc8] sm:$0xff]
        %v2862 = vld [vmem:[#allocation3 + $0xd0] sm:$0xff]
        %v2863 = vld [vmem:[#allocation3 + $0xd8] sm:$0xff]
        %v2864 = vld [vmem:[#allocation3 + $0xe0] sm:$0xff]
        %v2865 = vld [vmem:[#allocation3 + $0xe8] sm:$0xff]
        %v2866 = vld [vmem:[#allocation3 + $0xf0] sm:$0xff]
        %v2867 = vld [vmem:[#allocation3 + $0xf8] sm:$0xff]
        %v2868 = vld [vmem:[%s4] sm:$0x1]
        %v2870 = vlaneseq
        %v2871 = vshrl.u32 %v2870, 7
        %v2872 = vsub.s32 0, %v2871
        %v2873 = vrot.slane %v2868, %v2872
        %2875 = vmatprep.subr.bf16.mxu0 0
        %2876 = vmatpush1.bf16.msra.mxu0 %v2836
        %2877 = vmatprep.subr.bf16.mxu0 0
        %2878 = vmatpush1.bf16.msra.mxu0 %v2837
        %2879 = vmatprep.subr.bf16.mxu0 0
        %2880 = vmatpush1.bf16.msra.mxu0 %v2838
        %2881 = vmatprep.subr.bf16.mxu0 0
        %2882 = vmatpush1.bf16.msra.mxu0 %v2839
        %2883 = vmatprep.subr.bf16.mxu0 0
        %2884 = vmatpush1.bf16.msra.mxu0 %v2840
        %2885 = vmatprep.subr.bf16.mxu0 0
        %2886 = vmatpush1.bf16.msra.mxu0 %v2841
        %2887 = vmatprep.subr.bf16.mxu0 0
        %2888 = vmatpush1.bf16.msra.mxu0 %v2842
        %2889 = vmatprep.subr.bf16.mxu0 0
        %2890 = vmatpush1.bf16.msra.mxu0 %v2843
        %2891 = vmatprep.subr.bf16.mxu0 0
        %2892 = vmatpush1.bf16.msra.mxu0 %v2844
        %2893 = vmatprep.subr.bf16.mxu0 0
        %2894 = vmatpush1.bf16.msra.mxu0 %v2845
        %2895 = vmatprep.subr.bf16.mxu0 0
        %2896 = vmatpush1.bf16.msra.mxu0 %v2846
        %2897 = vmatprep.subr.bf16.mxu0 0
        %2898 = vmatpush1.bf16.msra.mxu0 %v2847
        %2899 = vmatprep.subr.bf16.mxu0 0
        %2900 = vmatpush1.bf16.msra.mxu0 %v2848
        %2901 = vmatprep.subr.bf16.mxu0 0
        %2902 = vmatpush1.bf16.msra.mxu0 %v2849
        %2903 = vmatprep.subr.bf16.mxu0 0
        %2904 = vmatpush1.bf16.msra.mxu0 %v2850
        %2905 = vmatprep.subr.bf16.mxu0 0
        %2906 = vmatpush1.bf16.msra.mxu0 %v2851
        %2907 = vmatprep.mubr.bf16.mxu0 %v1282
        %2908 = vmatmul.mubr.bf16.gmra.mrb[0].mxu0 %v1281
        %v2909 = vpop.f32.mrb[0].mxu0
        %v2910 = vadd.f32 %v2873, %v2909
        %v2911 = vpop.f32.mrb[0].mxu0
        %v2912 = vpop.f32.mrb[0].mxu0
        %v2913 = vadd.f32 %v2873, %v2912
        %v2914 = vpop.f32.mrb[0].mxu0
        %2915 = vmatprep.mubr.bf16.mxu0 %v1286
        %2916 = vmatmul.mubr.bf16.gmra.mrb[0].mxu0 %v1285
        %v2917 = vpop.f32.mrb[0].mxu0
        %v2918 = vadd.f32 %v2873, %v2917
        %v2919 = vpop.f32.mrb[0].mxu0
        %v2920 = vpop.f32.mrb[0].mxu0
        %v2921 = vadd.f32 %v2873, %v2920
        %v2922 = vpop.f32.mrb[0].mxu0
        %2923 = vmatprep.mubr.bf16.mxu0 %v1290
        %2924 = vmatmul.mubr.bf16.gmra.mrb[0].mxu0 %v1289
        %v2925 = vpop.f32.mrb[0].mxu0
        %v2926 = vadd.f32 %v2873, %v2925
        %v2927 = vpop.f32.mrb[0].mxu0
        %v2928 = vpop.f32.mrb[0].mxu0
        %v2929 = vadd.f32 %v2873, %v2928
        %v2930 = vpop.f32.mrb[0].mxu0
        %2931 = vmatprep.mubr.bf16.mxu0 %v1294
        %2932 = vmatmul.mubr.bf16.gmra.mrb[0].mxu0 %v1293
        %v2933 = vpop.f32.mrb[0].mxu0
        %v2934 = vadd.f32 %v2873, %v2933
        %v2935 = vpop.f32.mrb[0].mxu0
        %v2936 = vpop.f32.mrb[0].mxu0
        %v2937 = vadd.f32 %v2873, %v2936
        %v2938 = vpop.f32.mrb[0].mxu0
        %2939 = vmatprep.mubr.bf16.mxu0 %v1298
        %2940 = vmatmul.mubr.bf16.gmra.mrb[0].mxu0 %v1297
        %v2941 = vpop.f32.mrb[0].mxu0
        %v2942 = vadd.f32 %v2873, %v2941
        %v2943 = vpop.f32.mrb[0].mxu0
        %v2944 = vpop.f32.mrb[0].mxu0
        %v2945 = vadd.f32 %v2873, %v2944
        %v2946 = vpop.f32.mrb[0].mxu0
        %2947 = vmatprep.mubr.bf16.mxu0 %v1302
        %2948 = vmatmul.mubr.bf16.gmra.mrb[0].mxu0 %v1301
        %v2949 = vpop.f32.mrb[0].mxu0
        %v2950 = vadd.f32 %v2873, %v2949
        %v2951 = vpop.f32.mrb[0].mxu0
        %v2952 = vpop.f32.mrb[0].mxu0
        %v2953 = vadd.f32 %v2873, %v2952
        %v2954 = vpop.f32.mrb[0].mxu0
        %2955 = vmatprep.mubr.bf16.mxu0 %v1306
        %2956 = vmatmul.mubr.bf16.gmra.mrb[0].mxu0 %v1305
        %v2957 = vpop.f32.mrb[0].mxu0
        %v2958 = vadd.f32 %v2873, %v2957
        %v2959 = vpop.f32.mrb[0].mxu0
        %v2960 = vpop.f32.mrb[0].mxu0
        %v2961 = vadd.f32 %v2873, %v2960
        %v2962 = vpop.f32.mrb[0].mxu0
        %2963 = vmatprep.mubr.bf16.mxu0 %v1310
        %2964 = vmatmul.mubr.bf16.gmra.mrb[0].mxu0 %v1309
        %v2965 = vpop.f32.mrb[0].mxu0
        %v2966 = vadd.f32 %v2873, %v2965
        %v2967 = vpop.f32.mrb[0].mxu0
        %v2968 = vpop.f32.mrb[0].mxu0
        %v2969 = vadd.f32 %v2873, %v2968
        %v2970 = vpop.f32.mrb[0].mxu0
        %2971 = vmatprep.mubr.bf16.mxu0 %v1314
        %2972 = vmatmul.mubr.bf16.gmra.mrb[0].mxu0 %v1313
        %v2973 = vpop.f32.mrb[0].mxu0
        %v2974 = vadd.f32 %v2873, %v2973
        %v2975 = vpop.f32.mrb[0].mxu0
        %v2976 = vpop.f32.mrb[0].mxu0
        %v2977 = vadd.f32 %v2873, %v2976
        %v2978 = vpop.f32.mrb[0].mxu0
        %2979 = vmatprep.mubr.bf16.mxu0 %v1318
        %2980 = vmatmul.mubr.bf16.gmra.mrb[0].mxu0 %v1317
        %v2981 = vpop.f32.mrb[0].mxu0
        %v2982 = vadd.f32 %v2873, %v2981
        %v2983 = vpop.f32.mrb[0].mxu0
        %v2984 = vpop.f32.mrb[0].mxu0
        %v2985 = vadd.f32 %v2873, %v2984
        %v2986 = vpop.f32.mrb[0].mxu0
        %2987 = vmatprep.mubr.bf16.mxu0 %v1322
        %2988 = vmatmul.mubr.bf16.gmra.mrb[0].mxu0 %v1321
        %v2989 = vpop.f32.mrb[0].mxu0
        %v2990 = vadd.f32 %v2873, %v2989
        %v2991 = vpop.f32.mrb[0].mxu0
        %v2992 = vpop.f32.mrb[0].mxu0
        %v2993 = vadd.f32 %v2873, %v2992
        %v2994 = vpop.f32.mrb[0].mxu0
        %2995 = vmatprep.mubr.bf16.mxu0 %v1326
        %2996 = vmatmul.mubr.bf16.gmra.mrb[0].mxu0 %v1325
        %v2997 = vpop.f32.mrb[0].mxu0
        %v2998 = vadd.f32 %v2873, %v2997
        %v2999 = vpop.f32.mrb[0].mxu0
        %v3000 = vpop.f32.mrb[0].mxu0
        %v3001 = vadd.f32 %v2873, %v3000
        %v3002 = vpop.f32.mrb[0].mxu0
        %3003 = vmatprep.mubr.bf16.mxu0 %v1330
        %3004 = vmatmul.mubr.bf16.gmra.mrb[0].mxu0 %v1329
        %v3005 = vpop.f32.mrb[0].mxu0
        %v3006 = vadd.f32 %v2873, %v3005
        %v3007 = vpop.f32.mrb[0].mxu0
        %v3008 = vpop.f32.mrb[0].mxu0
        %v3009 = vadd.f32 %v2873, %v3008
        %v3010 = vpop.f32.mrb[0].mxu0
        %3011 = vmatprep.mubr.bf16.mxu0 %v1334
        %3012 = vmatmul.mubr.bf16.gmra.mrb[0].mxu0 %v1333
        %v3013 = vpop.f32.mrb[0].mxu0
        %v3014 = vadd.f32 %v2873, %v3013
        %v3015 = vpop.f32.mrb[0].mxu0
        %v3016 = vpop.f32.mrb[0].mxu0
        %v3017 = vadd.f32 %v2873, %v3016
        %v3018 = vpop.f32.mrb[0].mxu0
        %3019 = vmatprep.mubr.bf16.mxu0 %v1338
        %3020 = vmatmul.mubr.bf16.gmra.mrb[0].mxu0 %v1337
        %v3021 = vpop.f32.mrb[0].mxu0
        %v3022 = vadd.f32 %v2873, %v3021
        %v3023 = vpop.f32.mrb[0].mxu0
        %v3024 = vpop.f32.mrb[0].mxu0
        %v3025 = vadd.f32 %v2873, %v3024
        %v3026 = vpop.f32.mrb[0].mxu0
        %3027 = vmatprep.mubr.bf16.mxu0 %v1342
        %3028 = vmatmul.mubr.bf16.gmra.mrb[0].mxu0 %v1341
        %v3029 = vpop.f32.mrb[0].mxu0
        %v3030 = vadd.f32 %v2873, %v3029
        %v3031 = vpop.f32.mrb[0].mxu0
        %v3032 = vpop.f32.mrb[0].mxu0
        %v3033 = vadd.f32 %v2873, %v3032
        %v3034 = vpop.f32.mrb[0].mxu0
        %3035 = vmatprep.mubr.bf16.mxu0 %v1346
        %3036 = vmatmul.mubr.bf16.gmra.mrb[0].mxu0 %v1345
        %v3037 = vpop.f32.mrb[0].mxu0
        %v3038 = vadd.f32 %v2873, %v3037
        %v3039 = vpop.f32.mrb[0].mxu0
        %v3040 = vpop.f32.mrb[0].mxu0
        %v3041 = vadd.f32 %v2873, %v3040
        %v3042 = vpop.f32.mrb[0].mxu0
        %3043 = vmatprep.mubr.bf16.mxu0 %v1350
        %3044 = vmatmul.mubr.bf16.gmra.mrb[0].mxu0 %v1349
        %v3045 = vpop.f32.mrb[0].mxu0
        %v3046 = vadd.f32 %v2873, %v3045
        %v3047 = vpop.f32.mrb[0].mxu0
        %v3048 = vpop.f32.mrb[0].mxu0
        %v3049 = vadd.f32 %v2873, %v3048
        %v3050 = vpop.f32.mrb[0].mxu0
        %3051 = vmatprep.mubr.bf16.mxu0 %v1354
        %3052 = vmatmul.mubr.bf16.gmra.mrb[0].mxu0 %v1353
        %v3053 = vpop.f32.mrb[0].mxu0
        %v3054 = vadd.f32 %v2873, %v3053
        %v3055 = vpop.f32.mrb[0].mxu0
        %v3056 = vpop.f32.mrb[0].mxu0
        %v3057 = vadd.f32 %v2873, %v3056
        %v3058 = vpop.f32.mrb[0].mxu0
        %3059 = vmatprep.mubr.bf16.mxu0 %v1358
        %3060 = vmatmul.mubr.bf16.gmra.mrb[0].mxu0 %v1357
        %v3061 = vpop.f32.mrb[0].mxu0
        %v3062 = vadd.f32 %v2873, %v3061
        %v3063 = vpop.f32.mrb[0].mxu0
        %v3064 = vpop.f32.mrb[0].mxu0
        %v3065 = vadd.f32 %v2873, %v3064
        %v3066 = vpop.f32.mrb[0].mxu0
        %3067 = vmatprep.mubr.bf16.mxu0 %v1362
        %3068 = vmatmul.mubr.bf16.gmra.mrb[0].mxu0 %v1361
        %v3069 = vpop.f32.mrb[0].mxu0
        %v3070 = vadd.f32 %v2873, %v3069
        %v3071 = vpop.f32.mrb[0].mxu0
        %v3072 = vpop.f32.mrb[0].mxu0
        %v3073 = vadd.f32 %v2873, %v3072
        %v3074 = vpop.f32.mrb[0].mxu0
        %3075 = vmatprep.mubr.bf16.mxu0 %v1366
        %3076 = vmatmul.mubr.bf16.gmra.mrb[0].mxu0 %v1365
        %v3077 = vpop.f32.mrb[0].mxu0
        %v3078 = vadd.f32 %v2873, %v3077
        %v3079 = vpop.f32.mrb[0].mxu0
        %v3080 = vpop.f32.mrb[0].mxu0
        %v3081 = vadd.f32 %v2873, %v3080
        %v3082 = vpop.f32.mrb[0].mxu0
        %3083 = vmatprep.mubr.bf16.mxu0 %v1370
        %3084 = vmatmul.mubr.bf16.gmra.mrb[0].mxu0 %v1369
        %v3085 = vpop.f32.mrb[0].mxu0
        %v3086 = vadd.f32 %v2873, %v3085
        %v3087 = vpop.f32.mrb[0].mxu0
        %v3088 = vpop.f32.mrb[0].mxu0
        %v3089 = vadd.f32 %v2873, %v3088
        %v3090 = vpop.f32.mrb[0].mxu0
        %3091 = vmatprep.mubr.bf16.mxu0 %v1374
        %3092 = vmatmul.mubr.bf16.gmra.mrb[0].mxu0 %v1373
        %v3093 = vpop.f32.mrb[0].mxu0
        %v3094 = vadd.f32 %v2873, %v3093
        %v3095 = vpop.f32.mrb[0].mxu0
        %v3096 = vpop.f32.mrb[0].mxu0
        %v3097 = vadd.f32 %v2873, %v3096
        %v3098 = vpop.f32.mrb[0].mxu0
        %3099 = vmatprep.mubr.bf16.mxu0 %v1378
        %3100 = vmatmul.mubr.bf16.gmra.mrb[0].mxu0 %v1377
        %v3101 = vpop.f32.mrb[0].mxu0
        %v3102 = vadd.f32 %v2873, %v3101
        %v3103 = vpop.f32.mrb[0].mxu0
        %v3104 = vpop.f32.mrb[0].mxu0
        %v3105 = vadd.f32 %v2873, %v3104
        %v3106 = vpop.f32.mrb[0].mxu0
        %3107 = vmatprep.mubr.bf16.mxu0 %v1382
        %3108 = vmatmul.mubr.bf16.gmra.mrb[0].mxu0 %v1381
        %v3109 = vpop.f32.mrb[0].mxu0
        %v3110 = vadd.f32 %v2873, %v3109
        %v3111 = vpop.f32.mrb[0].mxu0
        %v3112 = vpop.f32.mrb[0].mxu0
        %v3113 = vadd.f32 %v2873, %v3112
        %v3114 = vpop.f32.mrb[0].mxu0
        %3115 = vmatprep.mubr.bf16.mxu0 %v1386
        %3116 = vmatmul.mubr.bf16.gmra.mrb[0].mxu0 %v1385
        %v3117 = vpop.f32.mrb[0].mxu0
        %v3118 = vadd.f32 %v2873, %v3117
        %v3119 = vpop.f32.mrb[0].mxu0
        %v3120 = vpop.f32.mrb[0].mxu0
        %v3121 = vadd.f32 %v2873, %v3120
        %v3122 = vpop.f32.mrb[0].mxu0
        %3123 = vmatprep.mubr.bf16.mxu0 %v1390
        %3124 = vmatmul.mubr.bf16.gmra.mrb[0].mxu0 %v1389
        %v3125 = vpop.f32.mrb[0].mxu0
        %v3126 = vadd.f32 %v2873, %v3125
        %v3127 = vpop.f32.mrb[0].mxu0
        %v3128 = vpop.f32.mrb[0].mxu0
        %v3129 = vadd.f32 %v2873, %v3128
        %v3130 = vpop.f32.mrb[0].mxu0
        %3131 = vmatprep.mubr.bf16.mxu0 %v1394
        %3132 = vmatmul.mubr.bf16.gmra.mrb[0].mxu0 %v1393
        %v3133 = vpop.f32.mrb[0].mxu0
        %v3134 = vadd.f32 %v2873, %v3133
        %v3135 = vpop.f32.mrb[0].mxu0
        %v3136 = vpop.f32.mrb[0].mxu0
        %v3137 = vadd.f32 %v2873, %v3136
        %v3138 = vpop.f32.mrb[0].mxu0
        %3139 = vmatprep.mubr.bf16.mxu0 %v1398
        %3140 = vmatmul.mubr.bf16.gmra.mrb[0].mxu0 %v1397
        %v3141 = vpop.f32.mrb[0].mxu0
        %v3142 = vadd.f32 %v2873, %v3141
        %v3143 = vpop.f32.mrb[0].mxu0
        %v3144 = vpop.f32.mrb[0].mxu0
        %v3145 = vadd.f32 %v2873, %v3144
        %v3146 = vpop.f32.mrb[0].mxu0
        %3147 = vmatprep.mubr.bf16.mxu0 %v1402
        %3148 = vmatmul.mubr.bf16.gmra.mrb[0].mxu0 %v1401
        %v3149 = vpop.f32.mrb[0].mxu0
        %v3150 = vadd.f32 %v2873, %v3149
        %v3151 = vpop.f32.mrb[0].mxu0
        %v3152 = vpop.f32.mrb[0].mxu0
        %v3153 = vadd.f32 %v2873, %v3152
        %v3154 = vpop.f32.mrb[0].mxu0
        %3155 = vmatprep.mubr.bf16.mxu0 %v1406
        %3156 = vmatmul.mubr.bf16.gmra.mrb[0].mxu0 %v1405
        %v3157 = vpop.f32.mrb[0].mxu0
        %v3158 = vadd.f32 %v2873, %v3157
        %v3159 = vpop.f32.mrb[0].mxu0
        %v3160 = vpop.f32.mrb[0].mxu0
        %v3161 = vadd.f32 %v2873, %v3160
        %v3162 = vpop.f32.mrb[0].mxu0
        %3163 = vdwg.mxu0
        %3164 = vmatprep.subr.bf16.mxu0 0
        %3165 = vmatpush1.bf16.msra.mxu0 %v2852
        %3166 = vmatprep.subr.bf16.mxu0 0
        %3167 = vmatpush1.bf16.msra.mxu0 %v2853
        %3168 = vmatprep.subr.bf16.mxu0 0
        %3169 = vmatpush1.bf16.msra.mxu0 %v2854
        %3170 = vmatprep.subr.bf16.mxu0 0
        %3171 = vmatpush1.bf16.msra.mxu0 %v2855
        %3172 = vmatprep.subr.bf16.mxu0 0
        %3173 = vmatpush1.bf16.msra.mxu0 %v2856
        %3174 = vmatprep.subr.bf16.mxu0 0
        %3175 = vmatpush1.bf16.msra.mxu0 %v2857
        %3176 = vmatprep.subr.bf16.mxu0 0
        %3177 = vmatpush1.bf16.msra.mxu0 %v2858
        %3178 = vmatprep.subr.bf16.mxu0 0
        %3179 = vmatpush1.bf16.msra.mxu0 %v2859
        %3180 = vmatprep.subr.bf16.mxu0 0
        %3181 = vmatpush1.bf16.msra.mxu0 %v2860
        %3182 = vmatprep.subr.bf16.mxu0 0
        %3183 = vmatpush1.bf16.msra.mxu0 %v2861
        %3184 = vmatprep.subr.bf16.mxu0 0
        %3185 = vmatpush1.bf16.msra.mxu0 %v2862
        %3186 = vmatprep.subr.bf16.mxu0 0
        %3187 = vmatpush1.bf16.msra.mxu0 %v2863
        %3188 = vmatprep.subr.bf16.mxu0 0
        %3189 = vmatpush1.bf16.msra.mxu0 %v2864
        %3190 = vmatprep.subr.bf16.mxu0 0
        %3191 = vmatpush1.bf16.msra.mxu0 %v2865
        %3192 = vmatprep.subr.bf16.mxu0 0
        %3193 = vmatpush1.bf16.msra.mxu0 %v2866
        %3194 = vmatprep.subr.bf16.mxu0 0
        %3195 = vmatpush1.bf16.msra.mxu0 %v2867
        %3196 = vmatprep.mubr.bf16.mxu0 %v1284
        %3197 = vmatmul.mubr.bf16.gmra.mrb[0].mxu0 %v1283
        %v3198 = vpop.f32.mrb[0].mxu0
        %v3199 = vadd.f32 %v2910, %v3198
        %v3200 = vpop.f32.mrb[0].mxu0
        %v3201 = vpop.f32.mrb[0].mxu0
        %v3202 = vadd.f32 %v2913, %v3201
        %v3203 = vpop.f32.mrb[0].mxu0
        %3204 = vmatprep.mubr.bf16.mxu0 %v1288
        %3205 = vmatmul.mubr.bf16.gmra.mrb[0].mxu0 %v1287
        %v3206 = vpop.f32.mrb[0].mxu0
        %v3207 = vadd.f32 %v2918, %v3206
        %v3208 = vpop.f32.mrb[0].mxu0
        %v3209 = vpop.f32.mrb[0].mxu0
        %v3210 = vadd.f32 %v2921, %v3209
        %v3211 = vpop.f32.mrb[0].mxu0
        %3212 = vmatprep.mubr.bf16.mxu0 %v1292
        %3213 = vmatmul.mubr.bf16.gmra.mrb[0].mxu0 %v1291
        %v3214 = vpop.f32.mrb[0].mxu0
        %v3215 = vadd.f32 %v2926, %v3214
        %v3216 = vpop.f32.mrb[0].mxu0
        %v3217 = vpop.f32.mrb[0].mxu0
        %v3218 = vadd.f32 %v2929, %v3217
        %v3219 = vpop.f32.mrb[0].mxu0
        %3220 = vmatprep.mubr.bf16.mxu0 %v1296
        %3221 = vmatmul.mubr.bf16.gmra.mrb[0].mxu0 %v1295
        %v3222 = vpop.f32.mrb[0].mxu0
        %v3223 = vadd.f32 %v2934, %v3222
        %v3224 = vpop.f32.mrb[0].mxu0
        %v3225 = vpop.f32.mrb[0].mxu0
        %v3226 = vadd.f32 %v2937, %v3225
        %v3227 = vpop.f32.mrb[0].mxu0
        %3228 = vmatprep.mubr.bf16.mxu0 %v1300
        %3229 = vmatmul.mubr.bf16.gmra.mrb[0].mxu0 %v1299
        %v3230 = vpop.f32.mrb[0].mxu0
        %v3231 = vadd.f32 %v2942, %v3230
        %v3232 = vpop.f32.mrb[0].mxu0
        %v3233 = vpop.f32.mrb[0].mxu0
        %v3234 = vadd.f32 %v2945, %v3233
        %v3235 = vpop.f32.mrb[0].mxu0
        %3236 = vmatprep.mubr.bf16.mxu0 %v1304
        %3237 = vmatmul.mubr.bf16.gmra.mrb[0].mxu0 %v1303
        %v3238 = vpop.f32.mrb[0].mxu0
        %v3239 = vadd.f32 %v2950, %v3238
        %v3240 = vpop.f32.mrb[0].mxu0
        %v3241 = vpop.f32.mrb[0].mxu0
        %v3242 = vadd.f32 %v2953, %v3241
        %v3243 = vpop.f32.mrb[0].mxu0
        %3244 = vmatprep.mubr.bf16.mxu0 %v1308
        %3245 = vmatmul.mubr.bf16.gmra.mrb[0].mxu0 %v1307
        %v3246 = vpop.f32.mrb[0].mxu0
        %v3247 = vadd.f32 %v2958, %v3246
        %v3248 = vpop.f32.mrb[0].mxu0
        %v3249 = vpop.f32.mrb[0].mxu0
        %v3250 = vadd.f32 %v2961, %v3249
        %v3251 = vpop.f32.mrb[0].mxu0
        %3252 = vmatprep.mubr.bf16.mxu0 %v1312
        %3253 = vmatmul.mubr.bf16.gmra.mrb[0].mxu0 %v1311
        %v3254 = vpop.f32.mrb[0].mxu0
        %v3255 = vadd.f32 %v2966, %v3254
        %v3256 = vpop.f32.mrb[0].mxu0
        %v3257 = vpop.f32.mrb[0].mxu0
        %v3258 = vadd.f32 %v2969, %v3257
        %v3259 = vpop.f32.mrb[0].mxu0
        %3260 = vmatprep.mubr.bf16.mxu0 %v1316
        %3261 = vmatmul.mubr.bf16.gmra.mrb[0].mxu0 %v1315
        %v3262 = vpop.f32.mrb[0].mxu0
        %v3263 = vadd.f32 %v2974, %v3262
        %v3264 = vpop.f32.mrb[0].mxu0
        %v3265 = vpop.f32.mrb[0].mxu0
        %v3266 = vadd.f32 %v2977, %v3265
        %v3267 = vpop.f32.mrb[0].mxu0
        %3268 = vmatprep.mubr.bf16.mxu0 %v1320
        %3269 = vmatmul.mubr.bf16.gmra.mrb[0].mxu0 %v1319
        %v3270 = vpop.f32.mrb[0].mxu0
        %v3271 = vadd.f32 %v2982, %v3270
        %v3272 = vpop.f32.mrb[0].mxu0
        %v3273 = vpop.f32.mrb[0].mxu0
        %v3274 = vadd.f32 %v2985, %v3273
        %v3275 = vpop.f32.mrb[0].mxu0
        %3276 = vmatprep.mubr.bf16.mxu0 %v1324
        %3277 = vmatmul.mubr.bf16.gmra.mrb[0].mxu0 %v1323
        %v3278 = vpop.f32.mrb[0].mxu0
        %v3279 = vadd.f32 %v2990, %v3278
        %v3280 = vpop.f32.mrb[0].mxu0
        %v3281 = vpop.f32.mrb[0].mxu0
        %v3282 = vadd.f32 %v2993, %v3281
        %v3283 = vpop.f32.mrb[0].mxu0
        %3284 = vmatprep.mubr.bf16.mxu0 %v1328
        %3285 = vmatmul.mubr.bf16.gmra.mrb[0].mxu0 %v1327
        %v3286 = vpop.f32.mrb[0].mxu0
        %v3287 = vadd.f32 %v2998, %v3286
        %v3288 = vpop.f32.mrb[0].mxu0
        %v3289 = vpop.f32.mrb[0].mxu0
        %v3290 = vadd.f32 %v3001, %v3289
        %v3291 = vpop.f32.mrb[0].mxu0
        %3292 = vmatprep.mubr.bf16.mxu0 %v1332
        %3293 = vmatmul.mubr.bf16.gmra.mrb[0].mxu0 %v1331
        %v3294 = vpop.f32.mrb[0].mxu0
        %v3295 = vadd.f32 %v3006, %v3294
        %v3296 = vpop.f32.mrb[0].mxu0
        %v3297 = vpop.f32.mrb[0].mxu0
        %v3298 = vadd.f32 %v3009, %v3297
        %v3299 = vpop.f32.mrb[0].mxu0
        %3300 = vmatprep.mubr.bf16.mxu0 %v1336
        %3301 = vmatmul.mubr.bf16.gmra.mrb[0].mxu0 %v1335
        %v3302 = vpop.f32.mrb[0].mxu0
        %v3303 = vadd.f32 %v3014, %v3302
        %v3304 = vpop.f32.mrb[0].mxu0
        %v3305 = vpop.f32.mrb[0].mxu0
        %v3306 = vadd.f32 %v3017, %v3305
        %v3307 = vpop.f32.mrb[0].mxu0
        %3308 = vmatprep.mubr.bf16.mxu0 %v1340
        %3309 = vmatmul.mubr.bf16.gmra.mrb[0].mxu0 %v1339
        %v3310 = vpop.f32.mrb[0].mxu0
        %v3311 = vadd.f32 %v3022, %v3310
        %v3312 = vpop.f32.mrb[0].mxu0
        %v3313 = vpop.f32.mrb[0].mxu0
        %v3314 = vadd.f32 %v3025, %v3313
        %v3315 = vpop.f32.mrb[0].mxu0
        %3316 = vmatprep.mubr.bf16.mxu0 %v1344
        %3317 = vmatmul.mubr.bf16.gmra.mrb[0].mxu0 %v1343
        %v3318 = vpop.f32.mrb[0].mxu0
        %v3319 = vadd.f32 %v3030, %v3318
        %v3320 = vpop.f32.mrb[0].mxu0
        %v3321 = vpop.f32.mrb[0].mxu0
        %v3322 = vadd.f32 %v3033, %v3321
        %v3323 = vpop.f32.mrb[0].mxu0
        %3324 = vmatprep.mubr.bf16.mxu0 %v1348
        %3325 = vmatmul.mubr.bf16.gmra.mrb[0].mxu0 %v1347
        %v3326 = vpop.f32.mrb[0].mxu0
        %v3327 = vadd.f32 %v3038, %v3326
        %v3328 = vpop.f32.mrb[0].mxu0
        %v3329 = vpop.f32.mrb[0].mxu0
        %v3330 = vadd.f32 %v3041, %v3329
        %v3331 = vpop.f32.mrb[0].mxu0
        %3332 = vmatprep.mubr.bf16.mxu0 %v1352
        %3333 = vmatmul.mubr.bf16.gmra.mrb[0].mxu0 %v1351
        %v3334 = vpop.f32.mrb[0].mxu0
        %v3335 = vadd.f32 %v3046, %v3334
        %v3336 = vpop.f32.mrb[0].mxu0
        %v3337 = vpop.f32.mrb[0].mxu0
        %v3338 = vadd.f32 %v3049, %v3337
        %v3339 = vpop.f32.mrb[0].mxu0
        %3340 = vmatprep.mubr.bf16.mxu0 %v1356
        %3341 = vmatmul.mubr.bf16.gmra.mrb[0].mxu0 %v1355
        %v3342 = vpop.f32.mrb[0].mxu0
        %v3343 = vadd.f32 %v3054, %v3342
        %v3344 = vpop.f32.mrb[0].mxu0
        %v3345 = vpop.f32.mrb[0].mxu0
        %v3346 = vadd.f32 %v3057, %v3345
        %v3347 = vpop.f32.mrb[0].mxu0
        %3348 = vmatprep.mubr.bf16.mxu0 %v1360
        %3349 = vmatmul.mubr.bf16.gmra.mrb[0].mxu0 %v1359
        %v3350 = vpop.f32.mrb[0].mxu0
        %v3351 = vadd.f32 %v3062, %v3350
        %v3352 = vpop.f32.mrb[0].mxu0
        %v3353 = vpop.f32.mrb[0].mxu0
        %v3354 = vadd.f32 %v3065, %v3353
        %v3355 = vpop.f32.mrb[0].mxu0
        %3356 = vmatprep.mubr.bf16.mxu0 %v1364
        %3357 = vmatmul.mubr.bf16.gmra.mrb[0].mxu0 %v1363
        %v3358 = vpop.f32.mrb[0].mxu0
        %v3359 = vadd.f32 %v3070, %v3358
        %v3360 = vpop.f32.mrb[0].mxu0
        %v3361 = vpop.f32.mrb[0].mxu0
        %v3362 = vadd.f32 %v3073, %v3361
        %v3363 = vpop.f32.mrb[0].mxu0
        %3364 = vmatprep.mubr.bf16.mxu0 %v1368
        %3365 = vmatmul.mubr.bf16.gmra.mrb[0].mxu0 %v1367
        %v3366 = vpop.f32.mrb[0].mxu0
        %v3367 = vadd.f32 %v3078, %v3366
        %v3368 = vpop.f32.mrb[0].mxu0
        %v3369 = vpop.f32.mrb[0].mxu0
        %v3370 = vadd.f32 %v3081, %v3369
        %v3371 = vpop.f32.mrb[0].mxu0
        %3372 = vmatprep.mubr.bf16.mxu0 %v1372
        %3373 = vmatmul.mubr.bf16.gmra.mrb[0].mxu0 %v1371
        %v3374 = vpop.f32.mrb[0].mxu0
        %v3375 = vadd.f32 %v3086, %v3374
        %v3376 = vpop.f32.mrb[0].mxu0
        %v3377 = vpop.f32.mrb[0].mxu0
        %v3378 = vadd.f32 %v3089, %v3377
        %v3379 = vpop.f32.mrb[0].mxu0
        %3380 = vmatprep.mubr.bf16.mxu0 %v1376
        %3381 = vmatmul.mubr.bf16.gmra.mrb[0].mxu0 %v1375
        %v3382 = vpop.f32.mrb[0].mxu0
        %v3383 = vadd.f32 %v3094, %v3382
        %v3384 = vpop.f32.mrb[0].mxu0
        %v3385 = vpop.f32.mrb[0].mxu0
        %v3386 = vadd.f32 %v3097, %v3385
        %v3387 = vpop.f32.mrb[0].mxu0
        %3388 = vmatprep.mubr.bf16.mxu0 %v1380
        %3389 = vmatmul.mubr.bf16.gmra.mrb[0].mxu0 %v1379
        %v3390 = vpop.f32.mrb[0].mxu0
        %v3391 = vadd.f32 %v3102, %v3390
        %v3392 = vpop.f32.mrb[0].mxu0
        %v3393 = vpop.f32.mrb[0].mxu0
        %v3394 = vadd.f32 %v3105, %v3393
        %v3395 = vpop.f32.mrb[0].mxu0
        %3396 = vmatprep.mubr.bf16.mxu0 %v1384
        %3397 = vmatmul.mubr.bf16.gmra.mrb[0].mxu0 %v1383
        %v3398 = vpop.f32.mrb[0].mxu0
        %v3399 = vadd.f32 %v3110, %v3398
        %v3400 = vpop.f32.mrb[0].mxu0
        %v3401 = vpop.f32.mrb[0].mxu0
        %v3402 = vadd.f32 %v3113, %v3401
        %v3403 = vpop.f32.mrb[0].mxu0
        %3404 = vmatprep.mubr.bf16.mxu0 %v1388
        %3405 = vmatmul.mubr.bf16.gmra.mrb[0].mxu0 %v1387
        %v3406 = vpop.f32.mrb[0].mxu0
        %v3407 = vadd.f32 %v3118, %v3406
        %v3408 = vpop.f32.mrb[0].mxu0
        %v3409 = vpop.f32.mrb[0].mxu0
        %v3410 = vadd.f32 %v3121, %v3409
        %v3411 = vpop.f32.mrb[0].mxu0
        %3412 = vmatprep.mubr.bf16.mxu0 %v1392
        %3413 = vmatmul.mubr.bf16.gmra.mrb[0].mxu0 %v1391
        %v3414 = vpop.f32.mrb[0].mxu0
        %v3415 = vadd.f32 %v3126, %v3414
        %v3416 = vpop.f32.mrb[0].mxu0
        %v3417 = vpop.f32.mrb[0].mxu0
        %v3418 = vadd.f32 %v3129, %v3417
        %v3419 = vpop.f32.mrb[0].mxu0
        %3420 = vmatprep.mubr.bf16.mxu0 %v1396
        %3421 = vmatmul.mubr.bf16.gmra.mrb[0].mxu0 %v1395
        %v3422 = vpop.f32.mrb[0].mxu0
        %v3423 = vadd.f32 %v3134, %v3422
        %v3424 = vpop.f32.mrb[0].mxu0
        %v3425 = vpop.f32.mrb[0].mxu0
        %v3426 = vadd.f32 %v3137, %v3425
        %v3427 = vpop.f32.mrb[0].mxu0
        %3428 = vmatprep.mubr.bf16.mxu0 %v1400
        %3429 = vmatmul.mubr.bf16.gmra.mrb[0].mxu0 %v1399
        %v3430 = vpop.f32.mrb[0].mxu0
        %v3431 = vadd.f32 %v3142, %v3430
        %v3432 = vpop.f32.mrb[0].mxu0
        %v3433 = vpop.f32.mrb[0].mxu0
        %v3434 = vadd.f32 %v3145, %v3433
        %v3435 = vpop.f32.mrb[0].mxu0
        %3436 = vmatprep.mubr.bf16.mxu0 %v1404
        %3437 = vmatmul.mubr.bf16.gmra.mrb[0].mxu0 %v1403
        %v3438 = vpop.f32.mrb[0].mxu0
        %v3439 = vadd.f32 %v3150, %v3438
        %v3440 = vpop.f32.mrb[0].mxu0
        %v3441 = vpop.f32.mrb[0].mxu0
        %v3442 = vadd.f32 %v3153, %v3441
        %v3443 = vpop.f32.mrb[0].mxu0
        %3444 = vmatprep.mubr.bf16.mxu0 %v1408
        %3445 = vmatmul.mubr.bf16.gmra.mrb[0].mxu0 %v1407
        %v3446 = vpop.f32.mrb[0].mxu0
        %v3447 = vadd.f32 %v3158, %v3446
        %v3448 = vpop.f32.mrb[0].mxu0
        %v3449 = vpop.f32.mrb[0].mxu0
        %v3450 = vadd.f32 %v3161, %v3449
        %v3451 = vpop.f32.mrb[0].mxu0
        %3452 = vdwg.mxu0
        %3453 = vmax.xlane.f32.xlu0 %v3199
        %v3454 = vpop.xlane.xlu0 %3453
        %3455 = vmax.xlane.f32.xlu0 %v3202
        %v3456 = vpop.xlane.xlu0 %3455
        %3457 = vmax.xlane.f32.xlu0 %v3207
        %v3458 = vpop.xlane.xlu0 %3457
        %3459 = vmax.xlane.f32.xlu0 %v3210
        %v3460 = vpop.xlane.xlu0 %3459
        %3461 = vmax.xlane.f32.xlu0 %v3215
        %v3462 = vpop.xlane.xlu0 %3461
        %3463 = vmax.xlane.f32.xlu0 %v3218
        %v3464 = vpop.xlane.xlu0 %3463
        %3465 = vmax.xlane.f32.xlu0 %v3223
        %v3466 = vpop.xlane.xlu0 %3465
        %3467 = vmax.xlane.f32.xlu0 %v3226
        %v3468 = vpop.xlane.xlu0 %3467
        %3469 = vmax.xlane.f32.xlu0 %v3231
        %v3470 = vpop.xlane.xlu0 %3469
        %3471 = vmax.xlane.f32.xlu0 %v3234
        %v3472 = vpop.xlane.xlu0 %3471
        %3473 = vmax.xlane.f32.xlu0 %v3239
        %v3474 = vpop.xlane.xlu0 %3473
        %3475 = vmax.xlane.f32.xlu0 %v3242
        %v3476 = vpop.xlane.xlu0 %3475
        %3477 = vmax.xlane.f32.xlu0 %v3247
        %v3478 = vpop.xlane.xlu0 %3477
        %3479 = vmax.xlane.f32.xlu0 %v3250
        %v3480 = vpop.xlane.xlu0 %3479
        %3481 = vmax.xlane.f32.xlu0 %v3255
        %v3482 = vpop.xlane.xlu0 %3481
        %3483 = vmax.xlane.f32.xlu0 %v3258
        %v3484 = vpop.xlane.xlu0 %3483
        %3485 = vmax.xlane.f32.xlu0 %v3263
        %v3486 = vpop.xlane.xlu0 %3485
        %3487 = vmax.xlane.f32.xlu0 %v3266
        %v3488 = vpop.xlane.xlu0 %3487
        %3489 = vmax.xlane.f32.xlu0 %v3271
        %v3490 = vpop.xlane.xlu0 %3489
        %3491 = vmax.xlane.f32.xlu0 %v3274
        %v3492 = vpop.xlane.xlu0 %3491
        %3493 = vmax.xlane.f32.xlu0 %v3279
        %v3494 = vpop.xlane.xlu0 %3493
        %3495 = vmax.xlane.f32.xlu0 %v3282
        %v3496 = vpop.xlane.xlu0 %3495
        %3497 = vmax.xlane.f32.xlu0 %v3287
        %v3498 = vpop.xlane.xlu0 %3497
        %3499 = vmax.xlane.f32.xlu0 %v3290
        %v3500 = vpop.xlane.xlu0 %3499
        %3501 = vmax.xlane.f32.xlu0 %v3295
        %v3502 = vpop.xlane.xlu0 %3501
        %3503 = vmax.xlane.f32.xlu0 %v3298
        %v3504 = vpop.xlane.xlu0 %3503
        %3505 = vmax.xlane.f32.xlu0 %v3303
        %v3506 = vpop.xlane.xlu0 %3505
        %3507 = vmax.xlane.f32.xlu0 %v3306
        %v3508 = vpop.xlane.xlu0 %3507
        %3509 = vmax.xlane.f32.xlu0 %v3311
        %v3510 = vpop.xlane.xlu0 %3509
        %3511 = vmax.xlane.f32.xlu0 %v3314
        %v3512 = vpop.xlane.xlu0 %3511
        %3513 = vmax.xlane.f32.xlu0 %v3319
        %v3514 = vpop.xlane.xlu0 %3513
        %3515 = vmax.xlane.f32.xlu0 %v3322
        %v3516 = vpop.xlane.xlu0 %3515
        %3517 = vmax.xlane.f32.xlu0 %v3327
        %v3518 = vpop.xlane.xlu0 %3517
        %3519 = vmax.xlane.f32.xlu0 %v3330
        %v3520 = vpop.xlane.xlu0 %3519
        %3521 = vmax.xlane.f32.xlu0 %v3335
        %v3522 = vpop.xlane.xlu0 %3521
        %3523 = vmax.xlane.f32.xlu0 %v3338
        %v3524 = vpop.xlane.xlu0 %3523
        %3525 = vmax.xlane.f32.xlu0 %v3343
        %v3526 = vpop.xlane.xlu0 %3525
        %3527 = vmax.xlane.f32.xlu0 %v3346
        %v3528 = vpop.xlane.xlu0 %3527
        %3529 = vmax.xlane.f32.xlu0 %v3351
        %v3530 = vpop.xlane.xlu0 %3529
        %3531 = vmax.xlane.f32.xlu0 %v3354
        %v3532 = vpop.xlane.xlu0 %3531
        %3533 = vmax.xlane.f32.xlu0 %v3359
        %v3534 = vpop.xlane.xlu0 %3533
        %3535 = vmax.xlane.f32.xlu0 %v3362
        %v3536 = vpop.xlane.xlu0 %3535
        %3537 = vmax.xlane.f32.xlu0 %v3367
        %v3538 = vpop.xlane.xlu0 %3537
        %3539 = vmax.xlane.f32.xlu0 %v3370
        %v3540 = vpop.xlane.xlu0 %3539
        %3541 = vmax.xlane.f32.xlu0 %v3375
        %v3542 = vpop.xlane.xlu0 %3541
        %3543 = vmax.xlane.f32.xlu0 %v3378
        %v3544 = vpop.xlane.xlu0 %3543
        %3545 = vmax.xlane.f32.xlu0 %v3383
        %v3546 = vpop.xlane.xlu0 %3545
        %3547 = vmax.xlane.f32.xlu0 %v3386
        %v3548 = vpop.xlane.xlu0 %3547
        %3549 = vmax.xlane.f32.xlu0 %v3391
        %v3550 = vpop.xlane.xlu0 %3549
        %3551 = vmax.xlane.f32.xlu0 %v3394
        %v3552 = vpop.xlane.xlu0 %3551
        %3553 = vmax.xlane.f32.xlu0 %v3399
        %v3554 = vpop.xlane.xlu0 %3553
        %3555 = vmax.xlane.f32.xlu0 %v3402
        %v3556 = vpop.xlane.xlu0 %3555
        %3557 = vmax.xlane.f32.xlu0 %v3407
        %v3558 = vpop.xlane.xlu0 %3557
        %3559 = vmax.xlane.f32.xlu0 %v3410
        %v3560 = vpop.xlane.xlu0 %3559
        %3561 = vmax.xlane.f32.xlu0 %v3415
        %v3562 = vpop.xlane.xlu0 %3561
        %3563 = vmax.xlane.f32.xlu0 %v3418
        %v3564 = vpop.xlane.xlu0 %3563
        %3565 = vmax.xlane.f32.xlu0 %v3423
        %v3566 = vpop.xlane.xlu0 %3565
        %3567 = vmax.xlane.f32.xlu0 %v3426
        %v3568 = vpop.xlane.xlu0 %3567
        %3569 = vmax.xlane.f32.xlu0 %v3431
        %v3570 = vpop.xlane.xlu0 %3569
        %3571 = vmax.xlane.f32.xlu0 %v3434
        %v3572 = vpop.xlane.xlu0 %3571
        %3573 = vmax.xlane.f32.xlu0 %v3439
        %v3574 = vpop.xlane.xlu0 %3573
        %3575 = vmax.xlane.f32.xlu0 %v3442
        %v3576 = vpop.xlane.xlu0 %3575
        %3577 = vmax.xlane.f32.xlu0 %v3447
        %v3578 = vpop.xlane.xlu0 %3577
        %3579 = vmax.xlane.f32.xlu0 %v3450
        %v3580 = vpop.xlane.xlu0 %3579
        %v3581 = vsub.f32 %v3199, %v3454
        %v3582 = vsub.f32 %v3202, %v3456
        %v3583 = vsub.f32 %v3207, %v3458
        %v3584 = vsub.f32 %v3210, %v3460
        %v3585 = vsub.f32 %v3215, %v3462
        %v3586 = vsub.f32 %v3218, %v3464
        %v3587 = vsub.f32 %v3223, %v3466
        %v3588 = vsub.f32 %v3226, %v3468
        %v3589 = vsub.f32 %v3231, %v3470
        %v3590 = vsub.f32 %v3234, %v3472
        %v3591 = vsub.f32 %v3239, %v3474
        %v3592 = vsub.f32 %v3242, %v3476
        %v3593 = vsub.f32 %v3247, %v3478
        %v3594 = vsub.f32 %v3250, %v3480
        %v3595 = vsub.f32 %v3255, %v3482
        %v3596 = vsub.f32 %v3258, %v3484
        %v3597 = vsub.f32 %v3263, %v3486
        %v3598 = vsub.f32 %v3266, %v3488
        %v3599 = vsub.f32 %v3271, %v3490
        %v3600 = vsub.f32 %v3274, %v3492
        %v3601 = vsub.f32 %v3279, %v3494
        %v3602 = vsub.f32 %v3282, %v3496
        %v3603 = vsub.f32 %v3287, %v3498
        %v3604 = vsub.f32 %v3290, %v3500
        %v3605 = vsub.f32 %v3295, %v3502
        %v3606 = vsub.f32 %v3298, %v3504
        %v3607 = vsub.f32 %v3303, %v3506
        %v3608 = vsub.f32 %v3306, %v3508
        %v3609 = vsub.f32 %v3311, %v3510
        %v3610 = vsub.f32 %v3314, %v3512
        %v3611 = vsub.f32 %v3319, %v3514
        %v3612 = vsub.f32 %v3322, %v3516
        %v3613 = vsub.f32 %v3327, %v3518
        %v3614 = vsub.f32 %v3330, %v3520
        %v3615 = vsub.f32 %v3335, %v3522
        %v3616 = vsub.f32 %v3338, %v3524
        %v3617 = vsub.f32 %v3343, %v3526
        %v3618 = vsub.f32 %v3346, %v3528
        %v3619 = vsub.f32 %v3351, %v3530
        %v3620 = vsub.f32 %v3354, %v3532
        %v3621 = vsub.f32 %v3359, %v3534
        %v3622 = vsub.f32 %v3362, %v3536
        %v3623 = vsub.f32 %v3367, %v3538
        %v3624 = vsub.f32 %v3370, %v3540
        %v3625 = vsub.f32 %v3375, %v3542
        %v3626 = vsub.f32 %v3378, %v3544
        %v3627 = vsub.f32 %v3383, %v3546
        %v3628 = vsub.f32 %v3386, %v3548
        %v3629 = vsub.f32 %v3391, %v3550
        %v3630 = vsub.f32 %v3394, %v3552
        %v3631 = vsub.f32 %v3399, %v3554
        %v3632 = vsub.f32 %v3402, %v3556
        %v3633 = vsub.f32 %v3407, %v3558
        %v3634 = vsub.f32 %v3410, %v3560
        %v3635 = vsub.f32 %v3415, %v3562
        %v3636 = vsub.f32 %v3418, %v3564
        %v3637 = vsub.f32 %v3423, %v3566
        %v3638 = vsub.f32 %v3426, %v3568
        %v3639 = vsub.f32 %v3431, %v3570
        %v3640 = vsub.f32 %v3434, %v3572
        %v3641 = vsub.f32 %v3439, %v3574
        %v3642 = vsub.f32 %v3442, %v3576
        %v3643 = vsub.f32 %v3447, %v3578
        %v3644 = vsub.f32 %v3450, %v3580
        %v3645 = vmul.f32 %v3581, 1.442695
        %v3646 = vpow.pop %v3645
        %v3647 = vmul.f32 %v3582, 1.442695
        %v3648 = vpow.pop %v3647
        %v3649 = vmul.f32 %v3583, 1.442695
        %v3650 = vpow.pop %v3649
        %v3651 = vmul.f32 %v3584, 1.442695
        %v3652 = vpow.pop %v3651
        %v3653 = vmul.f32 %v3585, 1.442695
        %v3654 = vpow.pop %v3653
        %v3655 = vmul.f32 %v3586, 1.442695
        %v3656 = vpow.pop %v3655
        %v3657 = vmul.f32 %v3587, 1.442695
        %v3658 = vpow.pop %v3657
        %v3659 = vmul.f32 %v3588, 1.442695
        %v3660 = vpow.pop %v3659
        %v3661 = vmul.f32 %v3589, 1.442695
        %v3662 = vpow.pop %v3661
        %v3663 = vmul.f32 %v3590, 1.442695
        %v3664 = vpow.pop %v3663
        %v3665 = vmul.f32 %v3591, 1.442695
        %v3666 = vpow.pop %v3665
        %v3667 = vmul.f32 %v3592, 1.442695
        %v3668 = vpow.pop %v3667
        %v3669 = vmul.f32 %v3593, 1.442695
        %v3670 = vpow.pop %v3669
        %v3671 = vmul.f32 %v3594, 1.442695
        %v3672 = vpow.pop %v3671
        %v3673 = vmul.f32 %v3595, 1.442695
        %v3674 = vpow.pop %v3673
        %v3675 = vmul.f32 %v3596, 1.442695
        %v3676 = vpow.pop %v3675
        %v3677 = vmul.f32 %v3597, 1.442695
        %v3678 = vpow.pop %v3677
        %v3679 = vmul.f32 %v3598, 1.442695
        %v3680 = vpow.pop %v3679
        %v3681 = vmul.f32 %v3599, 1.442695
        %v3682 = vpow.pop %v3681
        %v3683 = vmul.f32 %v3600, 1.442695
        %v3684 = vpow.pop %v3683
        %v3685 = vmul.f32 %v3601, 1.442695
        %v3686 = vpow.pop %v3685
        %v3687 = vmul.f32 %v3602, 1.442695
        %v3688 = vpow.pop %v3687
        %v3689 = vmul.f32 %v3603, 1.442695
        %v3690 = vpow.pop %v3689
        %v3691 = vmul.f32 %v3604, 1.442695
        %v3692 = vpow.pop %v3691
        %v3693 = vmul.f32 %v3605, 1.442695
        %v3694 = vpow.pop %v3693
        %v3695 = vmul.f32 %v3606, 1.442695
        %v3696 = vpow.pop %v3695
        %v3697 = vmul.f32 %v3607, 1.442695
        %v3698 = vpow.pop %v3697
        %v3699 = vmul.f32 %v3608, 1.442695
        %v3700 = vpow.pop %v3699
        %v3701 = vmul.f32 %v3609, 1.442695
        %v3702 = vpow.pop %v3701
        %v3703 = vmul.f32 %v3610, 1.442695
        %v3704 = vpow.pop %v3703
        %v3705 = vmul.f32 %v3611, 1.442695
        %v3706 = vpow.pop %v3705
        %v3707 = vmul.f32 %v3612, 1.442695
        %v3708 = vpow.pop %v3707
        %v3709 = vmul.f32 %v3613, 1.442695
        %v3710 = vpow.pop %v3709
        %v3711 = vmul.f32 %v3614, 1.442695
        %v3712 = vpow.pop %v3711
        %v3713 = vmul.f32 %v3615, 1.442695
        %v3714 = vpow.pop %v3713
        %v3715 = vmul.f32 %v3616, 1.442695
        %v3716 = vpow.pop %v3715
        %v3717 = vmul.f32 %v3617, 1.442695
        %v3718 = vpow.pop %v3717
        %v3719 = vmul.f32 %v3618, 1.442695
        %v3720 = vpow.pop %v3719
        %v3721 = vmul.f32 %v3619, 1.442695
        %v3722 = vpow.pop %v3721
        %v3723 = vmul.f32 %v3620, 1.442695
        %v3724 = vpow.pop %v3723
        %v3725 = vmul.f32 %v3621, 1.442695
        %v3726 = vpow.pop %v3725
        %v3727 = vmul.f32 %v3622, 1.442695
        %v3728 = vpow.pop %v3727
        %v3729 = vmul.f32 %v3623, 1.442695
        %v3730 = vpow.pop %v3729
        %v3731 = vmul.f32 %v3624, 1.442695
        %v3732 = vpow.pop %v3731
        %v3733 = vmul.f32 %v3625, 1.442695
        %v3734 = vpow.pop %v3733
        %v3735 = vmul.f32 %v3626, 1.442695
        %v3736 = vpow.pop %v3735
        %v3737 = vmul.f32 %v3627, 1.442695
        %v3738 = vpow.pop %v3737
        %v3739 = vmul.f32 %v3628, 1.442695
        %v3740 = vpow.pop %v3739
        %v3741 = vmul.f32 %v3629, 1.442695
        %v3742 = vpow.pop %v3741
        %v3743 = vmul.f32 %v3630, 1.442695
        %v3744 = vpow.pop %v3743
        %v3745 = vmul.f32 %v3631, 1.442695
        %v3746 = vpow.pop %v3745
        %v3747 = vmul.f32 %v3632, 1.442695
        %v3748 = vpow.pop %v3747
        %v3749 = vmul.f32 %v3633, 1.442695
        %v3750 = vpow.pop %v3749
        %v3751 = vmul.f32 %v3634, 1.442695
        %v3752 = vpow.pop %v3751
        %v3753 = vmul.f32 %v3635, 1.442695
        %v3754 = vpow.pop %v3753
        %v3755 = vmul.f32 %v3636, 1.442695
        %v3756 = vpow.pop %v3755
        %v3757 = vmul.f32 %v3637, 1.442695
        %v3758 = vpow.pop %v3757
        %v3759 = vmul.f32 %v3638, 1.442695
        %v3760 = vpow.pop %v3759
        %v3761 = vmul.f32 %v3639, 1.442695
        %v3762 = vpow.pop %v3761
        %v3763 = vmul.f32 %v3640, 1.442695
        %v3764 = vpow.pop %v3763
        %v3765 = vmul.f32 %v3641, 1.442695
        %v3766 = vpow.pop %v3765
        %v3767 = vmul.f32 %v3642, 1.442695
        %v3768 = vpow.pop %v3767
        %v3769 = vmul.f32 %v3643, 1.442695
        %v3770 = vpow.pop %v3769
        %v3771 = vmul.f32 %v3644, 1.442695
        %v3772 = vpow.pop %v3771
        %3773 = vadd.xlane.f32.xlu0 %v3646
        %v3774 = vpop.xlane.xlu0 %3773
        %3775 = vadd.xlane.f32.xlu0 %v3648
        %v3776 = vpop.xlane.xlu0 %3775
        %3777 = vadd.xlane.f32.xlu0 %v3650
        %v3778 = vpop.xlane.xlu0 %3777
        %3779 = vadd.xlane.f32.xlu0 %v3652
        %v3780 = vpop.xlane.xlu0 %3779
        %3781 = vadd.xlane.f32.xlu0 %v3654
        %v3782 = vpop.xlane.xlu0 %3781
        %3783 = vadd.xlane.f32.xlu0 %v3656
        %v3784 = vpop.xlane.xlu0 %3783
        %3785 = vadd.xlane.f32.xlu0 %v3658
        %v3786 = vpop.xlane.xlu0 %3785
        %3787 = vadd.xlane.f32.xlu0 %v3660
        %v3788 = vpop.xlane.xlu0 %3787
        %3789 = vadd.xlane.f32.xlu0 %v3662
        %v3790 = vpop.xlane.xlu0 %3789
        %3791 = vadd.xlane.f32.xlu0 %v3664
        %v3792 = vpop.xlane.xlu0 %3791
        %3793 = vadd.xlane.f32.xlu0 %v3666
        %v3794 = vpop.xlane.xlu0 %3793
        %3795 = vadd.xlane.f32.xlu0 %v3668
        %v3796 = vpop.xlane.xlu0 %3795
        %3797 = vadd.xlane.f32.xlu0 %v3670
        %v3798 = vpop.xlane.xlu0 %3797
        %3799 = vadd.xlane.f32.xlu0 %v3672
        %v3800 = vpop.xlane.xlu0 %3799
        %3801 = vadd.xlane.f32.xlu0 %v3674
        %v3802 = vpop.xlane.xlu0 %3801
        %3803 = vadd.xlane.f32.xlu0 %v3676
        %v3804 = vpop.xlane.xlu0 %3803
        %3805 = vadd.xlane.f32.xlu0 %v3678
        %v3806 = vpop.xlane.xlu0 %3805
        %3807 = vadd.xlane.f32.xlu0 %v3680
        %v3808 = vpop.xlane.xlu0 %3807
        %3809 = vadd.xlane.f32.xlu0 %v3682
        %v3810 = vpop.xlane.xlu0 %3809
        %3811 = vadd.xlane.f32.xlu0 %v3684
        %v3812 = vpop.xlane.xlu0 %3811
        %3813 = vadd.xlane.f32.xlu0 %v3686
        %v3814 = vpop.xlane.xlu0 %3813
        %3815 = vadd.xlane.f32.xlu0 %v3688
        %v3816 = vpop.xlane.xlu0 %3815
        %3817 = vadd.xlane.f32.xlu0 %v3690
        %v3818 = vpop.xlane.xlu0 %3817
        %3819 = vadd.xlane.f32.xlu0 %v3692
        %v3820 = vpop.xlane.xlu0 %3819
        %3821 = vadd.xlane.f32.xlu0 %v3694
        %v3822 = vpop.xlane.xlu0 %3821
        %3823 = vadd.xlane.f32.xlu0 %v3696
        %v3824 = vpop.xlane.xlu0 %3823
        %3825 = vadd.xlane.f32.xlu0 %v3698
        %v3826 = vpop.xlane.xlu0 %3825
        %3827 = vadd.xlane.f32.xlu0 %v3700
        %v3828 = vpop.xlane.xlu0 %3827
        %3829 = vadd.xlane.f32.xlu0 %v3702
        %v3830 = vpop.xlane.xlu0 %3829
        %3831 = vadd.xlane.f32.xlu0 %v3704
        %v3832 = vpop.xlane.xlu0 %3831
        %3833 = vadd.xlane.f32.xlu0 %v3706
        %v3834 = vpop.xlane.xlu0 %3833
        %3835 = vadd.xlane.f32.xlu0 %v3708
        %v3836 = vpop.xlane.xlu0 %3835
        %3837 = vadd.xlane.f32.xlu0 %v3710
        %v3838 = vpop.xlane.xlu0 %3837
        %3839 = vadd.xlane.f32.xlu0 %v3712
        %v3840 = vpop.xlane.xlu0 %3839
        %3841 = vadd.xlane.f32.xlu0 %v3714
        %v3842 = vpop.xlane.xlu0 %3841
        %3843 = vadd.xlane.f32.xlu0 %v3716
        %v3844 = vpop.xlane.xlu0 %3843
        %3845 = vadd.xlane.f32.xlu0 %v3718
        %v3846 = vpop.xlane.xlu0 %3845
        %3847 = vadd.xlane.f32.xlu0 %v3720
        %v3848 = vpop.xlane.xlu0 %3847
        %3849 = vadd.xlane.f32.xlu0 %v3722
        %v3850 = vpop.xlane.xlu0 %3849
        %3851 = vadd.xlane.f32.xlu0 %v3724
        %v3852 = vpop.xlane.xlu0 %3851
        %3853 = vadd.xlane.f32.xlu0 %v3726
        %v3854 = vpop.xlane.xlu0 %3853
        %3855 = vadd.xlane.f32.xlu0 %v3728
        %v3856 = vpop.xlane.xlu0 %3855
        %3857 = vadd.xlane.f32.xlu0 %v3730
        %v3858 = vpop.xlane.xlu0 %3857
        %3859 = vadd.xlane.f32.xlu0 %v3732
        %v3860 = vpop.xlane.xlu0 %3859
        %3861 = vadd.xlane.f32.xlu0 %v3734
        %v3862 = vpop.xlane.xlu0 %3861
        %3863 = vadd.xlane.f32.xlu0 %v3736
        %v3864 = vpop.xlane.xlu0 %3863
        %3865 = vadd.xlane.f32.xlu0 %v3738
        %v3866 = vpop.xlane.xlu0 %3865
        %3867 = vadd.xlane.f32.xlu0 %v3740
        %v3868 = vpop.xlane.xlu0 %3867
        %3869 = vadd.xlane.f32.xlu0 %v3742
        %v3870 = vpop.xlane.xlu0 %3869
        %3871 = vadd.xlane.f32.xlu0 %v3744
        %v3872 = vpop.xlane.xlu0 %3871
        %3873 = vadd.xlane.f32.xlu0 %v3746
        %v3874 = vpop.xlane.xlu0 %3873
        %3875 = vadd.xlane.f32.xlu0 %v3748
        %v3876 = vpop.xlane.xlu0 %3875
        %3877 = vadd.xlane.f32.xlu0 %v3750
        %v3878 = vpop.xlane.xlu0 %3877
        %3879 = vadd.xlane.f32.xlu0 %v3752
        %v3880 = vpop.xlane.xlu0 %3879
        %3881 = vadd.xlane.f32.xlu0 %v3754
        %v3882 = vpop.xlane.xlu0 %3881
        %3883 = vadd.xlane.f32.xlu0 %v3756
        %v3884 = vpop.xlane.xlu0 %3883
        %3885 = vadd.xlane.f32.xlu0 %v3758
        %v3886 = vpop.xlane.xlu0 %3885
        %3887 = vadd.xlane.f32.xlu0 %v3760
        %v3888 = vpop.xlane.xlu0 %3887
        %3889 = vadd.xlane.f32.xlu0 %v3762
        %v3890 = vpop.xlane.xlu0 %3889
        %3891 = vadd.xlane.f32.xlu0 %v3764
        %v3892 = vpop.xlane.xlu0 %3891
        %3893 = vadd.xlane.f32.xlu0 %v3766
        %v3894 = vpop.xlane.xlu0 %3893
        %3895 = vadd.xlane.f32.xlu0 %v3768
        %v3896 = vpop.xlane.xlu0 %3895
        %3897 = vadd.xlane.f32.xlu0 %v3770
        %v3898 = vpop.xlane.xlu0 %3897
        %3899 = vadd.xlane.f32.xlu0 %v3772
        %v3900 = vpop.xlane.xlu0 %3899
        %v3901 = vlog2.pop %v3774
        %v3902 = vmul.f32 %v3901, 0.6931472
        %v3903 = vlog2.pop %v3776
        %v3904 = vmul.f32 %v3903, 0.6931472
        %v3905 = vlog2.pop %v3778
        %v3906 = vmul.f32 %v3905, 0.6931472
        %v3907 = vlog2.pop %v3780
        %v3908 = vmul.f32 %v3907, 0.6931472
        %v3909 = vlog2.pop %v3782
        %v3910 = vmul.f32 %v3909, 0.6931472
        %v3911 = vlog2.pop %v3784
        %v3912 = vmul.f32 %v3911, 0.6931472
        %v3913 = vlog2.pop %v3786
        %v3914 = vmul.f32 %v3913, 0.6931472
        %v3915 = vlog2.pop %v3788
        %v3916 = vmul.f32 %v3915, 0.6931472
        %v3917 = vlog2.pop %v3790
        %v3918 = vmul.f32 %v3917, 0.6931472
        %v3919 = vlog2.pop %v3792
        %v3920 = vmul.f32 %v3919, 0.6931472
        %v3921 = vlog2.pop %v3794
        %v3922 = vmul.f32 %v3921, 0.6931472
        %v3923 = vlog2.pop %v3796
        %v3924 = vmul.f32 %v3923, 0.6931472
        %v3925 = vlog2.pop %v3798
        %v3926 = vmul.f32 %v3925, 0.6931472
        %v3927 = vlog2.pop %v3800
        %v3928 = vmul.f32 %v3927, 0.6931472
        %v3929 = vlog2.pop %v3802
        %v3930 = vmul.f32 %v3929, 0.6931472
        %v3931 = vlog2.pop %v3804
        %v3932 = vmul.f32 %v3931, 0.6931472
        %v3933 = vlog2.pop %v3806
        %v3934 = vmul.f32 %v3933, 0.6931472
        %v3935 = vlog2.pop %v3808
        %v3936 = vmul.f32 %v3935, 0.6931472
        %v3937 = vlog2.pop %v3810
        %v3938 = vmul.f32 %v3937, 0.6931472
        %v3939 = vlog2.pop %v3812
        %v3940 = vmul.f32 %v3939, 0.6931472
        %v3941 = vlog2.pop %v3814
        %v3942 = vmul.f32 %v3941, 0.6931472
        %v3943 = vlog2.pop %v3816
        %v3944 = vmul.f32 %v3943, 0.6931472
        %v3945 = vlog2.pop %v3818
        %v3946 = vmul.f32 %v3945, 0.6931472
        %v3947 = vlog2.pop %v3820
        %v3948 = vmul.f32 %v3947, 0.6931472
        %v3949 = vlog2.pop %v3822
        %v3950 = vmul.f32 %v3949, 0.6931472
        %v3951 = vlog2.pop %v3824
        %v3952 = vmul.f32 %v3951, 0.6931472
        %v3953 = vlog2.pop %v3826
        %v3954 = vmul.f32 %v3953, 0.6931472
        %v3955 = vlog2.pop %v3828
        %v3956 = vmul.f32 %v3955, 0.6931472
        %v3957 = vlog2.pop %v3830
        %v3958 = vmul.f32 %v3957, 0.6931472
        %v3959 = vlog2.pop %v3832
        %v3960 = vmul.f32 %v3959, 0.6931472
        %v3961 = vlog2.pop %v3834
        %v3962 = vmul.f32 %v3961, 0.6931472
        %v3963 = vlog2.pop %v3836
        %v3964 = vmul.f32 %v3963, 0.6931472
        %v3965 = vlog2.pop %v3838
        %v3966 = vmul.f32 %v3965, 0.6931472
        %v3967 = vlog2.pop %v3840
        %v3968 = vmul.f32 %v3967, 0.6931472
        %v3969 = vlog2.pop %v3842
        %v3970 = vmul.f32 %v3969, 0.6931472
        %v3971 = vlog2.pop %v3844
        %v3972 = vmul.f32 %v3971, 0.6931472
        %v3973 = vlog2.pop %v3846
        %v3974 = vmul.f32 %v3973, 0.6931472
        %v3975 = vlog2.pop %v3848
        %v3976 = vmul.f32 %v3975, 0.6931472
        %v3977 = vlog2.pop %v3850
        %v3978 = vmul.f32 %v3977, 0.6931472
        %v3979 = vlog2.pop %v3852
        %v3980 = vmul.f32 %v3979, 0.6931472
        %v3981 = vlog2.pop %v3854
        %v3982 = vmul.f32 %v3981, 0.6931472
        %v3983 = vlog2.pop %v3856
        %v3984 = vmul.f32 %v3983, 0.6931472
        %v3985 = vlog2.pop %v3858
        %v3986 = vmul.f32 %v3985, 0.6931472
        %v3987 = vlog2.pop %v3860
        %v3988 = vmul.f32 %v3987, 0.6931472
        %v3989 = vlog2.pop %v3862
        %v3990 = vmul.f32 %v3989, 0.6931472
        %v3991 = vlog2.pop %v3864
        %v3992 = vmul.f32 %v3991, 0.6931472
        %v3993 = vlog2.pop %v3866
        %v3994 = vmul.f32 %v3993, 0.6931472
        %v3995 = vlog2.pop %v3868
        %v3996 = vmul.f32 %v3995, 0.6931472
        %v3997 = vlog2.pop %v3870
        %v3998 = vmul.f32 %v3997, 0.6931472
        %v3999 = vlog2.pop %v3872
        %v4000 = vmul.f32 %v3999, 0.6931472
        %v4001 = vlog2.pop %v3874
        %v4002 = vmul.f32 %v4001, 0.6931472
        %v4003 = vlog2.pop %v3876
        %v4004 = vmul.f32 %v4003, 0.6931472
        %v4005 = vlog2.pop %v3878
        %v4006 = vmul.f32 %v4005, 0.6931472
        %v4007 = vlog2.pop %v3880
        %v4008 = vmul.f32 %v4007, 0.6931472
        %v4009 = vlog2.pop %v3882
        %v4010 = vmul.f32 %v4009, 0.6931472
        %v4011 = vlog2.pop %v3884
        %v4012 = vmul.f32 %v4011, 0.6931472
        %v4013 = vlog2.pop %v3886
        %v4014 = vmul.f32 %v4013, 0.6931472
        %v4015 = vlog2.pop %v3888
        %v4016 = vmul.f32 %v4015, 0.6931472
        %v4017 = vlog2.pop %v3890
        %v4018 = vmul.f32 %v4017, 0.6931472
        %v4019 = vlog2.pop %v3892
        %v4020 = vmul.f32 %v4019, 0.6931472
        %v4021 = vlog2.pop %v3894
        %v4022 = vmul.f32 %v4021, 0.6931472
        %v4023 = vlog2.pop %v3896
        %v4024 = vmul.f32 %v4023, 0.6931472
        %v4025 = vlog2.pop %v3898
        %v4026 = vmul.f32 %v4025, 0.6931472
        %v4027 = vlog2.pop %v3900
        %v4028 = vmul.f32 %v4027, 0.6931472
        %v4029 = vsub.f32 %v3581, %v3902
        %v4030 = vsub.f32 %v3582, %v3904
        %v4031 = vsub.f32 %v3583, %v3906
        %v4032 = vsub.f32 %v3584, %v3908
        %v4033 = vsub.f32 %v3585, %v3910
        %v4034 = vsub.f32 %v3586, %v3912
        %v4035 = vsub.f32 %v3587, %v3914
        %v4036 = vsub.f32 %v3588, %v3916
        %v4037 = vsub.f32 %v3589, %v3918
        %v4038 = vsub.f32 %v3590, %v3920
        %v4039 = vsub.f32 %v3591, %v3922
        %v4040 = vsub.f32 %v3592, %v3924
        %v4041 = vsub.f32 %v3593, %v3926
        %v4042 = vsub.f32 %v3594, %v3928
        %v4043 = vsub.f32 %v3595, %v3930
        %v4044 = vsub.f32 %v3596, %v3932
        %v4045 = vsub.f32 %v3597, %v3934
        %v4046 = vsub.f32 %v3598, %v3936
        %v4047 = vsub.f32 %v3599, %v3938
        %v4048 = vsub.f32 %v3600, %v3940
        %v4049 = vsub.f32 %v3601, %v3942
        %v4050 = vsub.f32 %v3602, %v3944
        %v4051 = vsub.f32 %v3603, %v3946
        %v4052 = vsub.f32 %v3604, %v3948
        %v4053 = vsub.f32 %v3605, %v3950
        %v4054 = vsub.f32 %v3606, %v3952
        %v4055 = vsub.f32 %v3607, %v3954
        %v4056 = vsub.f32 %v3608, %v3956
        %v4057 = vsub.f32 %v3609, %v3958
        %v4058 = vsub.f32 %v3610, %v3960
        %v4059 = vsub.f32 %v3611, %v3962
        %v4060 = vsub.f32 %v3612, %v3964
        %v4061 = vsub.f32 %v3613, %v3966
        %v4062 = vsub.f32 %v3614, %v3968
        %v4063 = vsub.f32 %v3615, %v3970
        %v4064 = vsub.f32 %v3616, %v3972
        %v4065 = vsub.f32 %v3617, %v3974
        %v4066 = vsub.f32 %v3618, %v3976
        %v4067 = vsub.f32 %v3619, %v3978
        %v4068 = vsub.f32 %v3620, %v3980
        %v4069 = vsub.f32 %v3621, %v3982
        %v4070 = vsub.f32 %v3622, %v3984
        %v4071 = vsub.f32 %v3623, %v3986
        %v4072 = vsub.f32 %v3624, %v3988
        %v4073 = vsub.f32 %v3625, %v3990
        %v4074 = vsub.f32 %v3626, %v3992
        %v4075 = vsub.f32 %v3627, %v3994
        %v4076 = vsub.f32 %v3628, %v3996
        %v4077 = vsub.f32 %v3629, %v3998
        %v4078 = vsub.f32 %v3630, %v4000
        %v4079 = vsub.f32 %v3631, %v4002
        %v4080 = vsub.f32 %v3632, %v4004
        %v4081 = vsub.f32 %v3633, %v4006
        %v4082 = vsub.f32 %v3634, %v4008
        %v4083 = vsub.f32 %v3635, %v4010
        %v4084 = vsub.f32 %v3636, %v4012
        %v4085 = vsub.f32 %v3637, %v4014
        %v4086 = vsub.f32 %v3638, %v4016
        %v4087 = vsub.f32 %v3639, %v4018
        %v4088 = vsub.f32 %v3640, %v4020
        %v4089 = vsub.f32 %v3641, %v4022
        %v4090 = vsub.f32 %v3642, %v4024
        %v4091 = vsub.f32 %v3643, %v4026
        %v4092 = vsub.f32 %v3644, %v4028
        %4093 = vst [vmem:[%s190] sm:$0xff] %v4029
        %4094 = vst [vmem:[%s190 + $0x8] sm:$0xff] %v4030
        %4095 = vst [vmem:[%s190 + $0x10] sm:$0xff] %v4031
        %4096 = vst [vmem:[%s190 + $0x18] sm:$0xff] %v4032
        %4097 = vst [vmem:[%s190 + $0x20] sm:$0xff] %v4033
        %4098 = vst [vmem:[%s190 + $0x28] sm:$0xff] %v4034
        %4099 = vst [vmem:[%s190 + $0x30] sm:$0xff] %v4035
        %4100 = vst [vmem:[%s190 + $0x38] sm:$0xff] %v4036
        %4101 = vst [vmem:[%s190 + $0x40] sm:$0xff] %v4037
        %4102 = vst [vmem:[%s190 + $0x48] sm:$0xff] %v4038
        %4103 = vst [vmem:[%s190 + $0x50] sm:$0xff] %v4039
        %4104 = vst [vmem:[%s190 + $0x58] sm:$0xff] %v4040
        %4105 = vst [vmem:[%s190 + $0x60] sm:$0xff] %v4041
        %4106 = vst [vmem:[%s190 + $0x68] sm:$0xff] %v4042
        %4107 = vst [vmem:[%s190 + $0x70] sm:$0xff] %v4043
        %4108 = vst [vmem:[%s190 + $0x78] sm:$0xff] %v4044
        %4109 = vst [vmem:[%s190 + $0x80] sm:$0xff] %v4045
        %4110 = vst [vmem:[%s190 + $0x88] sm:$0xff] %v4046
        %4111 = vst [vmem:[%s190 + $0x90] sm:$0xff] %v4047
        %4112 = vst [vmem:[%s190 + $0x98] sm:$0xff] %v4048
        %4113 = vst [vmem:[%s190 + $0xa0] sm:$0xff] %v4049
        %4114 = vst [vmem:[%s190 + $0xa8] sm:$0xff] %v4050
        %4115 = vst [vmem:[%s190 + $0xb0] sm:$0xff] %v4051
        %4116 = vst [vmem:[%s190 + $0xb8] sm:$0xff] %v4052
        %4117 = vst [vmem:[%s190 + $0xc0] sm:$0xff] %v4053
        %4118 = vst [vmem:[%s190 + $0xc8] sm:$0xff] %v4054
        %4119 = vst [vmem:[%s190 + $0xd0] sm:$0xff] %v4055
        %4120 = vst [vmem:[%s190 + $0xd8] sm:$0xff] %v4056
        %4121 = vst [vmem:[%s190 + $0xe0] sm:$0xff] %v4057
        %4122 = vst [vmem:[%s190 + $0xe8] sm:$0xff] %v4058
        %4123 = vst [vmem:[%s190 + $0xf0] sm:$0xff] %v4059
        %4124 = vst [vmem:[%s190 + $0xf8] sm:$0xff] %v4060
        %4125 = vst [vmem:[%s190 + $0x100] sm:$0xff] %v4061
        %4126 = vst [vmem:[%s190 + $0x108] sm:$0xff] %v4062
        %4127 = vst [vmem:[%s190 + $0x110] sm:$0xff] %v4063
        %4128 = vst [vmem:[%s190 + $0x118] sm:$0xff] %v4064
        %4129 = vst [vmem:[%s190 + $0x120] sm:$0xff] %v4065
        %4130 = vst [vmem:[%s190 + $0x128] sm:$0xff] %v4066
        %4131 = vst [vmem:[%s190 + $0x130] sm:$0xff] %v4067
        %4132 = vst [vmem:[%s190 + $0x138] sm:$0xff] %v4068
        %4133 = vst [vmem:[%s190 + $0x140] sm:$0xff] %v4069
        %4134 = vst [vmem:[%s190 + $0x148] sm:$0xff] %v4070
        %4135 = vst [vmem:[%s190 + $0x150] sm:$0xff] %v4071
        %4136 = vst [vmem:[%s190 + $0x158] sm:$0xff] %v4072
        %4137 = vst [vmem:[%s190 + $0x160] sm:$0xff] %v4073
        %4138 = vst [vmem:[%s190 + $0x168] sm:$0xff] %v4074
        %4139 = vst [vmem:[%s190 + $0x170] sm:$0xff] %v4075
        %4140 = vst [vmem:[%s190 + $0x178] sm:$0xff] %v4076
        %4141 = vst [vmem:[%s190 + $0x180] sm:$0xff] %v4077
        %4142 = vst [vmem:[%s190 + $0x188] sm:$0xff] %v4078
        %4143 = vst [vmem:[%s190 + $0x190] sm:$0xff] %v4079
        %4144 = vst [vmem:[%s190 + $0x198] sm:$0xff] %v4080
        %4145 = vst [vmem:[%s190 + $0x1a0] sm:$0xff] %v4081
        %4146 = vst [vmem:[%s190 + $0x1a8] sm:$0xff] %v4082
        %4147 = vst [vmem:[%s190 + $0x1b0] sm:$0xff] %v4083
        %4148 = vst [vmem:[%s190 + $0x1b8] sm:$0xff] %v4084
        %4149 = vst [vmem:[%s190 + $0x1c0] sm:$0xff] %v4085
        %4150 = vst [vmem:[%s190 + $0x1c8] sm:$0xff] %v4086
        %4151 = vst [vmem:[%s190 + $0x1d0] sm:$0xff] %v4087
        %4152 = vst [vmem:[%s190 + $0x1d8] sm:$0xff] %v4088
        %4153 = vst [vmem:[%s190 + $0x1e0] sm:$0xff] %v4089
        %4154 = vst [vmem:[%s190 + $0x1e8] sm:$0xff] %v4090
        %4155 = vst [vmem:[%s190 + $0x1f0] sm:$0xff] %v4091
        %4156 = vst [vmem:[%s190 + $0x1f8] sm:$0xff] %v4092
      $region86: #{gcn_apply.3} parent=35 // pred_fallthru
        _
      %s4157 = smul.u32 64, %s21
      %p4158 = scmp.lt.s32.totalorder %s4157, 63
      %s4159 = scalar_select %p4158, %s4157, 63
      %s4160 = smul.addr %s4159, 8
      %s4161 = scalar_lea.vmem %s5, %s4160
      // Predicated region
      $region87: #{gcn_apply.3} parent=35 // pred_check
        %p4162 = pneg %p130
      $region88: #{gcn_apply.3} parent=35 // pred_check_branch
        %4164 = sbr.rel (%p4162) target = $region90
      $region89: #{gcn_apply.3} parent=35 // pred_region
        %s4165 = smul.u32 64, %s21
      $region90: #{gcn_apply.3} parent=35 // pred_fallthru
        _
      // Predicated region
      $region91: #{gcn_apply.3} parent=35 // pred_check
        %p4166 = pneg %p130
      $region92: #{gcn_apply.3} parent=35 // pred_check_branch
        %4168 = sbr.rel (%p4166) target = $region94
      $region93: #{gcn_apply.3} parent=35 // pred_region
        %s4169 = smul.u32 64, %s21
        %p4170 = scmp.lt.s32.totalorder %s4169, 63
        %s4171 = scalar_select %p4170, %s4169, 63
        %s4172 = smul.addr %s4171, 8
        %s4173 = scalar_lea.vmem %s5, %s4172
      $region94: #{gcn_apply.3} parent=35 // pred_fallthru
        _
    $region36: #{gcn_apply.3} parent=5 // pred_fallthru
      _
    %p4174 = scmp.le.s32.totalorder 2, %s11
    // Predicated region
    $region95: #{gcn_apply.3} parent=5 // pred_check
      %p4175 = pneg %p4174
    $region96: #{gcn_apply.3} parent=5 // pred_check_branch
      %4177 = sbr.rel (%p4175) target = $region98
    $region97: #{gcn_apply.3} parent=5 // pred_region
      %s4178 = ssub.s32 %s11, 2
    $region98: #{gcn_apply.3} parent=5 // pred_fallthru
      _
  $region6: #{gcn_apply.3} parent=0 // loop_footer
    %s15 = sadd.s32 1, %s11
  $region7: #{gcn_apply.3} parent=0 // loop_footer_branch
    %10 = sbr.rel target = $region3
  $region8: #{gcn_apply.3} parent=0 // loop_exit
    _

</llo_original>
